<compile_context>
chip_gen: v6e
topology: v6e:2x2x1
jax: 0.10.0
libtpu: 0.0.40
codegen_flags: <defaults>
</compile_context>

<pallas_src>
import math

import jax
import jax.numpy as jnp
import numpy as np
from jax.experimental import pallas as pl
from jax.experimental.pallas import tpu as pltpu


# ----------------------------- Pallas kernel ------------------------------- #

def _layer_norm(v, g, b, eps=1e-5):
    mu = jnp.mean(v, axis=-1, keepdims=True)
    var = jnp.mean(jnp.square(v - mu), axis=-1, keepdims=True)
    return (v - mu) * jax.lax.rsqrt(var + eps) * g + b


def _make_transformer_kernel(heads, head_dim, use_mask):
    D = heads * head_dim

    def kernel(*refs):
        if use_mask:
            x_ref, mask_ref = refs[0], refs[1]
            p_refs = refs[2:-1]
        else:
            x_ref, mask_ref = refs[0], None
            p_refs = refs[1:-1]
        o_ref = refs[-1]
        (ln1_g, ln1_b, wqkv, bqkv, wo, bo,
         ln2_g, ln2_b, wfc, bfc, wpr, bpr) = p_refs

        bt, seq, _ = o_ref.shape
        M = bt * seq

        # First layer for this batch tile: load the input into the resident
        # output block.  The output BlockSpec is independent of the layer grid
        # axis, so this block stays in VMEM across all layers and is written
        # back to HBM only once per batch tile.
        @pl.when(pl.program_id(1) == 0)
        def _():
            o_ref[...] = x_ref[...]

        x = o_ref[...].reshape(M, D)                       # f32 residual stream

        # ---- attention branch: x + out_proj(MHA(ln_1(x))) ----
        h = _layer_norm(x, ln1_g[0], ln1_b[0])             # f32 LayerNorm
        qkv = jnp.dot(h.astype(jnp.bfloat16), wqkv[0],     # bf16 x bf16 -> f32 acc
                      preferred_element_type=jnp.float32) + bqkv[0]

        def split_heads(t):                                # (M, D) -> (bt*H, S, hd)
            return (t.reshape(bt, seq, heads, head_dim)
                     .transpose(0, 2, 1, 3)
                     .reshape(bt * heads, seq, head_dim))

        q = split_heads(qkv[:, :D]).astype(jnp.bfloat16)   # scale folded into wqkv
        k = split_heads(qkv[:, D:2 * D]).astype(jnp.bfloat16)
        v = split_heads(qkv[:, 2 * D:]).astype(jnp.bfloat16)

        # batched contractions over head_dim (no explicit k.T, no per-head loop)
        s = jnp.einsum("bqd,bkd->bqk", q, k, preferred_element_type=jnp.float32)
        if use_mask:
            s = s + mask_ref[...]
        s = s - jnp.max(s, axis=-1, keepdims=True)
        p = jnp.exp(s)                                     # unnormalized probs (f32)
        denom = jnp.sum(p, axis=-1, keepdims=True)         # (bt*H, S, 1)
        a = jnp.einsum("bqk,bkd->bqd", p.astype(jnp.bfloat16), v,
                       preferred_element_type=jnp.float32)
        # deferred softmax normalization: scale (S, hd) instead of (S, S),
        # reciprocal runs on the EUP slot.
        a = a * pl.reciprocal(denom, approx=True)
        a = (a.reshape(bt, heads, seq, head_dim)
              .transpose(0, 2, 1, 3)
              .reshape(M, D))
        a = jnp.dot(a.astype(jnp.bfloat16), wo[0],
                    preferred_element_type=jnp.float32) + bo[0]
        x = x + a                                          # DropPath == identity (eval)

        # ---- MLP branch: x + c_proj(QuickGELU(c_fc(ln_2(x)))) ----
        h2 = _layer_norm(x, ln2_g[0], ln2_b[0])
        f = jnp.dot(h2.astype(jnp.bfloat16), wfc[0],
                    preferred_element_type=jnp.float32) + bfc[0]
        f = f * jax.nn.sigmoid(1.702 * f)                  # QuickGELU (f32, EUP)
        x = x + (jnp.dot(f.astype(jnp.bfloat16), wpr[0],
                         preferred_element_type=jnp.float32) + bpr[0])

        o_ref[...] = x.reshape(bt, seq, D)

    return kernel


def _pick_batch_tile(B, S):
    """Target M = bt*S ~ 1024 so the per-layer weight stream is amortized over
    a large matmul M; only split into >=2 batch tiles (v7x dual TensorCores)
    when that still leaves M >= 512 (each TC streams its own weight copy)."""
    target_m = 1024
    bt = max(1, min(B, max(1, target_m // max(S, 1))))
    while B % bt:
        bt -= 1
    if bt == B and B > 1 and (B // 2) * S >= 512:
        bt = B // 2
        while B % bt:
            bt -= 1
    return bt


def transformer_forward(x_sbd, params, heads, attn_mask=None):
    """Matches Transformer.forward: x is (S, B, D) as in PyTorch MHA (batch_first=False)."""
    S, B, D = x_sbd.shape
    L = len(params)
    head_dim = D // heads

    # Pad S to a sublane-friendly multiple (production: pad CLIP's 77/197/257
    # up to a multiple of 128 for lane-dense scores/stores).
    S_pad = -(-S // 8) * 8
    pad = S_pad - S

    x = jnp.transpose(x_sbd, (1, 0, 2)).astype(jnp.float32)      # (B, S, D)
    if pad:
        x = jnp.pad(x, ((0, 0), (0, pad), (0, 0)))

    # ---- stack per-layer params along a leading L axis (host-side, once) ----
    def stack(name, dtype=jnp.float32):
        return jnp.stack([p[name] for p in params], axis=0).astype(dtype)

    # fold the attention scale into the Q projection columns (one host-side op)
    scale = 1.0 / math.sqrt(head_dim)
    col_scale = jnp.concatenate(
        [jnp.full((D,), scale, jnp.float32), jnp.ones((2 * D,), jnp.float32)])
    wqkv = (stack("wqkv") * col_scale).astype(jnp.bfloat16)       # bf16 weights
    bqkv = stack("bqkv") * col_scale                              # f32 biases

    stacked = [
        stack("ln1_g"), stack("ln1_b"),                    # (L, 1, D)     f32
        wqkv, bqkv,                                        # (L, D, 3D) bf16 / (L,1,3D) f32
        stack("wo", jnp.bfloat16), stack("bo"),            # (L, D, D) bf16 / (L,1,D) f32
        stack("ln2_g"), stack("ln2_b"),                    # (L, 1, D)     f32
        stack("wfc", jnp.bfloat16), stack("bfc"),          # (L, D, 4D) bf16
        stack("wpr", jnp.bfloat16), stack("bpr"),          # (L, 4D, D) bf16
    ]

    # additive mask (also hides padded key columns when S was padded)
    use_mask = (attn_mask is not None) or (pad > 0)
    if use_mask:
        m = jnp.zeros((S_pad, S_pad), jnp.float32)
        if attn_mask is not None:
            m = m.at[:S, :S].set(attn_mask.astype(jnp.float32))
        if pad:
            m = m.at[:, S:].set(-1e9)

    bt = _pick_batch_tile(B, S_pad)
    nb = B // bt

    kernel = _make_transformer_kernel(heads, head_dim, use_mask)

    in_specs = [pl.BlockSpec((bt, S_pad, D), lambda bi, l: (bi, 0, 0))]   # resident per bi
    operands = [x]
    if use_mask:
        in_specs.append(pl.BlockSpec((S_pad, S_pad), lambda bi, l: (0, 0)))
        operands.append(m)
    for arr in stacked:                                    # per-layer weight slabs
        in_specs.append(pl.BlockSpec((1,) + arr.shape[1:], lambda bi, l: (l, 0, 0)))
        operands.append(arr)

    # per-layer weight bytes (bf16 slabs + f32 biases/LN params)
    layer_weight_bytes = sum(
        int(np.prod(a.shape[1:])) * a.dtype.itemsize for a in stacked)

    # advisory cost estimate for the XLA scheduler
    flops_dense = 2 * B * S_pad * 12 * D * D * L
    flops_attn = 4 * B * heads * S_pad * S_pad * head_dim * L
    cost = pl.CostEstimate(
        flops=int(flops_dense + flops_attn),
        transcendentals=int(B * L * (heads * S_pad * S_pad + 4 * D * S_pad)),
        bytes_accessed=int(nb * L * layer_weight_bytes + 2 * B * S_pad * D * 4),
    )

    # explicit VMEM budget: above the 16/32 MiB scoped defaults, capped at
    # v7x's 64 MiB physical VMEM.  Rough model: double-buffered weight slabs
    # + resident activation block + intermediates.
    vmem_limit = int(min(64 * 2 ** 20,
                         max(32 * 2 ** 20,
                             3 * layer_weight_bytes + 16 * bt * S_pad * D * 4)))

    out = pl.pallas_call(
        kernel,
        out_shape=jax.ShapeDtypeStruct((B, S_pad, D), jnp.float32),
        grid=(nb, L),                                      # layer axis last (resident acts)
        in_specs=in_specs,
        out_specs=pl.BlockSpec((bt, S_pad, D), lambda bi, l: (bi, 0, 0)),
        compiler_params=pltpu.CompilerParams(
            dimension_semantics=("parallel", "arbitrary"),
            vmem_limit_bytes=vmem_limit),
        cost_estimate=cost,
    )(*operands)

    if pad:
        out = out[:, :S, :]
    return jnp.transpose(out, (1, 0, 2))                   # back to (S, B, D)


# ------------------------- deterministic parameters ------------------------ #

def init_params(key, width, layers):
    params = []
    for i in range(layers):
        ks = jax.random.split(jax.random.fold_in(key, i), 8)
        std = 0.02
        params.append(dict(
            ln1_g=jnp.ones((1, width), jnp.float32),
            ln1_b=jnp.zeros((1, width), jnp.float32),
            # weights stored pre-transposed: (in, out) so kernel does x @ W
            wqkv=(jax.random.normal(ks[0], (width, 3 * width)) * std).astype(jnp.float32),
            bqkv=(jax.random.normal(ks[1], (1, 3 * width)) * std).astype(jnp.float32),
            wo=(jax.random.normal(ks[2], (width, width)) * std).astype(jnp.float32),
            bo=(jax.random.normal(ks[3], (1, width)) * std).astype(jnp.float32),
            ln2_g=jnp.ones((1, width), jnp.float32),
            ln2_b=jnp.zeros((1, width), jnp.float32),
            wfc=(jax.random.normal(ks[4], (width, 4 * width)) * std).astype(jnp.float32),
            bfc=(jax.random.normal(ks[5], (1, 4 * width)) * std).astype(jnp.float32),
            wpr=(jax.random.normal(ks[6], (4 * width, width)) * std).astype(jnp.float32),
            bpr=(jax.random.normal(ks[7], (1, width)) * std).astype(jnp.float32),
        ))
    return params


# ----------------------------- pure-JAX reference --------------------------- #

def _reference_forward(x_sbd, params, heads, attn_mask=None):
    S, B, D = x_sbd.shape
    hd = D // heads
    mask = (attn_mask if attn_mask is not None else jnp.zeros((S, S), jnp.float32))
    x = jnp.transpose(x_sbd, (1, 0, 2)).astype(jnp.float32)        # (B, S, D)

    def ln(v, g, b):
        mu = jnp.mean(v, -1, keepdims=True)
        var = jnp.mean(jnp.square(v - mu), -1, keepdims=True)
        return (v - mu) * jax.lax.rsqrt(var + 1e-5) * g + b

    for p in params:
        h = ln(x, p["ln1_g"][0], p["ln1_b"][0])
        qkv = h @ p["wqkv"] + p["bqkv"][0]
        q, k, v = qkv[..., :D], qkv[..., D:2 * D], qkv[..., 2 * D:]
        q = q.reshape(B, S, heads, hd).transpose(0, 2, 1, 3) / math.sqrt(hd)
        k = k.reshape(B, S, heads, hd).transpose(0, 2, 1, 3)
        v = v.reshape(B, S, heads, hd).transpose(0, 2, 1, 3)
        s = jnp.einsum('bhqd,bhkd->bhqk', q, k) + mask
        pattn = jax.nn.softmax(s, axis=-1)
        a = jnp.einsum('bhqk,bhkd->bhqd', pattn, v).transpose(0, 2, 1, 3).reshape(B, S, D)
        x = x + (a @ p["wo"] + p["bo"][0])
        h2 = ln(x, p["ln2_g"][0], p["ln2_b"][0])
        f = h2 @ p["wfc"] + p["bfc"][0]
        f = f * jax.nn.sigmoid(1.702 * f)
        x = x + (f @ p["wpr"] + p["bpr"][0])
    return jnp.transpose(x, (1, 0, 2))


# ----------------------------------- main ----------------------------------- #

if __name__ == "__main__":
    key = jax.random.PRNGKey(0)
    width, heads, layers = 32, 4, 2
    params = init_params(key, width, layers)

    # bf16 weights / matmul inputs vs an f32 reference -> loosened tolerance;
    # residual stream / LayerNorm / softmax stay f32 in the kernel.
    ATOL = RTOL = 2e-2

    # --- no-mask path (matches the Transformer default attn_mask=None) ---
    S, B = 8, 2
    x = jax.random.normal(jax.random.fold_in(key, 1234), (S, B, width), jnp.float32)
    out = jax.block_until_ready(transformer_forward(x, params, heads, attn_mask=None))
    ref = _reference_forward(x, params, heads, attn_mask=None)
    assert out.shape == (S, B, width)
    np.testing.assert_allclose(np.asarray(out), np.asarray(ref), atol=ATOL, rtol=RTOL)

    # --- masked path (float additive mask, like CLIP's causal text mask) ---
    causal = jnp.where(jnp.arange(S)[:, None] >= jnp.arange(S)[None, :],
                       0.0, -1e9).astype(jnp.float32)
    out_m = jax.block_until_ready(transformer_forward(x, params, heads, attn_mask=causal))
    ref_m = _reference_forward(x, params, heads, attn_mask=causal)
    np.testing.assert_allclose(np.asarray(out_m), np.asarray(ref_m), atol=ATOL, rtol=RTOL)

    # --- ragged sequence (S=7) exercises the in-wrapper pad + key masking ---
    S2 = 7
    x2 = jax.random.normal(jax.random.fold_in(key, 4321), (S2, B, width), jnp.float32)
    out_p = jax.block_until_ready(transformer_forward(x2, params, heads, attn_mask=None))
    ref_p = _reference_forward(x2, params, heads, attn_mask=None)
    assert out_p.shape == (S2, B, width)
    np.testing.assert_allclose(np.asarray(out_p), np.asarray(ref_p), atol=ATOL, rtol=RTOL)

    print("KERNEL_OK")
</pallas_src>

<mosaic_0001>
module attributes {stable_mosaic.version = 11 : i64} {
  func.func @kernel(%arg0: i32, %arg1: i32, %arg2: memref<2x8x32xf32, #tpu.memory_space<vmem>>, %arg3: memref<1x1x32xf32, #tpu.memory_space<vmem>>, %arg4: memref<1x1x32xf32, #tpu.memory_space<vmem>>, %arg5: memref<1x32x96xbf16, #tpu.memory_space<vmem>>, %arg6: memref<1x1x96xf32, #tpu.memory_space<vmem>>, %arg7: memref<1x32x32xbf16, #tpu.memory_space<vmem>>, %arg8: memref<1x1x32xf32, #tpu.memory_space<vmem>>, %arg9: memref<1x1x32xf32, #tpu.memory_space<vmem>>, %arg10: memref<1x1x32xf32, #tpu.memory_space<vmem>>, %arg11: memref<1x32x128xbf16, #tpu.memory_space<vmem>>, %arg12: memref<1x1x128xf32, #tpu.memory_space<vmem>>, %arg13: memref<1x128x32xbf16, #tpu.memory_space<vmem>>, %arg14: memref<1x1x32xf32, #tpu.memory_space<vmem>>, %arg15: memref<2x8x32xf32, #tpu.memory_space<vmem>>) attributes {dimension_semantics = [#tpu.dimension_semantics<parallel>, #tpu.dimension_semantics<arbitrary>], iteration_bounds = array<i64: 1, 2>, scalar_prefetch = 0 : i64, scratch_operands = 0 : i64, tpu.core_type = #tpu.core_type<tc>, window_params = [{transform_indices = @transform_0, window_bounds = array<i64: 2, 8, 32>}, {transform_indices = @transform_1, window_bounds = array<i64: 1, 1, 32>}, {transform_indices = @transform_2, window_bounds = array<i64: 1, 1, 32>}, {transform_indices = @transform_3, window_bounds = array<i64: 1, 32, 96>}, {transform_indices = @transform_4, window_bounds = array<i64: 1, 1, 96>}, {transform_indices = @transform_5, window_bounds = array<i64: 1, 32, 32>}, {transform_indices = @transform_6, window_bounds = array<i64: 1, 1, 32>}, {transform_indices = @transform_7, window_bounds = array<i64: 1, 1, 32>}, {transform_indices = @transform_8, window_bounds = array<i64: 1, 1, 32>}, {transform_indices = @transform_9, window_bounds = array<i64: 1, 32, 128>}, {transform_indices = @transform_10, window_bounds = array<i64: 1, 1, 128>}, {transform_indices = @transform_11, window_bounds = array<i64: 1, 128, 32>}, {transform_indices = @transform_12, window_bounds = array<i64: 1, 1, 32>}, {transform_indices = @transform_13, window_bounds = array<i64: 2, 8, 32>}]} {
    %c0_i32 = arith.constant 0 : i32
    %0 = arith.cmpi eq, %arg1, %c0_i32 : i32
    %1 = arith.extui %0 : i1 to i32
    %c0_i32_0 = arith.constant 0 : i32
    %2 = arith.cmpi ne, %1, %c0_i32_0 : i32
    scf.if %2 {
      %c0_61 = arith.constant 0 : index
      %c0_62 = arith.constant 0 : index
      %c0_63 = arith.constant 0 : index
      %132 = vector.load %arg2[%c0_61, %c0_62, %c0_63] : memref<2x8x32xf32, #tpu.memory_space<vmem>>, vector<2x8x32xf32>
      %c0_64 = arith.constant 0 : index
      %c0_65 = arith.constant 0 : index
      %c0_66 = arith.constant 0 : index
      %133 = vector.load %arg15[%c0_64, %c0_65, %c0_66] : memref<2x8x32xf32, #tpu.memory_space<vmem>>, vector<2x8x32xf32>
      tpu.vector_store %arg15[%c0_64, %c0_65, %c0_66], %132 {strides = array<i32>} : memref<2x8x32xf32, #tpu.memory_space<vmem>>, vector<2x8x32xf32>,
    } else {
    }
    %c0 = arith.constant 0 : index
    %c0_1 = arith.constant 0 : index
    %c0_2 = arith.constant 0 : index
    %3 = vector.load %arg15[%c0, %c0_1, %c0_2] : memref<2x8x32xf32, #tpu.memory_space<vmem>>, vector<2x8x32xf32>
    %4 = vector.shape_cast %3 : vector<2x8x32xf32> to vector<16x32xf32>
    %c0_3 = arith.constant 0 : index
    %c0_4 = arith.constant 0 : index
    %c0_5 = arith.constant 0 : index
    %5 = vector.load %arg3[%c0_3, %c0_4, %c0_5] : memref<1x1x32xf32, #tpu.memory_space<vmem>>, vector<1x1x32xf32>
    %6 = vector.shape_cast %5 : vector<1x1x32xf32> to vector<1x32xf32>
    %c0_6 = arith.constant 0 : index
    %c0_7 = arith.constant 0 : index
    %c0_8 = arith.constant 0 : index
    %7 = vector.load %arg4[%c0_6, %c0_7, %c0_8] : memref<1x1x32xf32, #tpu.memory_space<vmem>>, vector<1x1x32xf32>
    %8 = vector.shape_cast %7 : vector<1x1x32xf32> to vector<1x32xf32>
    %cst = arith.constant dense<0.000000e+00> : vector<16xf32>
    %9 = vector.multi_reduction <add>, %4, %cst [1] : vector<16x32xf32> to vector<16xf32>
    %10 = vector.shape_cast %9 : vector<16xf32> to vector<16x1xf32>
    %cst_9 = arith.constant 3.200000e+01 : f32
    %11 = vector.broadcast %cst_9 : f32 to vector<16x1xf32>
    %12 = arith.divf %10, %11 : vector<16x1xf32>
    %13 = vector.broadcast %12 : vector<16x1xf32> to vector<16x32xf32>
    %14 = arith.subf %4, %13 : vector<16x32xf32>
    %15 = arith.mulf %14, %14 : vector<16x32xf32>
    %cst_10 = arith.constant dense<0.000000e+00> : vector<16xf32>
    %16 = vector.multi_reduction <add>, %15, %cst_10 [1] : vector<16x32xf32> to vector<16xf32>
    %17 = vector.shape_cast %16 : vector<16xf32> to vector<16x1xf32>
    %cst_11 = arith.constant 3.200000e+01 : f32
    %18 = vector.broadcast %cst_11 : f32 to vector<16x1xf32>
    %19 = arith.divf %17, %18 : vector<16x1xf32>
    %20 = vector.broadcast %12 : vector<16x1xf32> to vector<16x32xf32>
    %21 = arith.subf %4, %20 : vector<16x32xf32>
    %cst_12 = arith.constant 9.99999974E-6 : f32
    %22 = vector.broadcast %cst_12 : f32 to vector<16x1xf32>
    %23 = arith.addf %19, %22 : vector<16x1xf32>
    %24 = math.rsqrt %23 : vector<16x1xf32>
    %25 = vector.broadcast %24 : vector<16x1xf32> to vector<16x32xf32>
    %26 = arith.mulf %21, %25 : vector<16x32xf32>
    %27 = vector.broadcast %6 : vector<1x32xf32> to vector<16x32xf32>
    %28 = arith.mulf %26, %27 : vector<16x32xf32>
    %29 = vector.broadcast %8 : vector<1x32xf32> to vector<16x32xf32>
    %30 = arith.addf %28, %29 : vector<16x32xf32>
    %31 = arith.truncf %30 : vector<16x32xf32> to vector<16x32xbf16>
    %c0_13 = arith.constant 0 : index
    %c0_14 = arith.constant 0 : index
    %c0_15 = arith.constant 0 : index
    %32 = vector.load %arg5[%c0_13, %c0_14, %c0_15] : memref<1x32x96xbf16, #tpu.memory_space<vmem>>, vector<1x32x96xbf16>
    %33 = vector.shape_cast %32 : vector<1x32x96xbf16> to vector<32x96xbf16>
    %cst_16 = arith.constant dense<0.000000e+00> : vector<16x96xf32>
    %34 = tpu.matmul %31, %33, %cst_16 {dimension_numbers = #tpu.dot_dimension_numbers<[1], [0], [0], [1], [0, 0, 1, 1], [], []>} : vector<16x32xbf16>, vector<32x96xbf16>, vector<16x96xf32> -> vector<16x96xf32>
    %c0_17 = arith.constant 0 : index
    %c0_18 = arith.constant 0 : index
    %c0_19 = arith.constant 0 : index
    %35 = vector.load %arg6[%c0_17, %c0_18, %c0_19] : memref<1x1x96xf32, #tpu.memory_space<vmem>>, vector<1x1x96xf32>
    %36 = vector.shape_cast %35 : vector<1x1x96xf32> to vector<1x96xf32>
    %37 = vector.broadcast %36 : vector<1x96xf32> to vector<16x96xf32>
    %38 = arith.addf %34, %37 : vector<16x96xf32>
    %39 = vector.extract_strided_slice %38 {offsets = [0, 0], sizes = [16, 32], strides = [1, 1]} : vector<16x96xf32> to vector<16x32xf32>
    %40 = vector.shape_cast %39 : vector<16x32xf32> to vector<2x8x4x8xf32>
    %41 = tpu.transpose %40, [0, 2, 1, 3] : vector<2x8x4x8xf32> -> vector<2x4x8x8xf32>
    %42 = vector.shape_cast %41 : vector<2x4x8x8xf32> to vector<8x8x8xf32>
    %43 = arith.truncf %42 : vector<8x8x8xf32> to vector<8x8x8xbf16>
    %44 = vector.extract_strided_slice %38 {offsets = [0, 32], sizes = [16, 32], strides = [1, 1]} : vector<16x96xf32> to vector<16x32xf32>
    %45 = vector.shape_cast %44 : vector<16x32xf32> to vector<2x8x4x8xf32>
    %46 = tpu.transpose %45, [0, 2, 1, 3] : vector<2x8x4x8xf32> -> vector<2x4x8x8xf32>
    %47 = vector.shape_cast %46 : vector<2x4x8x8xf32> to vector<8x8x8xf32>
    %48 = arith.truncf %47 : vector<8x8x8xf32> to vector<8x8x8xbf16>
    %49 = vector.extract_strided_slice %38 {offsets = [0, 64], sizes = [16, 32], strides = [1, 1]} : vector<16x96xf32> to vector<16x32xf32>
    %50 = vector.shape_cast %49 : vector<16x32xf32> to vector<2x8x4x8xf32>
    %51 = tpu.transpose %50, [0, 2, 1, 3] : vector<2x8x4x8xf32> -> vector<2x4x8x8xf32>
    %52 = vector.shape_cast %51 : vector<2x4x8x8xf32> to vector<8x8x8xf32>
    %53 = arith.truncf %52 : vector<8x8x8xf32> to vector<8x8x8xbf16>
    "tpu.trace_start"() <{level = 10 : i32, message = "bqd,bkd->bqk"}> : () -> ()
    %cst_20 = arith.constant dense<0.000000e+00> : vector<8x8x8xf32>
    %54 = tpu.matmul %43, %48, %cst_20 {dimension_numbers = #tpu.dot_dimension_numbers<[2], [2], [1], [1], [0, 0, 0, 1, 1, 1], [0], [0]>} : vector<8x8x8xbf16>, vector<8x8x8xbf16>, vector<8x8x8xf32> -> vector<8x8x8xf32>
    "tpu.trace_stop"() : () -> ()
    %cst_21 = arith.constant dense<0xFF800000> : vector<8x8xf32>
    %55 = vector.multi_reduction <maximumf>, %54, %cst_21 [2] : vector<8x8x8xf32> to vector<8x8xf32>
    %56 = vector.shape_cast %55 : vector<8x8xf32> to vector<8x8x1xf32>
    %57 = vector.broadcast %56 : vector<8x8x1xf32> to vector<8x8x8xf32>
    %58 = arith.subf %54, %57 : vector<8x8x8xf32>
    %59 = math.exp %58 : vector<8x8x8xf32>
    %cst_22 = arith.constant dense<0.000000e+00> : vector<8x8xf32>
    %60 = vector.multi_reduction <add>, %59, %cst_22 [2] : vector<8x8x8xf32> to vector<8x8xf32>
    %61 = vector.shape_cast %60 : vector<8x8xf32> to vector<8x8x1xf32>
    %62 = arith.truncf %59 : vector<8x8x8xf32> to vector<8x8x8xbf16>
    "tpu.trace_start"() <{level = 10 : i32, message = "bqk,bkd->bqd"}> : () -> ()
    %cst_23 = arith.constant dense<0.000000e+00> : vector<8x8x8xf32>
    %63 = tpu.matmul %62, %53, %cst_23 {dimension_numbers = #tpu.dot_dimension_numbers<[2], [1], [1], [2], [0, 0, 0, 1, 1, 2], [0], [0]>} : vector<8x8x8xbf16>, vector<8x8x8xbf16>, vector<8x8x8xf32> -> vector<8x8x8xf32>
    "tpu.trace_stop"() : () -> ()
    %64 = tpu.reciprocal %61 {approx = true} : vector<8x8x1xf32> -> vector<8x8x1xf32>
    %65 = vector.broadcast %64 : vector<8x8x1xf32> to vector<8x8x8xf32>
    %66 = arith.mulf %63, %65 : vector<8x8x8xf32>
    %67 = vector.shape_cast %66 : vector<8x8x8xf32> to vector<2x4x8x8xf32>
    %68 = tpu.transpose %67, [0, 2, 1, 3] : vector<2x4x8x8xf32> -> vector<2x8x4x8xf32>
    %69 = vector.shape_cast %68 : vector<2x8x4x8xf32> to vector<16x32xf32>
    %70 = arith.truncf %69 : vector<16x32xf32> to vector<16x32xbf16>
    %c0_24 = arith.constant 0 : index
    %c0_25 = arith.constant 0 : index
    %c0_26 = arith.constant 0 : index
    %71 = vector.load %arg7[%c0_24, %c0_25, %c0_26] : memref<1x32x32xbf16, #tpu.memory_space<vmem>>, vector<1x32x32xbf16>
    %72 = vector.shape_cast %71 : vector<1x32x32xbf16> to vector<32x32xbf16>
    %cst_27 = arith.constant dense<0.000000e+00> : vector<16x32xf32>
    %73 = tpu.matmul %70, %72, %cst_27 {dimension_numbers = #tpu.dot_dimension_numbers<[1], [0], [0], [1], [0, 0, 1, 1], [], []>} : vector<16x32xbf16>, vector<32x32xbf16>, vector<16x32xf32> -> vector<16x32xf32>
    %c0_28 = arith.constant 0 : index
    %c0_29 = arith.constant 0 : index
    %c0_30 = arith.constant 0 : index
    %74 = vector.load %arg8[%c0_28, %c0_29, %c0_30] : memref<1x1x32xf32, #tpu.memory_space<vmem>>, vector<1x1x32xf32>
    %75 = vector.shape_cast %74 : vector<1x1x32xf32> to vector<1x32xf32>
    %76 = vector.broadcast %75 : vector<1x32xf32> to vector<16x32xf32>
    %77 = arith.addf %73, %76 : vector<16x32xf32>
    %78 = arith.addf %4, %77 : vector<16x32xf32>
    %c0_31 = arith.constant 0 : index
    %c0_32 = arith.constant 0 : index
    %c0_33 = arith.constant 0 : index
    %79 = vector.load %arg9[%c0_31, %c0_32, %c0_33] : memref<1x1x32xf32, #tpu.memory_space<vmem>>, vector<1x1x32xf32>
    %80 = vector.shape_cast %79 : vector<1x1x32xf32> to vector<1x32xf32>
    %c0_34 = arith.constant 0 : index
    %c0_35 = arith.constant 0 : index
    %c0_36 = arith.constant 0 : index
    %81 = vector.load %arg10[%c0_34, %c0_35, %c0_36] : memref<1x1x32xf32, #tpu.memory_space<vmem>>, vector<1x1x32xf32>
    %82 = vector.shape_cast %81 : vector<1x1x32xf32> to vector<1x32xf32>
    %cst_37 = arith.constant dense<0.000000e+00> : vector<16xf32>
    %83 = vector.multi_reduction <add>, %78, %cst_37 [1] : vector<16x32xf32> to vector<16xf32>
    %84 = vector.shape_cast %83 : vector<16xf32> to vector<16x1xf32>
    %cst_38 = arith.constant 3.200000e+01 : f32
    %85 = vector.broadcast %cst_38 : f32 to vector<16x1xf32>
    %86 = arith.divf %84, %85 : vector<16x1xf32>
    %87 = vector.broadcast %86 : vector<16x1xf32> to vector<16x32xf32>
    %88 = arith.subf %78, %87 : vector<16x32xf32>
    %89 = arith.mulf %88, %88 : vector<16x32xf32>
    %cst_39 = arith.constant dense<0.000000e+00> : vector<16xf32>
    %90 = vector.multi_reduction <add>, %89, %cst_39 [1] : vector<16x32xf32> to vector<16xf32>
    %91 = vector.shape_cast %90 : vector<16xf32> to vector<16x1xf32>
    %cst_40 = arith.constant 3.200000e+01 : f32
    %92 = vector.broadcast %cst_40 : f32 to vector<16x1xf32>
    %93 = arith.divf %91, %92 : vector<16x1xf32>
    %94 = vector.broadcast %86 : vector<16x1xf32> to vector<16x32xf32>
    %95 = arith.subf %78, %94 : vector<16x32xf32>
    %cst_41 = arith.constant 9.99999974E-6 : f32
    %96 = vector.broadcast %cst_41 : f32 to vector<16x1xf32>
    %97 = arith.addf %93, %96 : vector<16x1xf32>
    %98 = math.rsqrt %97 : vector<16x1xf32>
    %99 = vector.broadcast %98 : vector<16x1xf32> to vector<16x32xf32>
    %100 = arith.mulf %95, %99 : vector<16x32xf32>
    %101 = vector.broadcast %80 : vector<1x32xf32> to vector<16x32xf32>
    %102 = arith.mulf %100, %101 : vector<16x32xf32>
    %103 = vector.broadcast %82 : vector<1x32xf32> to vector<16x32xf32>
    %104 = arith.addf %102, %103 : vector<16x32xf32>
    %105 = arith.truncf %104 : vector<16x32xf32> to vector<16x32xbf16>
    %c0_42 = arith.constant 0 : index
    %c0_43 = arith.constant 0 : index
    %c0_44 = arith.constant 0 : index
    %106 = vector.load %arg11[%c0_42, %c0_43, %c0_44] : memref<1x32x128xbf16, #tpu.memory_space<vmem>>, vector<1x32x128xbf16>
    %107 = vector.shape_cast %106 : vector<1x32x128xbf16> to vector<32x128xbf16>
    %cst_45 = arith.constant dense<0.000000e+00> : vector<16x128xf32>
    %108 = tpu.matmul %105, %107, %cst_45 {dimension_numbers = #tpu.dot_dimension_numbers<[1], [0], [0], [1], [0, 0, 1, 1], [], []>} : vector<16x32xbf16>, vector<32x128xbf16>, vector<16x128xf32> -> vector<16x128xf32>
    %c0_46 = arith.constant 0 : index
    %c0_47 = arith.constant 0 : index
    %c0_48 = arith.constant 0 : index
    %109 = vector.load %arg12[%c0_46, %c0_47, %c0_48] : memref<1x1x128xf32, #tpu.memory_space<vmem>>, vector<1x1x128xf32>
    %110 = vector.shape_cast %109 : vector<1x1x128xf32> to vector<1x128xf32>
    %111 = vector.broadcast %110 : vector<1x128xf32> to vector<16x128xf32>
    %112 = arith.addf %108, %111 : vector<16x128xf32>
    %cst_49 = arith.constant 1.702000e+00 : f32
    %113 = vector.broadcast %cst_49 : f32 to vector<16x128xf32>
    %114 = arith.mulf %113, %112 : vector<16x128xf32>
    %115 = arith.negf %114 : vector<16x128xf32>
    %116 = math.exp %115 : vector<16x128xf32>
    %cst_50 = arith.constant 1.000000e+00 : f32
    %117 = vector.broadcast %cst_50 : f32 to vector<16x128xf32>
    %118 = arith.addf %117, %116 : vector<16x128xf32>
    %119 = arith.divf %117, %118 : vector<16x128xf32>
    %120 = arith.mulf %112, %119 : vector<16x128xf32>
    %121 = arith.truncf %120 : vector<16x128xf32> to vector<16x128xbf16>
    %c0_51 = arith.constant 0 : index
    %c0_52 = arith.constant 0 : index
    %c0_53 = arith.constant 0 : index
    %122 = vector.load %arg13[%c0_51, %c0_52, %c0_53] : memref<1x128x32xbf16, #tpu.memory_space<vmem>>, vector<1x128x32xbf16>
    %123 = vector.shape_cast %122 : vector<1x128x32xbf16> to vector<128x32xbf16>
    %cst_54 = arith.constant dense<0.000000e+00> : vector<16x32xf32>
    %124 = tpu.matmul %121, %123, %cst_54 {dimension_numbers = #tpu.dot_dimension_numbers<[1], [0], [0], [1], [0, 0, 1, 1], [], []>} : vector<16x128xbf16>, vector<128x32xbf16>, vector<16x32xf32> -> vector<16x32xf32>
    %c0_55 = arith.constant 0 : index
    %c0_56 = arith.constant 0 : index
    %c0_57 = arith.constant 0 : index
    %125 = vector.load %arg14[%c0_55, %c0_56, %c0_57] : memref<1x1x32xf32, #tpu.memory_space<vmem>>, vector<1x1x32xf32>
    %126 = vector.shape_cast %125 : vector<1x1x32xf32> to vector<1x32xf32>
    %127 = vector.broadcast %126 : vector<1x32xf32> to vector<16x32xf32>
    %128 = arith.addf %124, %127 : vector<16x32xf32>
    %129 = arith.addf %78, %128 : vector<16x32xf32>
    %130 = vector.shape_cast %129 : vector<16x32xf32> to vector<2x8x32xf32>
    %c0_58 = arith.constant 0 : index
    %c0_59 = arith.constant 0 : index
    %c0_60 = arith.constant 0 : index
    %131 = vector.load %arg15[%c0_58, %c0_59, %c0_60] : memref<2x8x32xf32, #tpu.memory_space<vmem>>, vector<2x8x32xf32>
    tpu.vector_store %arg15[%c0_58, %c0_59, %c0_60], %130 {strides = array<i32>} : memref<2x8x32xf32, #tpu.memory_space<vmem>>, vector<2x8x32xf32>,
    return
  }
  func.func @transform_0(%arg0: i32, %arg1: i32) -> (i32, i32, i32) {
    %c0_i32 = arith.constant 0 : i32
    %c0_i32_0 = arith.constant 0 : i32
    %c0_i32_1 = arith.constant 0 : i32
    return %arg0, %c0_i32, %c0_i32_0 : i32, i32, i32
  }
  func.func @transform_1(%arg0: i32, %arg1: i32) -> (i32, i32, i32) {
    %c0_i32 = arith.constant 0 : i32
    %c0_i32_0 = arith.constant 0 : i32
    %c0_i32_1 = arith.constant 0 : i32
    return %arg1, %c0_i32, %c0_i32_0 : i32, i32, i32
  }
  func.func @transform_2(%arg0: i32, %arg1: i32) -> (i32, i32, i32) {
    %c0_i32 = arith.constant 0 : i32
    %c0_i32_0 = arith.constant 0 : i32
    %c0_i32_1 = arith.constant 0 : i32
    return %arg1, %c0_i32, %c0_i32_0 : i32, i32, i32
  }
  func.func @transform_3(%arg0: i32, %arg1: i32) -> (i32, i32, i32) {
    %c0_i32 = arith.constant 0 : i32
    %c0_i32_0 = arith.constant 0 : i32
    %c0_i32_1 = arith.constant 0 : i32
    return %arg1, %c0_i32, %c0_i32_0 : i32, i32, i32
  }
  func.func @transform_4(%arg0: i32, %arg1: i32) -> (i32, i32, i32) {
    %c0_i32 = arith.constant 0 : i32
    %c0_i32_0 = arith.constant 0 : i32
    %c0_i32_1 = arith.constant 0 : i32
    return %arg1, %c0_i32, %c0_i32_0 : i32, i32, i32
  }
  func.func @transform_5(%arg0: i32, %arg1: i32) -> (i32, i32, i32) {
    %c0_i32 = arith.constant 0 : i32
    %c0_i32_0 = arith.constant 0 : i32
    %c0_i32_1 = arith.constant 0 : i32
    return %arg1, %c0_i32, %c0_i32_0 : i32, i32, i32
  }
  func.func @transform_6(%arg0: i32, %arg1: i32) -> (i32, i32, i32) {
    %c0_i32 = arith.constant 0 : i32
    %c0_i32_0 = arith.constant 0 : i32
    %c0_i32_1 = arith.constant 0 : i32
    return %arg1, %c0_i32, %c0_i32_0 : i32, i32, i32
  }
  func.func @transform_7(%arg0: i32, %arg1: i32) -> (i32, i32, i32) {
    %c0_i32 = arith.constant 0 : i32
    %c0_i32_0 = arith.constant 0 : i32
    %c0_i32_1 = arith.constant 0 : i32
    return %arg1, %c0_i32, %c0_i32_0 : i32, i32, i32
  }
  func.func @transform_8(%arg0: i32, %arg1: i32) -> (i32, i32, i32) {
    %c0_i32 = arith.constant 0 : i32
    %c0_i32_0 = arith.constant 0 : i32
    %c0_i32_1 = arith.constant 0 : i32
    return %arg1, %c0_i32, %c0_i32_0 : i32, i32, i32
  }
  func.func @transform_9(%arg0: i32, %arg1: i32) -> (i32, i32, i32) {
    %c0_i32 = arith.constant 0 : i32
    %c0_i32_0 = arith.constant 0 : i32
    %c0_i32_1 = arith.constant 0 : i32
    return %arg1, %c0_i32, %c0_i32_0 : i32, i32, i32
  }
  func.func @transform_10(%arg0: i32, %arg1: i32) -> (i32, i32, i32) {
    %c0_i32 = arith.constant 0 : i32
    %c0_i32_0 = arith.constant 0 : i32
    %c0_i32_1 = arith.constant 0 : i32
    return %arg1, %c0_i32, %c0_i32_0 : i32, i32, i32
  }
  func.func @transform_11(%arg0: i32, %arg1: i32) -> (i32, i32, i32) {
    %c0_i32 = arith.constant 0 : i32
    %c0_i32_0 = arith.constant 0 : i32
    %c0_i32_1 = arith.constant 0 : i32
    return %arg1, %c0_i32, %c0_i32_0 : i32, i32, i32
  }
  func.func @transform_12(%arg0: i32, %arg1: i32) -> (i32, i32, i32) {
    %c0_i32 = arith.constant 0 : i32
    %c0_i32_0 = arith.constant 0 : i32
    %c0_i32_1 = arith.constant 0 : i32
    return %arg1, %c0_i32, %c0_i32_0 : i32, i32, i32
  }
  func.func @transform_13(%arg0: i32, %arg1: i32) -> (i32, i32, i32) {
    %c0_i32 = arith.constant 0 : i32
    %c0_i32_0 = arith.constant 0 : i32
    %c0_i32_1 = arith.constant 0 : i32
    return %arg0, %c0_i32, %c0_i32_0 : i32, i32, i32
  }
}

</mosaic_0001>

<llo_original>
// kernel: tpu_custom_call.1
$region0: #{tpu_custom_call.1}
  #allocation0 [shape = 'u32[]', space=smem, size = 0x4, offset = 0x4, fixed_abs, tag = 'smem constant byte address 0x4 - core index']
  #allocation1 [shape = 'u32[144,128]{1,0:T(1,128)}', space=vmem, size = 0x12000, scoped, tag = 'internal scratch']
  %s0 = inlined_call_operand.vmem [shape: f32[2,8,32], index: 0, kind: input, shape index: {}]
  %s1 = inlined_call_operand.vmem [shape: f32[2,1,32], index: 1, kind: input, shape index: {}]
  %s2 = inlined_call_operand.vmem [shape: f32[2,1,32], index: 2, kind: input, shape index: {}]
  %s3 = inlined_call_operand.vmem [shape: bf16[2,32,96], index: 3, kind: input, shape index: {}]
  %s4 = inlined_call_operand.vmem [shape: f32[2,1,96], index: 4, kind: input, shape index: {}]
  %s5 = inlined_call_operand.vmem [shape: bf16[2,32,32], index: 5, kind: input, shape index: {}]
  %s6 = inlined_call_operand.vmem [shape: f32[2,1,32], index: 6, kind: input, shape index: {}]
  %s7 = inlined_call_operand.vmem [shape: f32[2,1,32], index: 7, kind: input, shape index: {}]
  %s8 = inlined_call_operand.vmem [shape: f32[2,1,32], index: 8, kind: input, shape index: {}]
  %s9 = inlined_call_operand.vmem [shape: bf16[2,32,128], index: 9, kind: input, shape index: {}]
  %s10 = inlined_call_operand.vmem [shape: f32[2,1,128], index: 10, kind: input, shape index: {}]
  %s11 = inlined_call_operand.vmem [shape: bf16[2,128,32], index: 11, kind: input, shape index: {}]
  %s12 = inlined_call_operand.vmem [shape: f32[2,1,32], index: 12, kind: input, shape index: {}]
  %s13 = inlined_call_operand.hbm [shape: f32[2,8,32], index: 13, kind: output, shape index: {}]
  %s14 = sld [smem:[#allocation0]]
  $region89: #{tpu_custom_call.1} parent=0
    _
  %s16 = ssub.s32 1, %s14
  %s17 = scalar_select 0, %s16, %s14
  $region1: #{tpu_custom_call.1} parent=0
    #allocation2 [shape = 'u8[8192]{0}', space=vmem, size = 0x2000, scoped, tag = 'output window, operand 0, single buffered']
    #allocation3 [shape = 's32[2]{0}', space=sflag, size = 0x8, scoped, tag = 'scoped memory for tpu_custom_call.1']
    %18 = vsyncpa [#allocation3], 0
    loop: start=0, step=1, limit=4
    $region2: #{tpu_custom_call.1} parent=1 // loop_pre_header
      _
    $region3: #{tpu_custom_call.1} parent=1 // loop_header
      %s20 = sphi 0, %s24
      %p21 = scmp.ge.s32.totalorder %s20, 4
      %s27 = sphi 0, %s39
      %s28 = sphi 0, %s35
      %s29 = sphi 0, %s27
      %s30 = sphi 0, %s28
      %s31 = sphi 0, %s29
      %s32 = sphi 0, %s30
      %s42 = sphi 0, %s44
      %s45 = sphi 0, %s42
      %s46 = sphi 0, %s45
      %s62 = sphi 0, %s46
      %s68 = sphi 0, %s70
      %s71 = sphi 0, %s68
      %s72 = sphi 0, %s71
      %s88 = sphi 0, %s72
      %s94 = sphi 0, %s96
      %s97 = sphi 0, %s94
      %s98 = sphi 0, %s97
      %s114 = sphi 0, %s98
      %s120 = sphi 0, %s122
      %s123 = sphi 0, %s120
      %s124 = sphi 0, %s123
      %s140 = sphi 0, %s124
      %s146 = sphi 0, %s148
      %s149 = sphi 0, %s146
      %s150 = sphi 0, %s149
      %s166 = sphi 0, %s150
      %s172 = sphi 0, %s174
      %s175 = sphi 0, %s172
      %s176 = sphi 0, %s175
      %s192 = sphi 0, %s176
      %s198 = sphi 0, %s200
      %s201 = sphi 0, %s198
      %s202 = sphi 0, %s201
      %s218 = sphi 0, %s202
      %s224 = sphi 0, %s226
      %s227 = sphi 0, %s224
      %s228 = sphi 0, %s227
      %s244 = sphi 0, %s228
      %s250 = sphi 0, %s252
      %s253 = sphi 0, %s250
      %s254 = sphi 0, %s253
      %s270 = sphi 0, %s254
      %s276 = sphi 0, %s278
      %s279 = sphi 0, %s276
      %s280 = sphi 0, %s279
      %s296 = sphi 0, %s280
      %s302 = sphi 0, %s304
      %s305 = sphi 0, %s302
      %s306 = sphi 0, %s305
      %s322 = sphi 0, %s306
      %s328 = sphi 0, %s330
      %s331 = sphi 0, %s328
      %s332 = sphi 0, %s331
      %s348 = sphi 0, %s332
      %s354 = sphi 0, %s356
      %s357 = sphi 0, %s354
      %s358 = sphi 0, %s357
      %s374 = sphi 0, %s358
      %s380 = sphi 0, %s382
      %s383 = sphi 0, %s380
      %s384 = sphi 0, %s383
      %s400 = sphi 0, %s384
    $region4: #{tpu_custom_call.1} parent=1 // loop_header_branch
      %23 = sbr.rel (%p21) target = $region8
    $region5: #{tpu_custom_call.1} parent=1 // loop_body
      %s25 = ssub.s32 %s20, 1
      %s26 = ssub.s32 %s20, 2
      %s33 = sadd.s32 1, %s28
      %p34 = scmp.ge.s32.totalorder %s33, 2
      %s35 = scalar_select %p34, 0, %s33
      %s36 = sadd.s32 1, %s27
      %s37 = scalar_select %p34, %s36, %s27
      %p38 = scmp.ge.s32.totalorder %s37, 1
      %s39 = scalar_select %p38, 0, %s37
      %s40 = ssub.s32 %s27, %s39
      %p41 = scmp.eq.s32.totalorder %s40, 0
      %s43 = sadd.s32 %s42, 1
      %s44 = scalar_select %p41, %s42, %s43
      %p47 = pneg %p41
      %p48 = scmp.eq.s32.totalorder %s20, 1
      %p49 = por %p47, %p48
      %p50 = scmp.ne.s32.totalorder %s42, %s45
      %p51 = scmp.eq.s32.totalorder %s20, 0
      %p52 = por %p50, %p51
      %p53 = scmp.ne.s32.totalorder %s42, %s45
      %p54 = scmp.eq.s32.totalorder %s25, 1
      %p55 = por %p53, %p54
      %p56 = scmp.ne.s32.totalorder %s45, %s46
      %p57 = scmp.eq.s32.totalorder %s25, 0
      %p58 = por %p56, %p57
      %p59 = scmp.ne.s32.totalorder %s45, %s46
      %p60 = scmp.eq.s32.totalorder %s26, 1
      %p61 = por %p59, %p60
      %p63 = scmp.ne.s32.totalorder %s46, %s62
      %p64 = scmp.eq.s32.totalorder %s26, 0
      %p65 = por %p63, %p64
      %s66 = ssub.s32 %s28, %s35
      %p67 = scmp.eq.s32.totalorder %s66, 0
      %s69 = sadd.s32 %s68, 1
      %s70 = scalar_select %p67, %s68, %s69
      %p73 = pneg %p67
      %p74 = scmp.eq.s32.totalorder %s20, 1
      %p75 = por %p73, %p74
      %p76 = scmp.ne.s32.totalorder %s68, %s71
      %p77 = scmp.eq.s32.totalorder %s20, 0
      %p78 = por %p76, %p77
      %p79 = scmp.ne.s32.totalorder %s68, %s71
      %p80 = scmp.eq.s32.totalorder %s25, 1
      %p81 = por %p79, %p80
      %p82 = scmp.ne.s32.totalorder %s71, %s72
      %p83 = scmp.eq.s32.totalorder %s25, 0
      %p84 = por %p82, %p83
      %p85 = scmp.ne.s32.totalorder %s71, %s72
      %p86 = scmp.eq.s32.totalorder %s26, 1
      %p87 = por %p85, %p86
      %p89 = scmp.ne.s32.totalorder %s72, %s88
      %p90 = scmp.eq.s32.totalorder %s26, 0
      %p91 = por %p89, %p90
      %s92 = ssub.s32 %s28, %s35
      %p93 = scmp.eq.s32.totalorder %s92, 0
      %s95 = sadd.s32 %s94, 1
      %s96 = scalar_select %p93, %s94, %s95
      %p99 = pneg %p93
      %p100 = scmp.eq.s32.totalorder %s20, 1
      %p101 = por %p99, %p100
      %p102 = scmp.ne.s32.totalorder %s94, %s97
      %p103 = scmp.eq.s32.totalorder %s20, 0
      %p104 = por %p102, %p103
      %p105 = scmp.ne.s32.totalorder %s94, %s97
      %p106 = scmp.eq.s32.totalorder %s25, 1
      %p107 = por %p105, %p106
      %p108 = scmp.ne.s32.totalorder %s97, %s98
      %p109 = scmp.eq.s32.totalorder %s25, 0
      %p110 = por %p108, %p109
      %p111 = scmp.ne.s32.totalorder %s97, %s98
      %p112 = scmp.eq.s32.totalorder %s26, 1
      %p113 = por %p111, %p112
      %p115 = scmp.ne.s32.totalorder %s98, %s114
      %p116 = scmp.eq.s32.totalorder %s26, 0
      %p117 = por %p115, %p116
      %s118 = ssub.s32 %s28, %s35
      %p119 = scmp.eq.s32.totalorder %s118, 0
      %s121 = sadd.s32 %s120, 1
      %s122 = scalar_select %p119, %s120, %s121
      %p125 = pneg %p119
      %p126 = scmp.eq.s32.totalorder %s20, 1
      %p127 = por %p125, %p126
      %p128 = scmp.ne.s32.totalorder %s120, %s123
      %p129 = scmp.eq.s32.totalorder %s20, 0
      %p130 = por %p128, %p129
      %p131 = scmp.ne.s32.totalorder %s120, %s123
      %p132 = scmp.eq.s32.totalorder %s25, 1
      %p133 = por %p131, %p132
      %p134 = scmp.ne.s32.totalorder %s123, %s124
      %p135 = scmp.eq.s32.totalorder %s25, 0
      %p136 = por %p134, %p135
      %p137 = scmp.ne.s32.totalorder %s123, %s124
      %p138 = scmp.eq.s32.totalorder %s26, 1
      %p139 = por %p137, %p138
      %p141 = scmp.ne.s32.totalorder %s124, %s140
      %p142 = scmp.eq.s32.totalorder %s26, 0
      %p143 = por %p141, %p142
      %s144 = ssub.s32 %s28, %s35
      %p145 = scmp.eq.s32.totalorder %s144, 0
      %s147 = sadd.s32 %s146, 1
      %s148 = scalar_select %p145, %s146, %s147
      %p151 = pneg %p145
      %p152 = scmp.eq.s32.totalorder %s20, 1
      %p153 = por %p151, %p152
      %p154 = scmp.ne.s32.totalorder %s146, %s149
      %p155 = scmp.eq.s32.totalorder %s20, 0
      %p156 = por %p154, %p155
      %p157 = scmp.ne.s32.totalorder %s146, %s149
      %p158 = scmp.eq.s32.totalorder %s25, 1
      %p159 = por %p157, %p158
      %p160 = scmp.ne.s32.totalorder %s149, %s150
      %p161 = scmp.eq.s32.totalorder %s25, 0
      %p162 = por %p160, %p161
      %p163 = scmp.ne.s32.totalorder %s149, %s150
      %p164 = scmp.eq.s32.totalorder %s26, 1
      %p165 = por %p163, %p164
      %p167 = scmp.ne.s32.totalorder %s150, %s166
      %p168 = scmp.eq.s32.totalorder %s26, 0
      %p169 = por %p167, %p168
      %s170 = ssub.s32 %s28, %s35
      %p171 = scmp.eq.s32.totalorder %s170, 0
      %s173 = sadd.s32 %s172, 1
      %s174 = scalar_select %p171, %s172, %s173
      %p177 = pneg %p171
      %p178 = scmp.eq.s32.totalorder %s20, 1
      %p179 = por %p177, %p178
      %p180 = scmp.ne.s32.totalorder %s172, %s175
      %p181 = scmp.eq.s32.totalorder %s20, 0
      %p182 = por %p180, %p181
      %p183 = scmp.ne.s32.totalorder %s172, %s175
      %p184 = scmp.eq.s32.totalorder %s25, 1
      %p185 = por %p183, %p184
      %p186 = scmp.ne.s32.totalorder %s175, %s176
      %p187 = scmp.eq.s32.totalorder %s25, 0
      %p188 = por %p186, %p187
      %p189 = scmp.ne.s32.totalorder %s175, %s176
      %p190 = scmp.eq.s32.totalorder %s26, 1
      %p191 = por %p189, %p190
      %p193 = scmp.ne.s32.totalorder %s176, %s192
      %p194 = scmp.eq.s32.totalorder %s26, 0
      %p195 = por %p193, %p194
      %s196 = ssub.s32 %s28, %s35
      %p197 = scmp.eq.s32.totalorder %s196, 0
      %s199 = sadd.s32 %s198, 1
      %s200 = scalar_select %p197, %s198, %s199
      %p203 = pneg %p197
      %p204 = scmp.eq.s32.totalorder %s20, 1
      %p205 = por %p203, %p204
      %p206 = scmp.ne.s32.totalorder %s198, %s201
      %p207 = scmp.eq.s32.totalorder %s20, 0
      %p208 = por %p206, %p207
      %p209 = scmp.ne.s32.totalorder %s198, %s201
      %p210 = scmp.eq.s32.totalorder %s25, 1
      %p211 = por %p209, %p210
      %p212 = scmp.ne.s32.totalorder %s201, %s202
      %p213 = scmp.eq.s32.totalorder %s25, 0
      %p214 = por %p212, %p213
      %p215 = scmp.ne.s32.totalorder %s201, %s202
      %p216 = scmp.eq.s32.totalorder %s26, 1
      %p217 = por %p215, %p216
      %p219 = scmp.ne.s32.totalorder %s202, %s218
      %p220 = scmp.eq.s32.totalorder %s26, 0
      %p221 = por %p219, %p220
      %s222 = ssub.s32 %s28, %s35
      %p223 = scmp.eq.s32.totalorder %s222, 0
      %s225 = sadd.s32 %s224, 1
      %s226 = scalar_select %p223, %s224, %s225
      %p229 = pneg %p223
      %p230 = scmp.eq.s32.totalorder %s20, 1
      %p231 = por %p229, %p230
      %p232 = scmp.ne.s32.totalorder %s224, %s227
      %p233 = scmp.eq.s32.totalorder %s20, 0
      %p234 = por %p232, %p233
      %p235 = scmp.ne.s32.totalorder %s224, %s227
      %p236 = scmp.eq.s32.totalorder %s25, 1
      %p237 = por %p235, %p236
      %p238 = scmp.ne.s32.totalorder %s227, %s228
      %p239 = scmp.eq.s32.totalorder %s25, 0
      %p240 = por %p238, %p239
      %p241 = scmp.ne.s32.totalorder %s227, %s228
      %p242 = scmp.eq.s32.totalorder %s26, 1
      %p243 = por %p241, %p242
      %p245 = scmp.ne.s32.totalorder %s228, %s244
      %p246 = scmp.eq.s32.totalorder %s26, 0
      %p247 = por %p245, %p246
      %s248 = ssub.s32 %s28, %s35
      %p249 = scmp.eq.s32.totalorder %s248, 0
      %s251 = sadd.s32 %s250, 1
      %s252 = scalar_select %p249, %s250, %s251
      %p255 = pneg %p249
      %p256 = scmp.eq.s32.totalorder %s20, 1
      %p257 = por %p255, %p256
      %p258 = scmp.ne.s32.totalorder %s250, %s253
      %p259 = scmp.eq.s32.totalorder %s20, 0
      %p260 = por %p258, %p259
      %p261 = scmp.ne.s32.totalorder %s250, %s253
      %p262 = scmp.eq.s32.totalorder %s25, 1
      %p263 = por %p261, %p262
      %p264 = scmp.ne.s32.totalorder %s253, %s254
      %p265 = scmp.eq.s32.totalorder %s25, 0
      %p266 = por %p264, %p265
      %p267 = scmp.ne.s32.totalorder %s253, %s254
      %p268 = scmp.eq.s32.totalorder %s26, 1
      %p269 = por %p267, %p268
      %p271 = scmp.ne.s32.totalorder %s254, %s270
      %p272 = scmp.eq.s32.totalorder %s26, 0
      %p273 = por %p271, %p272
      %s274 = ssub.s32 %s28, %s35
      %p275 = scmp.eq.s32.totalorder %s274, 0
      %s277 = sadd.s32 %s276, 1
      %s278 = scalar_select %p275, %s276, %s277
      %p281 = pneg %p275
      %p282 = scmp.eq.s32.totalorder %s20, 1
      %p283 = por %p281, %p282
      %p284 = scmp.ne.s32.totalorder %s276, %s279
      %p285 = scmp.eq.s32.totalorder %s20, 0
      %p286 = por %p284, %p285
      %p287 = scmp.ne.s32.totalorder %s276, %s279
      %p288 = scmp.eq.s32.totalorder %s25, 1
      %p289 = por %p287, %p288
      %p290 = scmp.ne.s32.totalorder %s279, %s280
      %p291 = scmp.eq.s32.totalorder %s25, 0
      %p292 = por %p290, %p291
      %p293 = scmp.ne.s32.totalorder %s279, %s280
      %p294 = scmp.eq.s32.totalorder %s26, 1
      %p295 = por %p293, %p294
      %p297 = scmp.ne.s32.totalorder %s280, %s296
      %p298 = scmp.eq.s32.totalorder %s26, 0
      %p299 = por %p297, %p298
      %s300 = ssub.s32 %s28, %s35
      %p301 = scmp.eq.s32.totalorder %s300, 0
      %s303 = sadd.s32 %s302, 1
      %s304 = scalar_select %p301, %s302, %s303
      %p307 = pneg %p301
      %p308 = scmp.eq.s32.totalorder %s20, 1
      %p309 = por %p307, %p308
      %p310 = scmp.ne.s32.totalorder %s302, %s305
      %p311 = scmp.eq.s32.totalorder %s20, 0
      %p312 = por %p310, %p311
      %p313 = scmp.ne.s32.totalorder %s302, %s305
      %p314 = scmp.eq.s32.totalorder %s25, 1
      %p315 = por %p313, %p314
      %p316 = scmp.ne.s32.totalorder %s305, %s306
      %p317 = scmp.eq.s32.totalorder %s25, 0
      %p318 = por %p316, %p317
      %p319 = scmp.ne.s32.totalorder %s305, %s306
      %p320 = scmp.eq.s32.totalorder %s26, 1
      %p321 = por %p319, %p320
      %p323 = scmp.ne.s32.totalorder %s306, %s322
      %p324 = scmp.eq.s32.totalorder %s26, 0
      %p325 = por %p323, %p324
      %s326 = ssub.s32 %s28, %s35
      %p327 = scmp.eq.s32.totalorder %s326, 0
      %s329 = sadd.s32 %s328, 1
      %s330 = scalar_select %p327, %s328, %s329
      %p333 = pneg %p327
      %p334 = scmp.eq.s32.totalorder %s20, 1
      %p335 = por %p333, %p334
      %p336 = scmp.ne.s32.totalorder %s328, %s331
      %p337 = scmp.eq.s32.totalorder %s20, 0
      %p338 = por %p336, %p337
      %p339 = scmp.ne.s32.totalorder %s328, %s331
      %p340 = scmp.eq.s32.totalorder %s25, 1
      %p341 = por %p339, %p340
      %p342 = scmp.ne.s32.totalorder %s331, %s332
      %p343 = scmp.eq.s32.totalorder %s25, 0
      %p344 = por %p342, %p343
      %p345 = scmp.ne.s32.totalorder %s331, %s332
      %p346 = scmp.eq.s32.totalorder %s26, 1
      %p347 = por %p345, %p346
      %p349 = scmp.ne.s32.totalorder %s332, %s348
      %p350 = scmp.eq.s32.totalorder %s26, 0
      %p351 = por %p349, %p350
      %s352 = ssub.s32 %s28, %s35
      %p353 = scmp.eq.s32.totalorder %s352, 0
      %s355 = sadd.s32 %s354, 1
      %s356 = scalar_select %p353, %s354, %s355
      %p359 = pneg %p353
      %p360 = scmp.eq.s32.totalorder %s20, 1
      %p361 = por %p359, %p360
      %p362 = scmp.ne.s32.totalorder %s354, %s357
      %p363 = scmp.eq.s32.totalorder %s20, 0
      %p364 = por %p362, %p363
      %p365 = scmp.ne.s32.totalorder %s354, %s357
      %p366 = scmp.eq.s32.totalorder %s25, 1
      %p367 = por %p365, %p366
      %p368 = scmp.ne.s32.totalorder %s357, %s358
      %p369 = scmp.eq.s32.totalorder %s25, 0
      %p370 = por %p368, %p369
      %p371 = scmp.ne.s32.totalorder %s357, %s358
      %p372 = scmp.eq.s32.totalorder %s26, 1
      %p373 = por %p371, %p372
      %p375 = scmp.ne.s32.totalorder %s358, %s374
      %p376 = scmp.eq.s32.totalorder %s26, 0
      %p377 = por %p375, %p376
      %s378 = ssub.s32 %s27, %s39
      %p379 = scmp.eq.s32.totalorder %s378, 0
      %s381 = sadd.s32 %s380, 1
      %s382 = scalar_select %p379, %s380, %s381
      %p385 = pneg %p379
      %p386 = scmp.eq.s32.totalorder %s20, 1
      %p387 = por %p385, %p386
      %p388 = scmp.ne.s32.totalorder %s380, %s383
      %p389 = scmp.eq.s32.totalorder %s20, 0
      %p390 = por %p388, %p389
      %p391 = scmp.ne.s32.totalorder %s380, %s383
      %p392 = scmp.eq.s32.totalorder %s25, 1
      %p393 = por %p391, %p392
      %p394 = scmp.ne.s32.totalorder %s383, %s384
      %p395 = scmp.eq.s32.totalorder %s25, 0
      %p396 = por %p394, %p395
      %p397 = scmp.ne.s32.totalorder %s383, %s384
      %p398 = scmp.eq.s32.totalorder %s26, 1
      %p399 = por %p397, %p398
      %p401 = scmp.ne.s32.totalorder %s384, %s400
      %p402 = scmp.eq.s32.totalorder %s26, 0
      %p403 = por %p401, %p402
      %p404 = scmp.le.s32.totalorder 1, %s20
      %p405 = scmp.lt.s32.totalorder %s20, 3
      %p406 = pnand %p404, %p405
      %p407 = pneg %p406
      // Predicated region
      $region9: #{tpu_custom_call.1} parent=5 // pred_check
        _
      $region10: #{tpu_custom_call.1} parent=5 // pred_check_branch
        %409 = sbr.rel (%p406) target = $region12
      $region11: #{tpu_custom_call.1} parent=5 // pred_region
        %s410 = ssub.s32 %s20, 1
        // Predicated region
        $region13: #{tpu_custom_call.1} parent=11 // pred_check
          %p411 = pneg %p58
        $region14: #{tpu_custom_call.1} parent=11 // pred_check_branch
          %413 = sbr.rel (%p411) target = $region16
        $region15: #{tpu_custom_call.1} parent=11 // pred_region
          %s414 = smul.u32 2, %s29
          %p415 = scmp.lt.s32.totalorder %s414, 1
          %s416 = scalar_select %p415, %s414, 1
          %s417 = smul.addr %s416, 8
          %s418 = scalar_lea.vmem %s0, %s417
          %s419 = smul.u32 2, %s29
        $region16: #{tpu_custom_call.1} parent=11 // pred_fallthru
          _
      $region12: #{tpu_custom_call.1} parent=5 // pred_fallthru
        _
      %p420 = scmp.lt.s32.totalorder %s20, 2
      // Predicated region
      $region17: #{tpu_custom_call.1} parent=5 // pred_check
        %p421 = pneg %p420
      $region18: #{tpu_custom_call.1} parent=5 // pred_check_branch
        %423 = sbr.rel (%p421) target = $region20
      $region19: #{tpu_custom_call.1} parent=5 // pred_region
        // Predicated region
        $region21: #{tpu_custom_call.1} parent=19 // pred_check
          %p424 = pneg %p78
        $region22: #{tpu_custom_call.1} parent=19 // pred_check_branch
          %426 = sbr.rel (%p424) target = $region24
        $region23: #{tpu_custom_call.1} parent=19 // pred_region
          %p427 = scmp.lt.s32.totalorder %s28, 1
          %s428 = scalar_select %p427, %s28, 1
          %s429 = scalar_lea.vmem %s1, %s428
        $region24: #{tpu_custom_call.1} parent=19 // pred_fallthru
          _
        // Predicated region
        $region25: #{tpu_custom_call.1} parent=19 // pred_check
          %p430 = pneg %p104
        $region26: #{tpu_custom_call.1} parent=19 // pred_check_branch
          %432 = sbr.rel (%p430) target = $region28
        $region27: #{tpu_custom_call.1} parent=19 // pred_region
          %p433 = scmp.lt.s32.totalorder %s28, 1
          %s434 = scalar_select %p433, %s28, 1
          %s435 = scalar_lea.vmem %s2, %s434
        $region28: #{tpu_custom_call.1} parent=19 // pred_fallthru
          _
        // Predicated region
        $region29: #{tpu_custom_call.1} parent=19 // pred_check
          %p436 = pneg %p130
        $region30: #{tpu_custom_call.1} parent=19 // pred_check_branch
          %438 = sbr.rel (%p436) target = $region32
        $region31: #{tpu_custom_call.1} parent=19 // pred_region
          %p439 = scmp.lt.s32.totalorder %s28, 1
          %s440 = scalar_select %p439, %s28, 1
          %s441 = smul.addr %s440, 4
          %s442 = smul.addr %s441, 4
          %s443 = scalar_lea.vmem %s3, %s442
        $region32: #{tpu_custom_call.1} parent=19 // pred_fallthru
          _
        // Predicated region
        $region33: #{tpu_custom_call.1} parent=19 // pred_check
          %p444 = pneg %p156
        $region34: #{tpu_custom_call.1} parent=19 // pred_check_branch
          %446 = sbr.rel (%p444) target = $region36
        $region35: #{tpu_custom_call.1} parent=19 // pred_region
          %p447 = scmp.lt.s32.totalorder %s28, 1
          %s448 = scalar_select %p447, %s28, 1
          %s449 = scalar_lea.vmem %s4, %s448
        $region36: #{tpu_custom_call.1} parent=19 // pred_fallthru
          _
        // Predicated region
        $region37: #{tpu_custom_call.1} parent=19 // pred_check
          %p450 = pneg %p182
        $region38: #{tpu_custom_call.1} parent=19 // pred_check_branch
          %452 = sbr.rel (%p450) target = $region40
        $region39: #{tpu_custom_call.1} parent=19 // pred_region
          %p453 = scmp.lt.s32.totalorder %s28, 1
          %s454 = scalar_select %p453, %s28, 1
          %s455 = smul.addr %s454, 4
          %s456 = smul.addr %s455, 4
          %s457 = scalar_lea.vmem %s5, %s456
        $region40: #{tpu_custom_call.1} parent=19 // pred_fallthru
          _
        // Predicated region
        $region41: #{tpu_custom_call.1} parent=19 // pred_check
          %p458 = pneg %p208
        $region42: #{tpu_custom_call.1} parent=19 // pred_check_branch
          %460 = sbr.rel (%p458) target = $region44
        $region43: #{tpu_custom_call.1} parent=19 // pred_region
          %p461 = scmp.lt.s32.totalorder %s28, 1
          %s462 = scalar_select %p461, %s28, 1
          %s463 = scalar_lea.vmem %s6, %s462
        $region44: #{tpu_custom_call.1} parent=19 // pred_fallthru
          _
        // Predicated region
        $region45: #{tpu_custom_call.1} parent=19 // pred_check
          %p464 = pneg %p234
        $region46: #{tpu_custom_call.1} parent=19 // pred_check_branch
          %466 = sbr.rel (%p464) target = $region48
        $region47: #{tpu_custom_call.1} parent=19 // pred_region
          %p467 = scmp.lt.s32.totalorder %s28, 1
          %s468 = scalar_select %p467, %s28, 1
          %s469 = scalar_lea.vmem %s7, %s468
        $region48: #{tpu_custom_call.1} parent=19 // pred_fallthru
          _
        // Predicated region
        $region49: #{tpu_custom_call.1} parent=19 // pred_check
          %p470 = pneg %p260
        $region50: #{tpu_custom_call.1} parent=19 // pred_check_branch
          %472 = sbr.rel (%p470) target = $region52
        $region51: #{tpu_custom_call.1} parent=19 // pred_region
          %p473 = scmp.lt.s32.totalorder %s28, 1
          %s474 = scalar_select %p473, %s28, 1
          %s475 = scalar_lea.vmem %s8, %s474
        $region52: #{tpu_custom_call.1} parent=19 // pred_fallthru
          _
        // Predicated region
        $region53: #{tpu_custom_call.1} parent=19 // pred_check
          %p476 = pneg %p286
        $region54: #{tpu_custom_call.1} parent=19 // pred_check_branch
          %478 = sbr.rel (%p476) target = $region56
        $region55: #{tpu_custom_call.1} parent=19 // pred_region
          %p479 = scmp.lt.s32.totalorder %s28, 1
          %s480 = scalar_select %p479, %s28, 1
          %s481 = smul.addr %s480, 4
          %s482 = smul.addr %s481, 4
          %s483 = scalar_lea.vmem %s9, %s482
        $region56: #{tpu_custom_call.1} parent=19 // pred_fallthru
          _
        // Predicated region
        $region57: #{tpu_custom_call.1} parent=19 // pred_check
          %p484 = pneg %p312
        $region58: #{tpu_custom_call.1} parent=19 // pred_check_branch
          %486 = sbr.rel (%p484) target = $region60
        $region59: #{tpu_custom_call.1} parent=19 // pred_region
          %p487 = scmp.lt.s32.totalorder %s28, 1
          %s488 = scalar_select %p487, %s28, 1
          %s489 = scalar_lea.vmem %s10, %s488
        $region60: #{tpu_custom_call.1} parent=19 // pred_fallthru
          _
        // Predicated region
        $region61: #{tpu_custom_call.1} parent=19 // pred_check
          %p490 = pneg %p338
        $region62: #{tpu_custom_call.1} parent=19 // pred_check_branch
          %492 = sbr.rel (%p490) target = $region64
        $region63: #{tpu_custom_call.1} parent=19 // pred_region
          %p493 = scmp.lt.s32.totalorder %s28, 1
          %s494 = scalar_select %p493, %s28, 1
          %s495 = smul.addr %s494, 16
          %s496 = smul.addr %s495, 4
          %s497 = scalar_lea.vmem %s11, %s496
        $region64: #{tpu_custom_call.1} parent=19 // pred_fallthru
          _
        // Predicated region
        $region65: #{tpu_custom_call.1} parent=19 // pred_check
          %p498 = pneg %p364
        $region66: #{tpu_custom_call.1} parent=19 // pred_check_branch
          %500 = sbr.rel (%p498) target = $region68
        $region67: #{tpu_custom_call.1} parent=19 // pred_region
          %p501 = scmp.lt.s32.totalorder %s28, 1
          %s502 = scalar_select %p501, %s28, 1
          %s503 = scalar_lea.vmem %s12, %s502
        $region68: #{tpu_custom_call.1} parent=19 // pred_fallthru
          _
      $region20: #{tpu_custom_call.1} parent=5 // pred_fallthru
        _
      %p504 = scmp.le.s32.totalorder 1, %s20
      %p505 = scmp.lt.s32.totalorder %s20, 3
      %p506 = pnand %p504, %p505
      %p507 = pneg %p506
      // Predicated region
      $region69: #{tpu_custom_call.1} parent=5 // pred_check
        _
      $region70: #{tpu_custom_call.1} parent=5 // pred_check_branch
        %509 = sbr.rel (%p506) target = $region72
      $region71: #{tpu_custom_call.1} parent=5 // pred_region
        %s510 = ssub.s32 %s20, 1
        %s511 = smul.u32 2, %s29
        %p512 = scmp.lt.s32.totalorder %s511, 1
        %s513 = scalar_select %p512, %s511, 1
        %s514 = smul.addr %s513, 8
        %s515 = scalar_lea.vmem %s0, %s514
        %p516 = pneg %p58
        %p517 = pneg %p55
        %p518 = scmp.lt.s32.totalorder %s30, 1
        %s519 = scalar_select %p518, %s30, 1
        %s520 = scalar_lea.vmem %s1, %s519
        %p521 = pneg %p84
        %p522 = pneg %p81
        %p523 = scmp.lt.s32.totalorder %s30, 1
        %s524 = scalar_select %p523, %s30, 1
        %s525 = scalar_lea.vmem %s2, %s524
        %p526 = pneg %p110
        %p527 = pneg %p107
        %p528 = scmp.lt.s32.totalorder %s30, 1
        %s529 = scalar_select %p528, %s30, 1
        %s530 = smul.addr %s529, 4
        %s531 = smul.addr %s530, 4
        %s532 = scalar_lea.vmem %s3, %s531
        %p533 = pneg %p136
        %p534 = pneg %p133
        %p535 = scmp.lt.s32.totalorder %s30, 1
        %s536 = scalar_select %p535, %s30, 1
        %s537 = scalar_lea.vmem %s4, %s536
        %p538 = pneg %p162
        %p539 = pneg %p159
        %p540 = scmp.lt.s32.totalorder %s30, 1
        %s541 = scalar_select %p540, %s30, 1
        %s542 = smul.addr %s541, 4
        %s543 = smul.addr %s542, 4
        %s544 = scalar_lea.vmem %s5, %s543
        %p545 = pneg %p188
        %p546 = pneg %p185
        %p547 = scmp.lt.s32.totalorder %s30, 1
        %s548 = scalar_select %p547, %s30, 1
        %s549 = scalar_lea.vmem %s6, %s548
        %p550 = pneg %p214
        %p551 = pneg %p211
        %p552 = scmp.lt.s32.totalorder %s30, 1
        %s553 = scalar_select %p552, %s30, 1
        %s554 = scalar_lea.vmem %s7, %s553
        %p555 = pneg %p240
        %p556 = pneg %p237
        %p557 = scmp.lt.s32.totalorder %s30, 1
        %s558 = scalar_select %p557, %s30, 1
        %s559 = scalar_lea.vmem %s8, %s558
        %p560 = pneg %p266
        %p561 = pneg %p263
        %p562 = scmp.lt.s32.totalorder %s30, 1
        %s563 = scalar_select %p562, %s30, 1
        %s564 = smul.addr %s563, 4
        %s565 = smul.addr %s564, 4
        %s566 = scalar_lea.vmem %s9, %s565
        %p567 = pneg %p292
        %p568 = pneg %p289
        %p569 = scmp.lt.s32.totalorder %s30, 1
        %s570 = scalar_select %p569, %s30, 1
        %s571 = scalar_lea.vmem %s10, %s570
        %p572 = pneg %p318
        %p573 = pneg %p315
        %p574 = scmp.lt.s32.totalorder %s30, 1
        %s575 = scalar_select %p574, %s30, 1
        %s576 = smul.addr %s575, 16
        %s577 = smul.addr %s576, 4
        %s578 = scalar_lea.vmem %s11, %s577
        %p579 = pneg %p344
        %p580 = pneg %p341
        %p581 = scmp.lt.s32.totalorder %s30, 1
        %s582 = scalar_select %p581, %s30, 1
        %s583 = scalar_lea.vmem %s12, %s582
        %p584 = pneg %p370
        %p585 = pneg %p367
        %p586 = pneg %p396
        %p587 = pneg %p393
        %s588 = smul.u32 2, %s29
        %p589 = scmp.lt.s32.totalorder %s588, 1
        %s590 = scalar_select %p589, %s588, 1
        %s591 = smul.addr %s590, 8
        %s592 = scalar_lea.vmem %s0, %s591
        %s593 = smul.u32 2, %s29
        %p594 = scmp.lt.s32.totalorder %s30, 1
        %s595 = scalar_select %p594, %s30, 1
        %s596 = scalar_lea.vmem %s1, %s595
        %p597 = scmp.lt.s32.totalorder %s30, 1
        %s598 = scalar_select %p597, %s30, 1
        %s599 = scalar_lea.vmem %s2, %s598
        %p600 = scmp.lt.s32.totalorder %s30, 1
        %s601 = scalar_select %p600, %s30, 1
        %s602 = smul.addr %s601, 4
        %s603 = smul.addr %s602, 4
        %s604 = scalar_lea.vmem %s3, %s603
        %p605 = scmp.lt.s32.totalorder %s30, 1
        %s606 = scalar_select %p605, %s30, 1
        %s607 = scalar_lea.vmem %s4, %s606
        %p608 = scmp.lt.s32.totalorder %s30, 1
        %s609 = scalar_select %p608, %s30, 1
        %s610 = smul.addr %s609, 4
        %s611 = smul.addr %s610, 4
        %s612 = scalar_lea.vmem %s5, %s611
        %p613 = scmp.lt.s32.totalorder %s30, 1
        %s614 = scalar_select %p613, %s30, 1
        %s615 = scalar_lea.vmem %s6, %s614
        %p616 = scmp.lt.s32.totalorder %s30, 1
        %s617 = scalar_select %p616, %s30, 1
        %s618 = scalar_lea.vmem %s7, %s617
        %p619 = scmp.lt.s32.totalorder %s30, 1
        %s620 = scalar_select %p619, %s30, 1
        %s621 = scalar_lea.vmem %s8, %s620
        %p622 = scmp.lt.s32.totalorder %s30, 1
        %s623 = scalar_select %p622, %s30, 1
        %s624 = smul.addr %s623, 4
        %s625 = smul.addr %s624, 4
        %s626 = scalar_lea.vmem %s9, %s625
        %p627 = scmp.lt.s32.totalorder %s30, 1
        %s628 = scalar_select %p627, %s30, 1
        %s629 = scalar_lea.vmem %s10, %s628
        %p630 = scmp.lt.s32.totalorder %s30, 1
        %s631 = scalar_select %p630, %s30, 1
        %s632 = smul.addr %s631, 16
        %s633 = smul.addr %s632, 4
        %s634 = scalar_lea.vmem %s11, %s633
        %p635 = scmp.lt.s32.totalorder %s30, 1
        %s636 = scalar_select %p635, %s30, 1
        %s637 = scalar_lea.vmem %s12, %s636
        %s638 = smul.u32 2, %s29
        %p640 = scmp.eq.s32.totalorder %s30, 0
        // Predicated region
        $region73: #{tpu_custom_call.1} parent=71 // pred_check
          %p641 = pneg %p640
        $region74: #{tpu_custom_call.1} parent=71 // pred_check_branch
          %643 = sbr.rel (%p641) target = $region76
        $region75: #{tpu_custom_call.1} parent=71 // pred_region
          %v644 = vld [vmem:[%s592] sm:$0xff]
          %v645 = vld [vmem:[%s592 + $0x8] sm:$0xff]
          %vm646 = vcmask 261120
          %647 = vst.msk [vmem:[#allocation2] sm:$0xff] %vm646, %v644
          %648 = vst.msk [vmem:[#allocation2 + $0x8] sm:$0xff] %vm646, %v645
        $region76: #{tpu_custom_call.1} parent=71 // pred_fallthru
          _
        %v649 = vld [vmem:[#allocation2] sm:$0xff]
        %v650 = vld [vmem:[#allocation2 + $0x8] sm:$0xff]
        %v651 = vld [vmem:[%s596] sm:$0x1]
        %v652 = vld [vmem:[%s599] sm:$0x1]
        %vm653 = vcmask 261120
        %v654 = vsel %vm653, %v649, 0.0
        %655 = vadd.xlane.f32.xlu0 %v654
        %v656 = vpop.xlane.xlu0 %655
        %v657 = vsel %vm653, %v650, 0.0
        %658 = vadd.xlane.f32.xlu0 %v657
        %v659 = vpop.xlane.xlu0 %658
        %v660 = vrcp.pop 32.0
        %v661 = vmul.f32 %v656, %v660
        %v662 = vmul.f32 %v659, %v660
        %v663 = vsub.f32 %v649, %v661
        %v664 = vsub.f32 %v650, %v662
        %v665 = vmul.f32 %v663, %v663
        %v666 = vmul.f32 %v664, %v664
        %v667 = vsel %vm653, %v665, 0.0
        %668 = vadd.xlane.f32.xlu0 %v667
        %v669 = vpop.xlane.xlu0 %668
        %v670 = vsel %vm653, %v666, 0.0
        %671 = vadd.xlane.f32.xlu0 %v670
        %v672 = vpop.xlane.xlu0 %671
        %v673 = vmul.f32 %v669, %v660
        %v674 = vmul.f32 %v672, %v660
        %v675 = vadd.f32 %v673, 1e-05
        %v676 = vadd.f32 %v674, 1e-05
        %v677 = vrsqrt.pop %v675
        %v678 = vrsqrt.pop %v676
        %v679 = vmul.f32 %v663, %v677
        %v680 = vmul.f32 %v664, %v678
        %v682 = vlaneseq
        %v683 = vshrl.u32 %v682, 7
        %v684 = vsub.s32 0, %v683
        %v685 = vrot.slane %v651, %v684
        %v687 = vmul.f32 %v679, %v685
        %v688 = vmul.f32 %v680, %v685
        %v690 = vlaneseq
        %v691 = vshrl.u32 %v690, 7
        %v692 = vsub.s32 0, %v691
        %v693 = vrot.slane %v652, %v692
        %v695 = vadd.f32 %v687, %v693
        %v696 = vadd.f32 %v688, %v693
        %v697 = vpack.c.bf16 %v696, %v695
        %v698 = vld [vmem:[%s604] sm:$0xf]
        %v699 = vld [vmem:[%s604 + $0x4] sm:$0xf]
        %v700 = vld [vmem:[%s604 + $0x8] sm:$0xf]
        %v701 = vld [vmem:[%s604 + $0xc] sm:$0xf]
        %v702 = vld [vmem:[%s607] sm:$0x1]
        %v704 = vlaneseq
        %v705 = vshrl.u32 %v704, 7
        %v706 = vsub.s32 0, %v705
        %v707 = vrot.slane %v702, %v706
        %v713 = vunpack.c.l.b16 %v698
        %v714 = vunpack.c.l.b16 %v699
        %v715 = vunpack.c.l.b16 %v700
        %v716 = vunpack.c.l.b16 %v701
        %v717 = vpack.c.b16 %v714, %v713
        %v718 = vpack.c.b16 %v716, %v715
        %v722 = vsel %vm653, %v697, 0
        %724 = vmatprep.subr.bf16.mxu0 0
        %725 = vmatpush1.bf16.msra.mxu0 0
        %726 = vmatprep.subr.bf16.mxu0 0
        %727 = vmatpush1.bf16.msra.mxu0 0
        %728 = vmatprep.subr.bf16.mxu0 0
        %729 = vmatpush1.bf16.msra.mxu0 0
        %730 = vmatprep.subr.bf16.mxu0 0
        %731 = vmatpush1.bf16.msra.mxu0 0
        %732 = vmatprep.subr.bf16.mxu0 0
        %733 = vmatpush1.bf16.msra.mxu0 0
        %734 = vmatprep.subr.bf16.mxu0 0
        %735 = vmatpush1.bf16.msra.mxu0 0
        %736 = vmatprep.subr.bf16.mxu0 0
        %737 = vmatpush1.bf16.msra.mxu0 %v718
        %738 = vmatprep.subr.bf16.mxu0 0
        %739 = vmatpush1.bf16.msra.mxu0 %v717
        %740 = vmatprep.subr.bf16.mxu0 0
        %741 = vmatpush2.bf16.msra.mxu0 0
        %742 = vmatprep.subr.bf16.mxu0 0
        %743 = vmatpush2.bf16.msra.mxu0 0
        %744 = vmatprep.subr.bf16.mxu0 0
        %745 = vmatpush2.bf16.msra.mxu0 0
        %746 = vmatprep.subr.bf16.mxu0 0
        %747 = vmatpush2.bf16.msra.mxu0 0
        %748 = vmatprep.subr.bf16.mxu0 0
        %749 = vmatpush2.bf16.msra.mxu0 0
        %750 = vmatprep.subr.bf16.mxu0 0
        %751 = vmatpush2.bf16.msra.mxu0 0
        %752 = vmatprep.subr.bf16.mxu0 0
        %753 = vmatpush2.bf16.msra.mxu0 0
        %754 = vmatprep.subr.bf16.mxu0 0
        %755 = vmatpush2.bf16.msra.mxu0 0
        %756 = vmatprep.mubr.bf16.mxu0 0
        %757 = vmatmul.mubr.bf16.gmra.mxu0 %v722
        %v758 = vpop.f32.mrf.mxu0
        %v759 = vadd.f32 %v707, %v758
        %v760 = vpop.f32.mrf.mxu0
        %v761 = vpop.f32.mrf.mxu0
        %v762 = vadd.f32 %v707, %v761
        %v763 = vpop.f32.mrf.mxu0
        %764 = vdwg.mxu0
        %767 = vrot.lane.b32.xlu0 %v759, 120
        %v768 = vpop.permute.xlu0 %767
        %769 = vrot.lane.b32.xlu0 %v762, 120
        %v770 = vpop.permute.xlu0 %769
        %773 = vrot.lane.b32.xlu0 %v759, 112
        %v774 = vpop.permute.xlu0 %773
        %775 = vrot.lane.b32.xlu0 %v762, 112
        %v776 = vpop.permute.xlu0 %775
        %779 = vrot.lane.b32.xlu0 %v759, 104
        %v780 = vpop.permute.xlu0 %779
        %781 = vrot.lane.b32.xlu0 %v762, 104
        %v782 = vpop.permute.xlu0 %781
        %v785 = vcombine.low %v759, %v774
        %v786 = vcombine.high %v759, %v774
        %v788 = vunpack.c.l.s4 1983009808
        %v789 = vunpack.c.0.s8 %v788
        %v790 = vlaneseq
        %v791 = vshrl.u32 %v790, 7
        %v792 = vsub.s32 %v789, %v791
        %v793 = vrot.slane %v785, %v792
        %v795 = vunpack.c.l.s4 1983009808
        %v796 = vunpack.c.0.s8 %v795
        %v797 = vlaneseq
        %v798 = vshrl.u32 %v797, 7
        %v799 = vsub.s32 %v796, %v798
        %v800 = vrot.slane %v786, %v799
        %v801 = vcombine.low %v768, %v780
        %v802 = vcombine.high %v768, %v780
        %v804 = vunpack.c.l.s4 1983009808
        %v805 = vunpack.c.0.s8 %v804
        %v806 = vlaneseq
        %v807 = vshrl.u32 %v806, 7
        %v808 = vsub.s32 %v805, %v807
        %v809 = vrot.slane %v801, %v808
        %v811 = vunpack.c.l.s4 1983009808
        %v812 = vunpack.c.0.s8 %v811
        %v813 = vlaneseq
        %v814 = vshrl.u32 %v813, 7
        %v815 = vsub.s32 %v812, %v814
        %v816 = vrot.slane %v802, %v815
        %v817 = vcombine.low %v793, %v809
        %v818 = vcombine.high %v793, %v809
        %v820 = vunpack.c.l.s4 1934713408
        %v821 = vunpack.c.0.s8 %v820
        %v822 = vlaneseq
        %v823 = vshrl.u32 %v822, 7
        %v824 = vsub.s32 %v821, %v823
        %v825 = vrot.slane %v817, %v824
        %v827 = vunpack.c.l.s4 1934713408
        %v828 = vunpack.c.0.s8 %v827
        %v829 = vlaneseq
        %v830 = vshrl.u32 %v829, 7
        %v831 = vsub.s32 %v828, %v830
        %v832 = vrot.slane %v818, %v831
        %v833 = vcombine.low %v800, %v816
        %v834 = vcombine.high %v800, %v816
        %v836 = vunpack.c.l.s4 1934713408
        %v837 = vunpack.c.0.s8 %v836
        %v838 = vlaneseq
        %v839 = vshrl.u32 %v838, 7
        %v840 = vsub.s32 %v837, %v839
        %v841 = vrot.slane %v833, %v840
        %v843 = vunpack.c.l.s4 1934713408
        %v844 = vunpack.c.0.s8 %v843
        %v845 = vlaneseq
        %v846 = vshrl.u32 %v845, 7
        %v847 = vsub.s32 %v844, %v846
        %v848 = vrot.slane %v834, %v847
        %v849 = vcombine.high %v825, 0.0
        %v850 = vcombine.high %v832, 0.0
        %v851 = vcombine.high %v841, 0.0
        %v852 = vcombine.high %v848, 0.0
        %v853 = vcombine.low %v762, %v776
        %v854 = vcombine.high %v762, %v776
        %v856 = vunpack.c.l.s4 1983009808
        %v857 = vunpack.c.0.s8 %v856
        %v858 = vlaneseq
        %v859 = vshrl.u32 %v858, 7
        %v860 = vsub.s32 %v857, %v859
        %v861 = vrot.slane %v853, %v860
        %v863 = vunpack.c.l.s4 1983009808
        %v864 = vunpack.c.0.s8 %v863
        %v865 = vlaneseq
        %v866 = vshrl.u32 %v865, 7
        %v867 = vsub.s32 %v864, %v866
        %v868 = vrot.slane %v854, %v867
        %v869 = vcombine.low %v770, %v782
        %v870 = vcombine.high %v770, %v782
        %v872 = vunpack.c.l.s4 1983009808
        %v873 = vunpack.c.0.s8 %v872
        %v874 = vlaneseq
        %v875 = vshrl.u32 %v874, 7
        %v876 = vsub.s32 %v873, %v875
        %v877 = vrot.slane %v869, %v876
        %v879 = vunpack.c.l.s4 1983009808
        %v880 = vunpack.c.0.s8 %v879
        %v881 = vlaneseq
        %v882 = vshrl.u32 %v881, 7
        %v883 = vsub.s32 %v880, %v882
        %v884 = vrot.slane %v870, %v883
        %v885 = vcombine.low %v861, %v877
        %v886 = vcombine.high %v861, %v877
        %v888 = vunpack.c.l.s4 1934713408
        %v889 = vunpack.c.0.s8 %v888
        %v890 = vlaneseq
        %v891 = vshrl.u32 %v890, 7
        %v892 = vsub.s32 %v889, %v891
        %v893 = vrot.slane %v885, %v892
        %v895 = vunpack.c.l.s4 1934713408
        %v896 = vunpack.c.0.s8 %v895
        %v897 = vlaneseq
        %v898 = vshrl.u32 %v897, 7
        %v899 = vsub.s32 %v896, %v898
        %v900 = vrot.slane %v886, %v899
        %v901 = vcombine.low %v868, %v884
        %v902 = vcombine.high %v868, %v884
        %v904 = vunpack.c.l.s4 1934713408
        %v905 = vunpack.c.0.s8 %v904
        %v906 = vlaneseq
        %v907 = vshrl.u32 %v906, 7
        %v908 = vsub.s32 %v905, %v907
        %v909 = vrot.slane %v901, %v908
        %v911 = vunpack.c.l.s4 1934713408
        %v912 = vunpack.c.0.s8 %v911
        %v913 = vlaneseq
        %v914 = vshrl.u32 %v913, 7
        %v915 = vsub.s32 %v912, %v914
        %v916 = vrot.slane %v902, %v915
        %v917 = vcombine.high %v893, 0.0
        %v918 = vcombine.high %v900, 0.0
        %v919 = vcombine.high %v909, 0.0
        %v920 = vcombine.high %v916, 0.0
        %v921 = vcombine.low %v825, %v832
        %v923 = vunpack.c.l.s4 1983009808
        %v924 = vunpack.c.0.s8 %v923
        %v925 = vlaneseq
        %v926 = vshrl.u32 %v925, 7
        %v927 = vsub.s32 %v924, %v926
        %v928 = vrot.slane %v921, %v927
        %v929 = vcombine.low %v849, %v850
        %v931 = vunpack.c.l.s4 1983009808
        %v932 = vunpack.c.0.s8 %v931
        %v933 = vlaneseq
        %v934 = vshrl.u32 %v933, 7
        %v935 = vsub.s32 %v932, %v934
        %v936 = vrot.slane %v929, %v935
        %v937 = vcombine.low %v841, %v848
        %v939 = vunpack.c.l.s4 1983009808
        %v940 = vunpack.c.0.s8 %v939
        %v941 = vlaneseq
        %v942 = vshrl.u32 %v941, 7
        %v943 = vsub.s32 %v940, %v942
        %v944 = vrot.slane %v937, %v943
        %v945 = vcombine.low %v851, %v852
        %v947 = vunpack.c.l.s4 1983009808
        %v948 = vunpack.c.0.s8 %v947
        %v949 = vlaneseq
        %v950 = vshrl.u32 %v949, 7
        %v951 = vsub.s32 %v948, %v950
        %v952 = vrot.slane %v945, %v951
        %v953 = vcombine.low %v928, %v936
        %v954 = vcombine.high %v928, %v936
        %v956 = vunpack.c.l.s4 1934713408
        %v957 = vunpack.c.0.s8 %v956
        %v958 = vlaneseq
        %v959 = vshrl.u32 %v958, 7
        %v960 = vsub.s32 %v957, %v959
        %v961 = vrot.slane %v953, %v960
        %v963 = vunpack.c.l.s4 1934713408
        %v964 = vunpack.c.0.s8 %v963
        %v965 = vlaneseq
        %v966 = vshrl.u32 %v965, 7
        %v967 = vsub.s32 %v964, %v966
        %v968 = vrot.slane %v954, %v967
        %v969 = vcombine.low %v944, %v952
        %v970 = vcombine.high %v944, %v952
        %v972 = vunpack.c.l.s4 1934713408
        %v973 = vunpack.c.0.s8 %v972
        %v974 = vlaneseq
        %v975 = vshrl.u32 %v974, 7
        %v976 = vsub.s32 %v973, %v975
        %v977 = vrot.slane %v969, %v976
        %v979 = vunpack.c.l.s4 1934713408
        %v980 = vunpack.c.0.s8 %v979
        %v981 = vlaneseq
        %v982 = vshrl.u32 %v981, 7
        %v983 = vsub.s32 %v980, %v982
        %v984 = vrot.slane %v970, %v983
        %v985 = vcombine.low %v961, %v977
        %v986 = vcombine.high %v961, %v977
        %v987 = vcombine.low %v968, %v984
        %v988 = vcombine.high %v968, %v984
        %v989 = vcombine.low %v893, %v900
        %v991 = vunpack.c.l.s4 1983009808
        %v992 = vunpack.c.0.s8 %v991
        %v993 = vlaneseq
        %v994 = vshrl.u32 %v993, 7
        %v995 = vsub.s32 %v992, %v994
        %v996 = vrot.slane %v989, %v995
        %v997 = vcombine.low %v917, %v918
        %v999 = vunpack.c.l.s4 1983009808
        %v1000 = vunpack.c.0.s8 %v999
        %v1001 = vlaneseq
        %v1002 = vshrl.u32 %v1001, 7
        %v1003 = vsub.s32 %v1000, %v1002
        %v1004 = vrot.slane %v997, %v1003
        %v1005 = vcombine.low %v909, %v916
        %v1007 = vunpack.c.l.s4 1983009808
        %v1008 = vunpack.c.0.s8 %v1007
        %v1009 = vlaneseq
        %v1010 = vshrl.u32 %v1009, 7
        %v1011 = vsub.s32 %v1008, %v1010
        %v1012 = vrot.slane %v1005, %v1011
        %v1013 = vcombine.low %v919, %v920
        %v1015 = vunpack.c.l.s4 1983009808
        %v1016 = vunpack.c.0.s8 %v1015
        %v1017 = vlaneseq
        %v1018 = vshrl.u32 %v1017, 7
        %v1019 = vsub.s32 %v1016, %v1018
        %v1020 = vrot.slane %v1013, %v1019
        %v1021 = vcombine.low %v996, %v1004
        %v1022 = vcombine.high %v996, %v1004
        %v1024 = vunpack.c.l.s4 1934713408
        %v1025 = vunpack.c.0.s8 %v1024
        %v1026 = vlaneseq
        %v1027 = vshrl.u32 %v1026, 7
        %v1028 = vsub.s32 %v1025, %v1027
        %v1029 = vrot.slane %v1021, %v1028
        %v1031 = vunpack.c.l.s4 1934713408
        %v1032 = vunpack.c.0.s8 %v1031
        %v1033 = vlaneseq
        %v1034 = vshrl.u32 %v1033, 7
        %v1035 = vsub.s32 %v1032, %v1034
        %v1036 = vrot.slane %v1022, %v1035
        %v1037 = vcombine.low %v1012, %v1020
        %v1038 = vcombine.high %v1012, %v1020
        %v1040 = vunpack.c.l.s4 1934713408
        %v1041 = vunpack.c.0.s8 %v1040
        %v1042 = vlaneseq
        %v1043 = vshrl.u32 %v1042, 7
        %v1044 = vsub.s32 %v1041, %v1043
        %v1045 = vrot.slane %v1037, %v1044
        %v1047 = vunpack.c.l.s4 1934713408
        %v1048 = vunpack.c.0.s8 %v1047
        %v1049 = vlaneseq
        %v1050 = vshrl.u32 %v1049, 7
        %v1051 = vsub.s32 %v1048, %v1050
        %v1052 = vrot.slane %v1038, %v1051
        %v1053 = vcombine.low %v1029, %v1045
        %v1054 = vcombine.high %v1029, %v1045
        %v1055 = vcombine.low %v1036, %v1052
        %v1056 = vcombine.high %v1036, %v1052
        %v1057 = vpack.c.bf16 %v985, %v985
        %v1058 = vpack.c.bf16 %v986, %v986
        %v1059 = vpack.c.bf16 %v987, %v987
        %v1060 = vpack.c.bf16 %v988, %v988
        %v1061 = vpack.c.bf16 %v1053, %v1053
        %v1062 = vpack.c.bf16 %v1054, %v1054
        %v1063 = vpack.c.bf16 %v1055, %v1055
        %v1064 = vpack.c.bf16 %v1056, %v1056
        %1065 = vrot.lane.b32.xlu0 %v759, 96
        %v1066 = vpop.permute.xlu0 %1065
        %1067 = vrot.lane.b32.xlu0 %v762, 96
        %v1068 = vpop.permute.xlu0 %1067
        %1069 = vrot.lane.b32.xlu0 %v768, 96
        %v1070 = vpop.permute.xlu0 %1069
        %1071 = vrot.lane.b32.xlu0 %v770, 96
        %v1072 = vpop.permute.xlu0 %1071
        %1073 = vrot.lane.b32.xlu0 %v774, 96
        %v1074 = vpop.permute.xlu0 %1073
        %1075 = vrot.lane.b32.xlu0 %v776, 96
        %v1076 = vpop.permute.xlu0 %1075
        %1077 = vrot.lane.b32.xlu0 %v780, 96
        %v1078 = vpop.permute.xlu0 %1077
        %1079 = vrot.lane.b32.xlu0 %v782, 96
        %v1080 = vpop.permute.xlu0 %1079
        %v1089 = vcombine.low %v1066, %v1074
        %v1090 = vcombine.high %v1066, %v1074
        %v1092 = vunpack.c.l.s4 1983009808
        %v1093 = vunpack.c.0.s8 %v1092
        %v1094 = vlaneseq
        %v1095 = vshrl.u32 %v1094, 7
        %v1096 = vsub.s32 %v1093, %v1095
        %v1097 = vrot.slane %v1089, %v1096
        %v1099 = vunpack.c.l.s4 1983009808
        %v1100 = vunpack.c.0.s8 %v1099
        %v1101 = vlaneseq
        %v1102 = vshrl.u32 %v1101, 7
        %v1103 = vsub.s32 %v1100, %v1102
        %v1104 = vrot.slane %v1090, %v1103
        %v1105 = vcombine.low %v1070, %v1078
        %v1106 = vcombine.high %v1070, %v1078
        %v1108 = vunpack.c.l.s4 1983009808
        %v1109 = vunpack.c.0.s8 %v1108
        %v1110 = vlaneseq
        %v1111 = vshrl.u32 %v1110, 7
        %v1112 = vsub.s32 %v1109, %v1111
        %v1113 = vrot.slane %v1105, %v1112
        %v1115 = vunpack.c.l.s4 1983009808
        %v1116 = vunpack.c.0.s8 %v1115
        %v1117 = vlaneseq
        %v1118 = vshrl.u32 %v1117, 7
        %v1119 = vsub.s32 %v1116, %v1118
        %v1120 = vrot.slane %v1106, %v1119
        %v1121 = vcombine.low %v1097, %v1113
        %v1122 = vcombine.high %v1097, %v1113
        %v1124 = vunpack.c.l.s4 1934713408
        %v1125 = vunpack.c.0.s8 %v1124
        %v1126 = vlaneseq
        %v1127 = vshrl.u32 %v1126, 7
        %v1128 = vsub.s32 %v1125, %v1127
        %v1129 = vrot.slane %v1121, %v1128
        %v1131 = vunpack.c.l.s4 1934713408
        %v1132 = vunpack.c.0.s8 %v1131
        %v1133 = vlaneseq
        %v1134 = vshrl.u32 %v1133, 7
        %v1135 = vsub.s32 %v1132, %v1134
        %v1136 = vrot.slane %v1122, %v1135
        %v1137 = vcombine.low %v1104, %v1120
        %v1138 = vcombine.high %v1104, %v1120
        %v1140 = vunpack.c.l.s4 1934713408
        %v1141 = vunpack.c.0.s8 %v1140
        %v1142 = vlaneseq
        %v1143 = vshrl.u32 %v1142, 7
        %v1144 = vsub.s32 %v1141, %v1143
        %v1145 = vrot.slane %v1137, %v1144
        %v1147 = vunpack.c.l.s4 1934713408
        %v1148 = vunpack.c.0.s8 %v1147
        %v1149 = vlaneseq
        %v1150 = vshrl.u32 %v1149, 7
        %v1151 = vsub.s32 %v1148, %v1150
        %v1152 = vrot.slane %v1138, %v1151
        %v1153 = vcombine.high %v1129, 0.0
        %v1154 = vcombine.high %v1136, 0.0
        %v1155 = vcombine.high %v1145, 0.0
        %v1156 = vcombine.high %v1152, 0.0
        %v1157 = vcombine.low %v1068, %v1076
        %v1158 = vcombine.high %v1068, %v1076
        %v1160 = vunpack.c.l.s4 1983009808
        %v1161 = vunpack.c.0.s8 %v1160
        %v1162 = vlaneseq
        %v1163 = vshrl.u32 %v1162, 7
        %v1164 = vsub.s32 %v1161, %v1163
        %v1165 = vrot.slane %v1157, %v1164
        %v1167 = vunpack.c.l.s4 1983009808
        %v1168 = vunpack.c.0.s8 %v1167
        %v1169 = vlaneseq
        %v1170 = vshrl.u32 %v1169, 7
        %v1171 = vsub.s32 %v1168, %v1170
        %v1172 = vrot.slane %v1158, %v1171
        %v1173 = vcombine.low %v1072, %v1080
        %v1174 = vcombine.high %v1072, %v1080
        %v1176 = vunpack.c.l.s4 1983009808
        %v1177 = vunpack.c.0.s8 %v1176
        %v1178 = vlaneseq
        %v1179 = vshrl.u32 %v1178, 7
        %v1180 = vsub.s32 %v1177, %v1179
        %v1181 = vrot.slane %v1173, %v1180
        %v1183 = vunpack.c.l.s4 1983009808
        %v1184 = vunpack.c.0.s8 %v1183
        %v1185 = vlaneseq
        %v1186 = vshrl.u32 %v1185, 7
        %v1187 = vsub.s32 %v1184, %v1186
        %v1188 = vrot.slane %v1174, %v1187
        %v1189 = vcombine.low %v1165, %v1181
        %v1190 = vcombine.high %v1165, %v1181
        %v1192 = vunpack.c.l.s4 1934713408
        %v1193 = vunpack.c.0.s8 %v1192
        %v1194 = vlaneseq
        %v1195 = vshrl.u32 %v1194, 7
        %v1196 = vsub.s32 %v1193, %v1195
        %v1197 = vrot.slane %v1189, %v1196
        %v1199 = vunpack.c.l.s4 1934713408
        %v1200 = vunpack.c.0.s8 %v1199
        %v1201 = vlaneseq
        %v1202 = vshrl.u32 %v1201, 7
        %v1203 = vsub.s32 %v1200, %v1202
        %v1204 = vrot.slane %v1190, %v1203
        %v1205 = vcombine.low %v1172, %v1188
        %v1206 = vcombine.high %v1172, %v1188
        %v1208 = vunpack.c.l.s4 1934713408
        %v1209 = vunpack.c.0.s8 %v1208
        %v1210 = vlaneseq
        %v1211 = vshrl.u32 %v1210, 7
        %v1212 = vsub.s32 %v1209, %v1211
        %v1213 = vrot.slane %v1205, %v1212
        %v1215 = vunpack.c.l.s4 1934713408
        %v1216 = vunpack.c.0.s8 %v1215
        %v1217 = vlaneseq
        %v1218 = vshrl.u32 %v1217, 7
        %v1219 = vsub.s32 %v1216, %v1218
        %v1220 = vrot.slane %v1206, %v1219
        %v1221 = vcombine.high %v1197, 0.0
        %v1222 = vcombine.high %v1204, 0.0
        %v1223 = vcombine.high %v1213, 0.0
        %v1224 = vcombine.high %v1220, 0.0
        %v1225 = vcombine.low %v1129, %v1136
        %v1227 = vunpack.c.l.s4 1983009808
        %v1228 = vunpack.c.0.s8 %v1227
        %v1229 = vlaneseq
        %v1230 = vshrl.u32 %v1229, 7
        %v1231 = vsub.s32 %v1228, %v1230
        %v1232 = vrot.slane %v1225, %v1231
        %v1233 = vcombine.low %v1153, %v1154
        %v1235 = vunpack.c.l.s4 1983009808
        %v1236 = vunpack.c.0.s8 %v1235
        %v1237 = vlaneseq
        %v1238 = vshrl.u32 %v1237, 7
        %v1239 = vsub.s32 %v1236, %v1238
        %v1240 = vrot.slane %v1233, %v1239
        %v1241 = vcombine.low %v1145, %v1152
        %v1243 = vunpack.c.l.s4 1983009808
        %v1244 = vunpack.c.0.s8 %v1243
        %v1245 = vlaneseq
        %v1246 = vshrl.u32 %v1245, 7
        %v1247 = vsub.s32 %v1244, %v1246
        %v1248 = vrot.slane %v1241, %v1247
        %v1249 = vcombine.low %v1155, %v1156
        %v1251 = vunpack.c.l.s4 1983009808
        %v1252 = vunpack.c.0.s8 %v1251
        %v1253 = vlaneseq
        %v1254 = vshrl.u32 %v1253, 7
        %v1255 = vsub.s32 %v1252, %v1254
        %v1256 = vrot.slane %v1249, %v1255
        %v1257 = vcombine.low %v1232, %v1240
        %v1258 = vcombine.high %v1232, %v1240
        %v1260 = vunpack.c.l.s4 1934713408
        %v1261 = vunpack.c.0.s8 %v1260
        %v1262 = vlaneseq
        %v1263 = vshrl.u32 %v1262, 7
        %v1264 = vsub.s32 %v1261, %v1263
        %v1265 = vrot.slane %v1257, %v1264
        %v1267 = vunpack.c.l.s4 1934713408
        %v1268 = vunpack.c.0.s8 %v1267
        %v1269 = vlaneseq
        %v1270 = vshrl.u32 %v1269, 7
        %v1271 = vsub.s32 %v1268, %v1270
        %v1272 = vrot.slane %v1258, %v1271
        %v1273 = vcombine.low %v1248, %v1256
        %v1274 = vcombine.high %v1248, %v1256
        %v1276 = vunpack.c.l.s4 1934713408
        %v1277 = vunpack.c.0.s8 %v1276
        %v1278 = vlaneseq
        %v1279 = vshrl.u32 %v1278, 7
        %v1280 = vsub.s32 %v1277, %v1279
        %v1281 = vrot.slane %v1273, %v1280
        %v1283 = vunpack.c.l.s4 1934713408
        %v1284 = vunpack.c.0.s8 %v1283
        %v1285 = vlaneseq
        %v1286 = vshrl.u32 %v1285, 7
        %v1287 = vsub.s32 %v1284, %v1286
        %v1288 = vrot.slane %v1274, %v1287
        %v1289 = vcombine.low %v1265, %v1281
        %v1290 = vcombine.high %v1265, %v1281
        %v1291 = vcombine.low %v1272, %v1288
        %v1292 = vcombine.high %v1272, %v1288
        %v1293 = vcombine.low %v1197, %v1204
        %v1295 = vunpack.c.l.s4 1983009808
        %v1296 = vunpack.c.0.s8 %v1295
        %v1297 = vlaneseq
        %v1298 = vshrl.u32 %v1297, 7
        %v1299 = vsub.s32 %v1296, %v1298
        %v1300 = vrot.slane %v1293, %v1299
        %v1301 = vcombine.low %v1221, %v1222
        %v1303 = vunpack.c.l.s4 1983009808
        %v1304 = vunpack.c.0.s8 %v1303
        %v1305 = vlaneseq
        %v1306 = vshrl.u32 %v1305, 7
        %v1307 = vsub.s32 %v1304, %v1306
        %v1308 = vrot.slane %v1301, %v1307
        %v1309 = vcombine.low %v1213, %v1220
        %v1311 = vunpack.c.l.s4 1983009808
        %v1312 = vunpack.c.0.s8 %v1311
        %v1313 = vlaneseq
        %v1314 = vshrl.u32 %v1313, 7
        %v1315 = vsub.s32 %v1312, %v1314
        %v1316 = vrot.slane %v1309, %v1315
        %v1317 = vcombine.low %v1223, %v1224
        %v1319 = vunpack.c.l.s4 1983009808
        %v1320 = vunpack.c.0.s8 %v1319
        %v1321 = vlaneseq
        %v1322 = vshrl.u32 %v1321, 7
        %v1323 = vsub.s32 %v1320, %v1322
        %v1324 = vrot.slane %v1317, %v1323
        %v1325 = vcombine.low %v1300, %v1308
        %v1326 = vcombine.high %v1300, %v1308
        %v1328 = vunpack.c.l.s4 1934713408
        %v1329 = vunpack.c.0.s8 %v1328
        %v1330 = vlaneseq
        %v1331 = vshrl.u32 %v1330, 7
        %v1332 = vsub.s32 %v1329, %v1331
        %v1333 = vrot.slane %v1325, %v1332
        %v1335 = vunpack.c.l.s4 1934713408
        %v1336 = vunpack.c.0.s8 %v1335
        %v1337 = vlaneseq
        %v1338 = vshrl.u32 %v1337, 7
        %v1339 = vsub.s32 %v1336, %v1338
        %v1340 = vrot.slane %v1326, %v1339
        %v1341 = vcombine.low %v1316, %v1324
        %v1342 = vcombine.high %v1316, %v1324
        %v1344 = vunpack.c.l.s4 1934713408
        %v1345 = vunpack.c.0.s8 %v1344
        %v1346 = vlaneseq
        %v1347 = vshrl.u32 %v1346, 7
        %v1348 = vsub.s32 %v1345, %v1347
        %v1349 = vrot.slane %v1341, %v1348
        %v1351 = vunpack.c.l.s4 1934713408
        %v1352 = vunpack.c.0.s8 %v1351
        %v1353 = vlaneseq
        %v1354 = vshrl.u32 %v1353, 7
        %v1355 = vsub.s32 %v1352, %v1354
        %v1356 = vrot.slane %v1342, %v1355
        %v1357 = vcombine.low %v1333, %v1349
        %v1358 = vcombine.high %v1333, %v1349
        %v1359 = vcombine.low %v1340, %v1356
        %v1360 = vcombine.high %v1340, %v1356
        %v1361 = vpack.c.bf16 %v1289, %v1289
        %v1362 = vpack.c.bf16 %v1290, %v1290
        %v1363 = vpack.c.bf16 %v1291, %v1291
        %v1364 = vpack.c.bf16 %v1292, %v1292
        %v1365 = vpack.c.bf16 %v1357, %v1357
        %v1366 = vpack.c.bf16 %v1358, %v1358
        %v1367 = vpack.c.bf16 %v1359, %v1359
        %v1368 = vpack.c.bf16 %v1360, %v1360
        %1369 = vrot.lane.b32.xlu0 %v759, 64
        %v1370 = vpop.permute.xlu0 %1369
        %1371 = vrot.lane.b32.xlu0 %v762, 64
        %v1372 = vpop.permute.xlu0 %1371
        %1373 = vrot.lane.b32.xlu0 %v768, 64
        %v1374 = vpop.permute.xlu0 %1373
        %1375 = vrot.lane.b32.xlu0 %v770, 64
        %v1376 = vpop.permute.xlu0 %1375
        %1377 = vrot.lane.b32.xlu0 %v774, 64
        %v1378 = vpop.permute.xlu0 %1377
        %1379 = vrot.lane.b32.xlu0 %v776, 64
        %v1380 = vpop.permute.xlu0 %1379
        %1381 = vrot.lane.b32.xlu0 %v780, 64
        %v1382 = vpop.permute.xlu0 %1381
        %1383 = vrot.lane.b32.xlu0 %v782, 64
        %v1384 = vpop.permute.xlu0 %1383
        %v1393 = vcombine.low %v1370, %v1378
        %v1394 = vcombine.high %v1370, %v1378
        %v1396 = vunpack.c.l.s4 1983009808
        %v1397 = vunpack.c.0.s8 %v1396
        %v1398 = vlaneseq
        %v1399 = vshrl.u32 %v1398, 7
        %v1400 = vsub.s32 %v1397, %v1399
        %v1401 = vrot.slane %v1393, %v1400
        %v1403 = vunpack.c.l.s4 1983009808
        %v1404 = vunpack.c.0.s8 %v1403
        %v1405 = vlaneseq
        %v1406 = vshrl.u32 %v1405, 7
        %v1407 = vsub.s32 %v1404, %v1406
        %v1408 = vrot.slane %v1394, %v1407
        %v1409 = vcombine.low %v1374, %v1382
        %v1410 = vcombine.high %v1374, %v1382
        %v1412 = vunpack.c.l.s4 1983009808
        %v1413 = vunpack.c.0.s8 %v1412
        %v1414 = vlaneseq
        %v1415 = vshrl.u32 %v1414, 7
        %v1416 = vsub.s32 %v1413, %v1415
        %v1417 = vrot.slane %v1409, %v1416
        %v1419 = vunpack.c.l.s4 1983009808
        %v1420 = vunpack.c.0.s8 %v1419
        %v1421 = vlaneseq
        %v1422 = vshrl.u32 %v1421, 7
        %v1423 = vsub.s32 %v1420, %v1422
        %v1424 = vrot.slane %v1410, %v1423
        %v1425 = vcombine.low %v1401, %v1417
        %v1426 = vcombine.high %v1401, %v1417
        %v1428 = vunpack.c.l.s4 1934713408
        %v1429 = vunpack.c.0.s8 %v1428
        %v1430 = vlaneseq
        %v1431 = vshrl.u32 %v1430, 7
        %v1432 = vsub.s32 %v1429, %v1431
        %v1433 = vrot.slane %v1425, %v1432
        %v1435 = vunpack.c.l.s4 1934713408
        %v1436 = vunpack.c.0.s8 %v1435
        %v1437 = vlaneseq
        %v1438 = vshrl.u32 %v1437, 7
        %v1439 = vsub.s32 %v1436, %v1438
        %v1440 = vrot.slane %v1426, %v1439
        %v1441 = vcombine.low %v1408, %v1424
        %v1442 = vcombine.high %v1408, %v1424
        %v1444 = vunpack.c.l.s4 1934713408
        %v1445 = vunpack.c.0.s8 %v1444
        %v1446 = vlaneseq
        %v1447 = vshrl.u32 %v1446, 7
        %v1448 = vsub.s32 %v1445, %v1447
        %v1449 = vrot.slane %v1441, %v1448
        %v1451 = vunpack.c.l.s4 1934713408
        %v1452 = vunpack.c.0.s8 %v1451
        %v1453 = vlaneseq
        %v1454 = vshrl.u32 %v1453, 7
        %v1455 = vsub.s32 %v1452, %v1454
        %v1456 = vrot.slane %v1442, %v1455
        %v1457 = vcombine.high %v1433, 0.0
        %v1458 = vcombine.high %v1440, 0.0
        %v1459 = vcombine.high %v1449, 0.0
        %v1460 = vcombine.high %v1456, 0.0
        %v1461 = vcombine.low %v1372, %v1380
        %v1462 = vcombine.high %v1372, %v1380
        %v1464 = vunpack.c.l.s4 1983009808
        %v1465 = vunpack.c.0.s8 %v1464
        %v1466 = vlaneseq
        %v1467 = vshrl.u32 %v1466, 7
        %v1468 = vsub.s32 %v1465, %v1467
        %v1469 = vrot.slane %v1461, %v1468
        %v1471 = vunpack.c.l.s4 1983009808
        %v1472 = vunpack.c.0.s8 %v1471
        %v1473 = vlaneseq
        %v1474 = vshrl.u32 %v1473, 7
        %v1475 = vsub.s32 %v1472, %v1474
        %v1476 = vrot.slane %v1462, %v1475
        %v1477 = vcombine.low %v1376, %v1384
        %v1478 = vcombine.high %v1376, %v1384
        %v1480 = vunpack.c.l.s4 1983009808
        %v1481 = vunpack.c.0.s8 %v1480
        %v1482 = vlaneseq
        %v1483 = vshrl.u32 %v1482, 7
        %v1484 = vsub.s32 %v1481, %v1483
        %v1485 = vrot.slane %v1477, %v1484
        %v1487 = vunpack.c.l.s4 1983009808
        %v1488 = vunpack.c.0.s8 %v1487
        %v1489 = vlaneseq
        %v1490 = vshrl.u32 %v1489, 7
        %v1491 = vsub.s32 %v1488, %v1490
        %v1492 = vrot.slane %v1478, %v1491
        %v1493 = vcombine.low %v1469, %v1485
        %v1494 = vcombine.high %v1469, %v1485
        %v1496 = vunpack.c.l.s4 1934713408
        %v1497 = vunpack.c.0.s8 %v1496
        %v1498 = vlaneseq
        %v1499 = vshrl.u32 %v1498, 7
        %v1500 = vsub.s32 %v1497, %v1499
        %v1501 = vrot.slane %v1493, %v1500
        %v1503 = vunpack.c.l.s4 1934713408
        %v1504 = vunpack.c.0.s8 %v1503
        %v1505 = vlaneseq
        %v1506 = vshrl.u32 %v1505, 7
        %v1507 = vsub.s32 %v1504, %v1506
        %v1508 = vrot.slane %v1494, %v1507
        %v1509 = vcombine.low %v1476, %v1492
        %v1510 = vcombine.high %v1476, %v1492
        %v1512 = vunpack.c.l.s4 1934713408
        %v1513 = vunpack.c.0.s8 %v1512
        %v1514 = vlaneseq
        %v1515 = vshrl.u32 %v1514, 7
        %v1516 = vsub.s32 %v1513, %v1515
        %v1517 = vrot.slane %v1509, %v1516
        %v1519 = vunpack.c.l.s4 1934713408
        %v1520 = vunpack.c.0.s8 %v1519
        %v1521 = vlaneseq
        %v1522 = vshrl.u32 %v1521, 7
        %v1523 = vsub.s32 %v1520, %v1522
        %v1524 = vrot.slane %v1510, %v1523
        %v1525 = vcombine.high %v1501, 0.0
        %v1526 = vcombine.high %v1508, 0.0
        %v1527 = vcombine.high %v1517, 0.0
        %v1528 = vcombine.high %v1524, 0.0
        %v1529 = vcombine.low %v1433, %v1440
        %v1531 = vunpack.c.l.s4 1983009808
        %v1532 = vunpack.c.0.s8 %v1531
        %v1533 = vlaneseq
        %v1534 = vshrl.u32 %v1533, 7
        %v1535 = vsub.s32 %v1532, %v1534
        %v1536 = vrot.slane %v1529, %v1535
        %v1537 = vcombine.low %v1457, %v1458
        %v1539 = vunpack.c.l.s4 1983009808
        %v1540 = vunpack.c.0.s8 %v1539
        %v1541 = vlaneseq
        %v1542 = vshrl.u32 %v1541, 7
        %v1543 = vsub.s32 %v1540, %v1542
        %v1544 = vrot.slane %v1537, %v1543
        %v1545 = vcombine.low %v1449, %v1456
        %v1547 = vunpack.c.l.s4 1983009808
        %v1548 = vunpack.c.0.s8 %v1547
        %v1549 = vlaneseq
        %v1550 = vshrl.u32 %v1549, 7
        %v1551 = vsub.s32 %v1548, %v1550
        %v1552 = vrot.slane %v1545, %v1551
        %v1553 = vcombine.low %v1459, %v1460
        %v1555 = vunpack.c.l.s4 1983009808
        %v1556 = vunpack.c.0.s8 %v1555
        %v1557 = vlaneseq
        %v1558 = vshrl.u32 %v1557, 7
        %v1559 = vsub.s32 %v1556, %v1558
        %v1560 = vrot.slane %v1553, %v1559
        %v1561 = vcombine.low %v1536, %v1544
        %v1562 = vcombine.high %v1536, %v1544
        %v1564 = vunpack.c.l.s4 1934713408
        %v1565 = vunpack.c.0.s8 %v1564
        %v1566 = vlaneseq
        %v1567 = vshrl.u32 %v1566, 7
        %v1568 = vsub.s32 %v1565, %v1567
        %v1569 = vrot.slane %v1561, %v1568
        %v1571 = vunpack.c.l.s4 1934713408
        %v1572 = vunpack.c.0.s8 %v1571
        %v1573 = vlaneseq
        %v1574 = vshrl.u32 %v1573, 7
        %v1575 = vsub.s32 %v1572, %v1574
        %v1576 = vrot.slane %v1562, %v1575
        %v1577 = vcombine.low %v1552, %v1560
        %v1578 = vcombine.high %v1552, %v1560
        %v1580 = vunpack.c.l.s4 1934713408
        %v1581 = vunpack.c.0.s8 %v1580
        %v1582 = vlaneseq
        %v1583 = vshrl.u32 %v1582, 7
        %v1584 = vsub.s32 %v1581, %v1583
        %v1585 = vrot.slane %v1577, %v1584
        %v1587 = vunpack.c.l.s4 1934713408
        %v1588 = vunpack.c.0.s8 %v1587
        %v1589 = vlaneseq
        %v1590 = vshrl.u32 %v1589, 7
        %v1591 = vsub.s32 %v1588, %v1590
        %v1592 = vrot.slane %v1578, %v1591
        %v1593 = vcombine.low %v1569, %v1585
        %v1594 = vcombine.high %v1569, %v1585
        %v1595 = vcombine.low %v1576, %v1592
        %v1596 = vcombine.high %v1576, %v1592
        %v1597 = vcombine.low %v1501, %v1508
        %v1599 = vunpack.c.l.s4 1983009808
        %v1600 = vunpack.c.0.s8 %v1599
        %v1601 = vlaneseq
        %v1602 = vshrl.u32 %v1601, 7
        %v1603 = vsub.s32 %v1600, %v1602
        %v1604 = vrot.slane %v1597, %v1603
        %v1605 = vcombine.low %v1525, %v1526
        %v1607 = vunpack.c.l.s4 1983009808
        %v1608 = vunpack.c.0.s8 %v1607
        %v1609 = vlaneseq
        %v1610 = vshrl.u32 %v1609, 7
        %v1611 = vsub.s32 %v1608, %v1610
        %v1612 = vrot.slane %v1605, %v1611
        %v1613 = vcombine.low %v1517, %v1524
        %v1615 = vunpack.c.l.s4 1983009808
        %v1616 = vunpack.c.0.s8 %v1615
        %v1617 = vlaneseq
        %v1618 = vshrl.u32 %v1617, 7
        %v1619 = vsub.s32 %v1616, %v1618
        %v1620 = vrot.slane %v1613, %v1619
        %v1621 = vcombine.low %v1527, %v1528
        %v1623 = vunpack.c.l.s4 1983009808
        %v1624 = vunpack.c.0.s8 %v1623
        %v1625 = vlaneseq
        %v1626 = vshrl.u32 %v1625, 7
        %v1627 = vsub.s32 %v1624, %v1626
        %v1628 = vrot.slane %v1621, %v1627
        %v1629 = vcombine.low %v1604, %v1612
        %v1630 = vcombine.high %v1604, %v1612
        %v1632 = vunpack.c.l.s4 1934713408
        %v1633 = vunpack.c.0.s8 %v1632
        %v1634 = vlaneseq
        %v1635 = vshrl.u32 %v1634, 7
        %v1636 = vsub.s32 %v1633, %v1635
        %v1637 = vrot.slane %v1629, %v1636
        %v1639 = vunpack.c.l.s4 1934713408
        %v1640 = vunpack.c.0.s8 %v1639
        %v1641 = vlaneseq
        %v1642 = vshrl.u32 %v1641, 7
        %v1643 = vsub.s32 %v1640, %v1642
        %v1644 = vrot.slane %v1630, %v1643
        %v1645 = vcombine.low %v1620, %v1628
        %v1646 = vcombine.high %v1620, %v1628
        %v1648 = vunpack.c.l.s4 1934713408
        %v1649 = vunpack.c.0.s8 %v1648
        %v1650 = vlaneseq
        %v1651 = vshrl.u32 %v1650, 7
        %v1652 = vsub.s32 %v1649, %v1651
        %v1653 = vrot.slane %v1645, %v1652
        %v1655 = vunpack.c.l.s4 1934713408
        %v1656 = vunpack.c.0.s8 %v1655
        %v1657 = vlaneseq
        %v1658 = vshrl.u32 %v1657, 7
        %v1659 = vsub.s32 %v1656, %v1658
        %v1660 = vrot.slane %v1646, %v1659
        %v1661 = vcombine.low %v1637, %v1653
        %v1662 = vcombine.high %v1637, %v1653
        %v1663 = vcombine.low %v1644, %v1660
        %v1664 = vcombine.high %v1644, %v1660
        %v1665 = vpack.c.bf16 %v1593, %v1593
        %v1666 = vpack.c.bf16 %v1594, %v1594
        %v1667 = vpack.c.bf16 %v1595, %v1595
        %v1668 = vpack.c.bf16 %v1596, %v1596
        %v1669 = vpack.c.bf16 %v1661, %v1661
        %v1670 = vpack.c.bf16 %v1662, %v1662
        %v1671 = vpack.c.bf16 %v1663, %v1663
        %v1672 = vpack.c.bf16 %v1664, %v1664
        %vm1673 = vcmask 64512
        %v1675 = vsel %vm1673, %v1057, 0
        %v1678 = vsel %vm1673, %v1361, 0
        %1680 = vmatprep.subr.bf16.mxu0 0
        %1681 = vmatpush1.bf16.xpose.msra.mxu0 0
        %1682 = vmatprep.subr.bf16.mxu0 0
        %1683 = vmatpush1.bf16.xpose.msra.mxu0 0
        %1684 = vmatprep.subr.bf16.mxu0 0
        %1685 = vmatpush1.bf16.xpose.msra.mxu0 0
        %1686 = vmatprep.subr.bf16.mxu0 0
        %1687 = vmatpush1.bf16.xpose.msra.mxu0 0
        %1688 = vmatprep.subr.bf16.mxu0 0
        %1689 = vmatpush1.bf16.xpose.msra.mxu0 0
        %1690 = vmatprep.subr.bf16.mxu0 0
        %1691 = vmatpush1.bf16.xpose.msra.mxu0 0
        %1692 = vmatprep.subr.bf16.mxu0 0
        %1693 = vmatpush1.bf16.xpose.msra.mxu0 0
        %1694 = vmatprep.subr.bf16.mxu0 0
        %1695 = vmatpush1.bf16.xpose.msra.mxu0 %v1678
        %1696 = vmatprep.subr.bf16.mxu0 0
        %1697 = vmatpush2.bf16.xpose.msra.mxu0 0
        %1698 = vmatprep.subr.bf16.mxu0 0
        %1699 = vmatpush2.bf16.xpose.msra.mxu0 0
        %1700 = vmatprep.subr.bf16.mxu0 0
        %1701 = vmatpush2.bf16.xpose.msra.mxu0 0
        %1702 = vmatprep.subr.bf16.mxu0 0
        %1703 = vmatpush2.bf16.xpose.msra.mxu0 0
        %1704 = vmatprep.subr.bf16.mxu0 0
        %1705 = vmatpush2.bf16.xpose.msra.mxu0 0
        %1706 = vmatprep.subr.bf16.mxu0 0
        %1707 = vmatpush2.bf16.xpose.msra.mxu0 0
        %1708 = vmatprep.subr.bf16.mxu0 0
        %1709 = vmatpush2.bf16.xpose.msra.mxu0 0
        %1710 = vmatprep.subr.bf16.mxu0 0
        %1711 = vmatpush2.bf16.xpose.msra.mxu0 0
        %1712 = vmatprep.mubr.bf16.mxu0 0
        %1713 = vmatmul.mubr.bf16.gmra.mxu0 %v1675
        %v1714 = vpop.f32.mrf.mxu0
        %v1715 = vadd.f32 0.0, %v1714
        %v1716 = vpop.f32.mrf.mxu0
        %v1717 = vpop.f32.mrf.mxu0
        %v1718 = vpop.f32.mrf.mxu0
        %1719 = vdwg.mxu0
        %v1721 = vsel %vm1673, %v1058, 0
        %v1724 = vsel %vm1673, %v1362, 0
        %1726 = vmatprep.subr.bf16.mxu0 0
        %1727 = vmatpush1.bf16.xpose.msra.mxu0 0
        %1728 = vmatprep.subr.bf16.mxu0 0
        %1729 = vmatpush1.bf16.xpose.msra.mxu0 0
        %1730 = vmatprep.subr.bf16.mxu0 0
        %1731 = vmatpush1.bf16.xpose.msra.mxu0 0
        %1732 = vmatprep.subr.bf16.mxu0 0
        %1733 = vmatpush1.bf16.xpose.msra.mxu0 0
        %1734 = vmatprep.subr.bf16.mxu0 0
        %1735 = vmatpush1.bf16.xpose.msra.mxu0 0
        %1736 = vmatprep.subr.bf16.mxu0 0
        %1737 = vmatpush1.bf16.xpose.msra.mxu0 0
        %1738 = vmatprep.subr.bf16.mxu0 0
        %1739 = vmatpush1.bf16.xpose.msra.mxu0 0
        %1740 = vmatprep.subr.bf16.mxu0 0
        %1741 = vmatpush1.bf16.xpose.msra.mxu0 %v1724
        %1742 = vmatprep.subr.bf16.mxu0 0
        %1743 = vmatpush2.bf16.xpose.msra.mxu0 0
        %1744 = vmatprep.subr.bf16.mxu0 0
        %1745 = vmatpush2.bf16.xpose.msra.mxu0 0
        %1746 = vmatprep.subr.bf16.mxu0 0
        %1747 = vmatpush2.bf16.xpose.msra.mxu0 0
        %1748 = vmatprep.subr.bf16.mxu0 0
        %1749 = vmatpush2.bf16.xpose.msra.mxu0 0
        %1750 = vmatprep.subr.bf16.mxu0 0
        %1751 = vmatpush2.bf16.xpose.msra.mxu0 0
        %1752 = vmatprep.subr.bf16.mxu0 0
        %1753 = vmatpush2.bf16.xpose.msra.mxu0 0
        %1754 = vmatprep.subr.bf16.mxu0 0
        %1755 = vmatpush2.bf16.xpose.msra.mxu0 0
        %1756 = vmatprep.subr.bf16.mxu0 0
        %1757 = vmatpush2.bf16.xpose.msra.mxu0 0
        %1758 = vmatprep.mubr.bf16.mxu0 0
        %1759 = vmatmul.mubr.bf16.gmra.mxu0 %v1721
        %v1760 = vpop.f32.mrf.mxu0
        %v1761 = vadd.f32 0.0, %v1760
        %v1762 = vpop.f32.mrf.mxu0
        %v1763 = vpop.f32.mrf.mxu0
        %v1764 = vpop.f32.mrf.mxu0
        %1765 = vdwg.mxu0
        %v1767 = vsel %vm1673, %v1059, 0
        %v1770 = vsel %vm1673, %v1363, 0
        %1772 = vmatprep.subr.bf16.mxu0 0
        %1773 = vmatpush1.bf16.xpose.msra.mxu0 0
        %1774 = vmatprep.subr.bf16.mxu0 0
        %1775 = vmatpush1.bf16.xpose.msra.mxu0 0
        %1776 = vmatprep.subr.bf16.mxu0 0
        %1777 = vmatpush1.bf16.xpose.msra.mxu0 0
        %1778 = vmatprep.subr.bf16.mxu0 0
        %1779 = vmatpush1.bf16.xpose.msra.mxu0 0
        %1780 = vmatprep.subr.bf16.mxu0 0
        %1781 = vmatpush1.bf16.xpose.msra.mxu0 0
        %1782 = vmatprep.subr.bf16.mxu0 0
        %1783 = vmatpush1.bf16.xpose.msra.mxu0 0
        %1784 = vmatprep.subr.bf16.mxu0 0
        %1785 = vmatpush1.bf16.xpose.msra.mxu0 0
        %1786 = vmatprep.subr.bf16.mxu0 0
        %1787 = vmatpush1.bf16.xpose.msra.mxu0 %v1770
        %1788 = vmatprep.subr.bf16.mxu0 0
        %1789 = vmatpush2.bf16.xpose.msra.mxu0 0
        %1790 = vmatprep.subr.bf16.mxu0 0
        %1791 = vmatpush2.bf16.xpose.msra.mxu0 0
        %1792 = vmatprep.subr.bf16.mxu0 0
        %1793 = vmatpush2.bf16.xpose.msra.mxu0 0
        %1794 = vmatprep.subr.bf16.mxu0 0
        %1795 = vmatpush2.bf16.xpose.msra.mxu0 0
        %1796 = vmatprep.subr.bf16.mxu0 0
        %1797 = vmatpush2.bf16.xpose.msra.mxu0 0
        %1798 = vmatprep.subr.bf16.mxu0 0
        %1799 = vmatpush2.bf16.xpose.msra.mxu0 0
        %1800 = vmatprep.subr.bf16.mxu0 0
        %1801 = vmatpush2.bf16.xpose.msra.mxu0 0
        %1802 = vmatprep.subr.bf16.mxu0 0
        %1803 = vmatpush2.bf16.xpose.msra.mxu0 0
        %1804 = vmatprep.mubr.bf16.mxu0 0
        %1805 = vmatmul.mubr.bf16.gmra.mxu0 %v1767
        %v1806 = vpop.f32.mrf.mxu0
        %v1807 = vadd.f32 0.0, %v1806
        %v1808 = vpop.f32.mrf.mxu0
        %v1809 = vpop.f32.mrf.mxu0
        %v1810 = vpop.f32.mrf.mxu0
        %1811 = vdwg.mxu0
        %v1813 = vsel %vm1673, %v1060, 0
        %v1816 = vsel %vm1673, %v1364, 0
        %1818 = vmatprep.subr.bf16.mxu0 0
        %1819 = vmatpush1.bf16.xpose.msra.mxu0 0
        %1820 = vmatprep.subr.bf16.mxu0 0
        %1821 = vmatpush1.bf16.xpose.msra.mxu0 0
        %1822 = vmatprep.subr.bf16.mxu0 0
        %1823 = vmatpush1.bf16.xpose.msra.mxu0 0
        %1824 = vmatprep.subr.bf16.mxu0 0
        %1825 = vmatpush1.bf16.xpose.msra.mxu0 0
        %1826 = vmatprep.subr.bf16.mxu0 0
        %1827 = vmatpush1.bf16.xpose.msra.mxu0 0
        %1828 = vmatprep.subr.bf16.mxu0 0
        %1829 = vmatpush1.bf16.xpose.msra.mxu0 0
        %1830 = vmatprep.subr.bf16.mxu0 0
        %1831 = vmatpush1.bf16.xpose.msra.mxu0 0
        %1832 = vmatprep.subr.bf16.mxu0 0
        %1833 = vmatpush1.bf16.xpose.msra.mxu0 %v1816
        %1834 = vmatprep.subr.bf16.mxu0 0
        %1835 = vmatpush2.bf16.xpose.msra.mxu0 0
        %1836 = vmatprep.subr.bf16.mxu0 0
        %1837 = vmatpush2.bf16.xpose.msra.mxu0 0
        %1838 = vmatprep.subr.bf16.mxu0 0
        %1839 = vmatpush2.bf16.xpose.msra.mxu0 0
        %1840 = vmatprep.subr.bf16.mxu0 0
        %1841 = vmatpush2.bf16.xpose.msra.mxu0 0
        %1842 = vmatprep.subr.bf16.mxu0 0
        %1843 = vmatpush2.bf16.xpose.msra.mxu0 0
        %1844 = vmatprep.subr.bf16.mxu0 0
        %1845 = vmatpush2.bf16.xpose.msra.mxu0 0
        %1846 = vmatprep.subr.bf16.mxu0 0
        %1847 = vmatpush2.bf16.xpose.msra.mxu0 0
        %1848 = vmatprep.subr.bf16.mxu0 0
        %1849 = vmatpush2.bf16.xpose.msra.mxu0 0
        %1850 = vmatprep.mubr.bf16.mxu0 0
        %1851 = vmatmul.mubr.bf16.gmra.mxu0 %v1813
        %v1852 = vpop.f32.mrf.mxu0
        %v1853 = vadd.f32 0.0, %v1852
        %v1854 = vpop.f32.mrf.mxu0
        %v1855 = vpop.f32.mrf.mxu0
        %v1856 = vpop.f32.mrf.mxu0
        %1857 = vdwg.mxu0
        %v1859 = vsel %vm1673, %v1061, 0
        %v1862 = vsel %vm1673, %v1365, 0
        %1864 = vmatprep.subr.bf16.mxu0 0
        %1865 = vmatpush1.bf16.xpose.msra.mxu0 0
        %1866 = vmatprep.subr.bf16.mxu0 0
        %1867 = vmatpush1.bf16.xpose.msra.mxu0 0
        %1868 = vmatprep.subr.bf16.mxu0 0
        %1869 = vmatpush1.bf16.xpose.msra.mxu0 0
        %1870 = vmatprep.subr.bf16.mxu0 0
        %1871 = vmatpush1.bf16.xpose.msra.mxu0 0
        %1872 = vmatprep.subr.bf16.mxu0 0
        %1873 = vmatpush1.bf16.xpose.msra.mxu0 0
        %1874 = vmatprep.subr.bf16.mxu0 0
        %1875 = vmatpush1.bf16.xpose.msra.mxu0 0
        %1876 = vmatprep.subr.bf16.mxu0 0
        %1877 = vmatpush1.bf16.xpose.msra.mxu0 0
        %1878 = vmatprep.subr.bf16.mxu0 0
        %1879 = vmatpush1.bf16.xpose.msra.mxu0 %v1862
        %1880 = vmatprep.subr.bf16.mxu0 0
        %1881 = vmatpush2.bf16.xpose.msra.mxu0 0
        %1882 = vmatprep.subr.bf16.mxu0 0
        %1883 = vmatpush2.bf16.xpose.msra.mxu0 0
        %1884 = vmatprep.subr.bf16.mxu0 0
        %1885 = vmatpush2.bf16.xpose.msra.mxu0 0
        %1886 = vmatprep.subr.bf16.mxu0 0
        %1887 = vmatpush2.bf16.xpose.msra.mxu0 0
        %1888 = vmatprep.subr.bf16.mxu0 0
        %1889 = vmatpush2.bf16.xpose.msra.mxu0 0
        %1890 = vmatprep.subr.bf16.mxu0 0
        %1891 = vmatpush2.bf16.xpose.msra.mxu0 0
        %1892 = vmatprep.subr.bf16.mxu0 0
        %1893 = vmatpush2.bf16.xpose.msra.mxu0 0
        %1894 = vmatprep.subr.bf16.mxu0 0
        %1895 = vmatpush2.bf16.xpose.msra.mxu0 0
        %1896 = vmatprep.mubr.bf16.mxu0 0
        %1897 = vmatmul.mubr.bf16.gmra.mxu0 %v1859
        %v1898 = vpop.f32.mrf.mxu0
        %v1899 = vadd.f32 0.0, %v1898
        %v1900 = vpop.f32.mrf.mxu0
        %v1901 = vpop.f32.mrf.mxu0
        %v1902 = vpop.f32.mrf.mxu0
        %1903 = vdwg.mxu0
        %v1905 = vsel %vm1673, %v1062, 0
        %v1908 = vsel %vm1673, %v1366, 0
        %1910 = vmatprep.subr.bf16.mxu0 0
        %1911 = vmatpush1.bf16.xpose.msra.mxu0 0
        %1912 = vmatprep.subr.bf16.mxu0 0
        %1913 = vmatpush1.bf16.xpose.msra.mxu0 0
        %1914 = vmatprep.subr.bf16.mxu0 0
        %1915 = vmatpush1.bf16.xpose.msra.mxu0 0
        %1916 = vmatprep.subr.bf16.mxu0 0
        %1917 = vmatpush1.bf16.xpose.msra.mxu0 0
        %1918 = vmatprep.subr.bf16.mxu0 0
        %1919 = vmatpush1.bf16.xpose.msra.mxu0 0
        %1920 = vmatprep.subr.bf16.mxu0 0
        %1921 = vmatpush1.bf16.xpose.msra.mxu0 0
        %1922 = vmatprep.subr.bf16.mxu0 0
        %1923 = vmatpush1.bf16.xpose.msra.mxu0 0
        %1924 = vmatprep.subr.bf16.mxu0 0
        %1925 = vmatpush1.bf16.xpose.msra.mxu0 %v1908
        %1926 = vmatprep.subr.bf16.mxu0 0
        %1927 = vmatpush2.bf16.xpose.msra.mxu0 0
        %1928 = vmatprep.subr.bf16.mxu0 0
        %1929 = vmatpush2.bf16.xpose.msra.mxu0 0
        %1930 = vmatprep.subr.bf16.mxu0 0
        %1931 = vmatpush2.bf16.xpose.msra.mxu0 0
        %1932 = vmatprep.subr.bf16.mxu0 0
        %1933 = vmatpush2.bf16.xpose.msra.mxu0 0
        %1934 = vmatprep.subr.bf16.mxu0 0
        %1935 = vmatpush2.bf16.xpose.msra.mxu0 0
        %1936 = vmatprep.subr.bf16.mxu0 0
        %1937 = vmatpush2.bf16.xpose.msra.mxu0 0
        %1938 = vmatprep.subr.bf16.mxu0 0
        %1939 = vmatpush2.bf16.xpose.msra.mxu0 0
        %1940 = vmatprep.subr.bf16.mxu0 0
        %1941 = vmatpush2.bf16.xpose.msra.mxu0 0
        %1942 = vmatprep.mubr.bf16.mxu0 0
        %1943 = vmatmul.mubr.bf16.gmra.mxu0 %v1905
        %v1944 = vpop.f32.mrf.mxu0
        %v1945 = vadd.f32 0.0, %v1944
        %v1946 = vpop.f32.mrf.mxu0
        %v1947 = vpop.f32.mrf.mxu0
        %v1948 = vpop.f32.mrf.mxu0
        %1949 = vdwg.mxu0
        %v1951 = vsel %vm1673, %v1063, 0
        %v1954 = vsel %vm1673, %v1367, 0
        %1956 = vmatprep.subr.bf16.mxu0 0
        %1957 = vmatpush1.bf16.xpose.msra.mxu0 0
        %1958 = vmatprep.subr.bf16.mxu0 0
        %1959 = vmatpush1.bf16.xpose.msra.mxu0 0
        %1960 = vmatprep.subr.bf16.mxu0 0
        %1961 = vmatpush1.bf16.xpose.msra.mxu0 0
        %1962 = vmatprep.subr.bf16.mxu0 0
        %1963 = vmatpush1.bf16.xpose.msra.mxu0 0
        %1964 = vmatprep.subr.bf16.mxu0 0
        %1965 = vmatpush1.bf16.xpose.msra.mxu0 0
        %1966 = vmatprep.subr.bf16.mxu0 0
        %1967 = vmatpush1.bf16.xpose.msra.mxu0 0
        %1968 = vmatprep.subr.bf16.mxu0 0
        %1969 = vmatpush1.bf16.xpose.msra.mxu0 0
        %1970 = vmatprep.subr.bf16.mxu0 0
        %1971 = vmatpush1.bf16.xpose.msra.mxu0 %v1954
        %1972 = vmatprep.subr.bf16.mxu0 0
        %1973 = vmatpush2.bf16.xpose.msra.mxu0 0
        %1974 = vmatprep.subr.bf16.mxu0 0
        %1975 = vmatpush2.bf16.xpose.msra.mxu0 0
        %1976 = vmatprep.subr.bf16.mxu0 0
        %1977 = vmatpush2.bf16.xpose.msra.mxu0 0
        %1978 = vmatprep.subr.bf16.mxu0 0
        %1979 = vmatpush2.bf16.xpose.msra.mxu0 0
        %1980 = vmatprep.subr.bf16.mxu0 0
        %1981 = vmatpush2.bf16.xpose.msra.mxu0 0
        %1982 = vmatprep.subr.bf16.mxu0 0
        %1983 = vmatpush2.bf16.xpose.msra.mxu0 0
        %1984 = vmatprep.subr.bf16.mxu0 0
        %1985 = vmatpush2.bf16.xpose.msra.mxu0 0
        %1986 = vmatprep.subr.bf16.mxu0 0
        %1987 = vmatpush2.bf16.xpose.msra.mxu0 0
        %1988 = vmatprep.mubr.bf16.mxu0 0
        %1989 = vmatmul.mubr.bf16.gmra.mxu0 %v1951
        %v1990 = vpop.f32.mrf.mxu0
        %v1991 = vadd.f32 0.0, %v1990
        %v1992 = vpop.f32.mrf.mxu0
        %v1993 = vpop.f32.mrf.mxu0
        %v1994 = vpop.f32.mrf.mxu0
        %1995 = vdwg.mxu0
        %v1997 = vsel %vm1673, %v1064, 0
        %v2000 = vsel %vm1673, %v1368, 0
        %2002 = vmatprep.subr.bf16.mxu0 0
        %2003 = vmatpush1.bf16.xpose.msra.mxu0 0
        %2004 = vmatprep.subr.bf16.mxu0 0
        %2005 = vmatpush1.bf16.xpose.msra.mxu0 0
        %2006 = vmatprep.subr.bf16.mxu0 0
        %2007 = vmatpush1.bf16.xpose.msra.mxu0 0
        %2008 = vmatprep.subr.bf16.mxu0 0
        %2009 = vmatpush1.bf16.xpose.msra.mxu0 0
        %2010 = vmatprep.subr.bf16.mxu0 0
        %2011 = vmatpush1.bf16.xpose.msra.mxu0 0
        %2012 = vmatprep.subr.bf16.mxu0 0
        %2013 = vmatpush1.bf16.xpose.msra.mxu0 0
        %2014 = vmatprep.subr.bf16.mxu0 0
        %2015 = vmatpush1.bf16.xpose.msra.mxu0 0
        %2016 = vmatprep.subr.bf16.mxu0 0
        %2017 = vmatpush1.bf16.xpose.msra.mxu0 %v2000
        %2018 = vmatprep.subr.bf16.mxu0 0
        %2019 = vmatpush2.bf16.xpose.msra.mxu0 0
        %2020 = vmatprep.subr.bf16.mxu0 0
        %2021 = vmatpush2.bf16.xpose.msra.mxu0 0
        %2022 = vmatprep.subr.bf16.mxu0 0
        %2023 = vmatpush2.bf16.xpose.msra.mxu0 0
        %2024 = vmatprep.subr.bf16.mxu0 0
        %2025 = vmatpush2.bf16.xpose.msra.mxu0 0
        %2026 = vmatprep.subr.bf16.mxu0 0
        %2027 = vmatpush2.bf16.xpose.msra.mxu0 0
        %2028 = vmatprep.subr.bf16.mxu0 0
        %2029 = vmatpush2.bf16.xpose.msra.mxu0 0
        %2030 = vmatprep.subr.bf16.mxu0 0
        %2031 = vmatpush2.bf16.xpose.msra.mxu0 0
        %2032 = vmatprep.subr.bf16.mxu0 0
        %2033 = vmatpush2.bf16.xpose.msra.mxu0 0
        %2034 = vmatprep.mubr.bf16.mxu0 0
        %2035 = vmatmul.mubr.bf16.gmra.mxu0 %v1997
        %v2036 = vpop.f32.mrf.mxu0
        %v2037 = vadd.f32 0.0, %v2036
        %v2038 = vpop.f32.mrf.mxu0
        %v2039 = vpop.f32.mrf.mxu0
        %v2040 = vpop.f32.mrf.mxu0
        %2041 = vdwg.mxu0
        %v2042 = vsel %vm1673, %v1715, -inf
        %2043 = vmax.xlane.f32.xlu0 %v2042
        %v2044 = vpop.xlane.xlu0 %2043
        %v2045 = vsel %vm1673, %v1761, -inf
        %2046 = vmax.xlane.f32.xlu0 %v2045
        %v2047 = vpop.xlane.xlu0 %2046
        %v2048 = vsel %vm1673, %v1807, -inf
        %2049 = vmax.xlane.f32.xlu0 %v2048
        %v2050 = vpop.xlane.xlu0 %2049
        %v2051 = vsel %vm1673, %v1853, -inf
        %2052 = vmax.xlane.f32.xlu0 %v2051
        %v2053 = vpop.xlane.xlu0 %2052
        %v2054 = vsel %vm1673, %v1899, -inf
        %2055 = vmax.xlane.f32.xlu0 %v2054
        %v2056 = vpop.xlane.xlu0 %2055
        %v2057 = vsel %vm1673, %v1945, -inf
        %2058 = vmax.xlane.f32.xlu0 %v2057
        %v2059 = vpop.xlane.xlu0 %2058
        %v2060 = vsel %vm1673, %v1991, -inf
        %2061 = vmax.xlane.f32.xlu0 %v2060
        %v2062 = vpop.xlane.xlu0 %2061
        %v2063 = vsel %vm1673, %v2037, -inf
        %2064 = vmax.xlane.f32.xlu0 %v2063
        %v2065 = vpop.xlane.xlu0 %2064
        %v2066 = vsub.f32 %v1715, %v2044
        %v2067 = vsub.f32 %v1761, %v2047
        %v2068 = vsub.f32 %v1807, %v2050
        %v2069 = vsub.f32 %v1853, %v2053
        %v2070 = vsub.f32 %v1899, %v2056
        %v2071 = vsub.f32 %v1945, %v2059
        %v2072 = vsub.f32 %v1991, %v2062
        %v2073 = vsub.f32 %v2037, %v2065
        %v2074 = vmul.f32 %v2066, 1.442695
        %v2075 = vpow.pop %v2074
        %v2076 = vmul.f32 %v2067, 1.442695
        %v2077 = vpow.pop %v2076
        %v2078 = vmul.f32 %v2068, 1.442695
        %v2079 = vpow.pop %v2078
        %v2080 = vmul.f32 %v2069, 1.442695
        %v2081 = vpow.pop %v2080
        %v2082 = vmul.f32 %v2070, 1.442695
        %v2083 = vpow.pop %v2082
        %v2084 = vmul.f32 %v2071, 1.442695
        %v2085 = vpow.pop %v2084
        %v2086 = vmul.f32 %v2072, 1.442695
        %v2087 = vpow.pop %v2086
        %v2088 = vmul.f32 %v2073, 1.442695
        %v2089 = vpow.pop %v2088
        %v2090 = vsel %vm1673, %v2075, 0.0
        %2091 = vadd.xlane.f32.xlu0 %v2090
        %v2092 = vpop.xlane.xlu0 %2091
        %v2093 = vsel %vm1673, %v2077, 0.0
        %2094 = vadd.xlane.f32.xlu0 %v2093
        %v2095 = vpop.xlane.xlu0 %2094
        %v2096 = vsel %vm1673, %v2079, 0.0
        %2097 = vadd.xlane.f32.xlu0 %v2096
        %v2098 = vpop.xlane.xlu0 %2097
        %v2099 = vsel %vm1673, %v2081, 0.0
        %2100 = vadd.xlane.f32.xlu0 %v2099
        %v2101 = vpop.xlane.xlu0 %2100
        %v2102 = vsel %vm1673, %v2083, 0.0
        %2103 = vadd.xlane.f32.xlu0 %v2102
        %v2104 = vpop.xlane.xlu0 %2103
        %v2105 = vsel %vm1673, %v2085, 0.0
        %2106 = vadd.xlane.f32.xlu0 %v2105
        %v2107 = vpop.xlane.xlu0 %2106
        %v2108 = vsel %vm1673, %v2087, 0.0
        %2109 = vadd.xlane.f32.xlu0 %v2108
        %v2110 = vpop.xlane.xlu0 %2109
        %v2111 = vsel %vm1673, %v2089, 0.0
        %2112 = vadd.xlane.f32.xlu0 %v2111
        %v2113 = vpop.xlane.xlu0 %2112
        %v2114 = vpack.c.bf16 %v2075, %v2075
        %v2115 = vpack.c.bf16 %v2077, %v2077
        %v2116 = vpack.c.bf16 %v2079, %v2079
        %v2117 = vpack.c.bf16 %v2081, %v2081
        %v2118 = vpack.c.bf16 %v2083, %v2083
        %v2119 = vpack.c.bf16 %v2085, %v2085
        %v2120 = vpack.c.bf16 %v2087, %v2087
        %v2121 = vpack.c.bf16 %v2089, %v2089
        %v2123 = vsel %vm1673, %v2114, 0
        %vm2125 = vcmask 1043456
        %v2127 = vsel %vm2125, %v1665, 0
        %2129 = vmatprep.subr.bf16.mxu0 0
        %2130 = vmatpush1.bf16.msra.mxu0 0
        %2131 = vmatprep.subr.bf16.mxu0 0
        %2132 = vmatpush1.bf16.msra.mxu0 0
        %2133 = vmatprep.subr.bf16.mxu0 0
        %2134 = vmatpush1.bf16.msra.mxu0 0
        %2135 = vmatprep.subr.bf16.mxu0 0
        %2136 = vmatpush1.bf16.msra.mxu0 0
        %2137 = vmatprep.subr.bf16.mxu0 0
        %2138 = vmatpush1.bf16.msra.mxu0 0
        %2139 = vmatprep.subr.bf16.mxu0 0
        %2140 = vmatpush1.bf16.msra.mxu0 0
        %2141 = vmatprep.subr.bf16.mxu0 0
        %2142 = vmatpush1.bf16.msra.mxu0 0
        %2143 = vmatprep.subr.bf16.mxu0 0
        %2144 = vmatpush1.bf16.msra.mxu0 %v2127
        %2145 = vmatprep.subr.bf16.mxu0 0
        %2146 = vmatpush2.bf16.msra.mxu0 0
        %2147 = vmatprep.subr.bf16.mxu0 0
        %2148 = vmatpush2.bf16.msra.mxu0 0
        %2149 = vmatprep.subr.bf16.mxu0 0
        %2150 = vmatpush2.bf16.msra.mxu0 0
        %2151 = vmatprep.subr.bf16.mxu0 0
        %2152 = vmatpush2.bf16.msra.mxu0 0
        %2153 = vmatprep.subr.bf16.mxu0 0
        %2154 = vmatpush2.bf16.msra.mxu0 0
        %2155 = vmatprep.subr.bf16.mxu0 0
        %2156 = vmatpush2.bf16.msra.mxu0 0
        %2157 = vmatprep.subr.bf16.mxu0 0
        %2158 = vmatpush2.bf16.msra.mxu0 0
        %2159 = vmatprep.subr.bf16.mxu0 0
        %2160 = vmatpush2.bf16.msra.mxu0 0
        %2161 = vmatprep.mubr.bf16.mxu0 0
        %2162 = vmatmul.mubr.bf16.gmra.mxu0 %v2123
        %v2163 = vpop.f32.mrf.mxu0
        %v2164 = vadd.f32 0.0, %v2163
        %v2165 = vpop.f32.mrf.mxu0
        %v2166 = vpop.f32.mrf.mxu0
        %v2167 = vpop.f32.mrf.mxu0
        %2168 = vdwg.mxu0
        %v2170 = vsel %vm1673, %v2115, 0
        %v2173 = vsel %vm2125, %v1666, 0
        %2175 = vmatprep.subr.bf16.mxu0 0
        %2176 = vmatpush1.bf16.msra.mxu0 0
        %2177 = vmatprep.subr.bf16.mxu0 0
        %2178 = vmatpush1.bf16.msra.mxu0 0
        %2179 = vmatprep.subr.bf16.mxu0 0
        %2180 = vmatpush1.bf16.msra.mxu0 0
        %2181 = vmatprep.subr.bf16.mxu0 0
        %2182 = vmatpush1.bf16.msra.mxu0 0
        %2183 = vmatprep.subr.bf16.mxu0 0
        %2184 = vmatpush1.bf16.msra.mxu0 0
        %2185 = vmatprep.subr.bf16.mxu0 0
        %2186 = vmatpush1.bf16.msra.mxu0 0
        %2187 = vmatprep.subr.bf16.mxu0 0
        %2188 = vmatpush1.bf16.msra.mxu0 0
        %2189 = vmatprep.subr.bf16.mxu0 0
        %2190 = vmatpush1.bf16.msra.mxu0 %v2173
        %2191 = vmatprep.subr.bf16.mxu0 0
        %2192 = vmatpush2.bf16.msra.mxu0 0
        %2193 = vmatprep.subr.bf16.mxu0 0
        %2194 = vmatpush2.bf16.msra.mxu0 0
        %2195 = vmatprep.subr.bf16.mxu0 0
        %2196 = vmatpush2.bf16.msra.mxu0 0
        %2197 = vmatprep.subr.bf16.mxu0 0
        %2198 = vmatpush2.bf16.msra.mxu0 0
        %2199 = vmatprep.subr.bf16.mxu0 0
        %2200 = vmatpush2.bf16.msra.mxu0 0
        %2201 = vmatprep.subr.bf16.mxu0 0
        %2202 = vmatpush2.bf16.msra.mxu0 0
        %2203 = vmatprep.subr.bf16.mxu0 0
        %2204 = vmatpush2.bf16.msra.mxu0 0
        %2205 = vmatprep.subr.bf16.mxu0 0
        %2206 = vmatpush2.bf16.msra.mxu0 0
        %2207 = vmatprep.mubr.bf16.mxu0 0
        %2208 = vmatmul.mubr.bf16.gmra.mxu0 %v2170
        %v2209 = vpop.f32.mrf.mxu0
        %v2210 = vadd.f32 0.0, %v2209
        %v2211 = vpop.f32.mrf.mxu0
        %v2212 = vpop.f32.mrf.mxu0
        %v2213 = vpop.f32.mrf.mxu0
        %2214 = vdwg.mxu0
        %v2216 = vsel %vm1673, %v2116, 0
        %v2219 = vsel %vm2125, %v1667, 0
        %2221 = vmatprep.subr.bf16.mxu0 0
        %2222 = vmatpush1.bf16.msra.mxu0 0
        %2223 = vmatprep.subr.bf16.mxu0 0
        %2224 = vmatpush1.bf16.msra.mxu0 0
        %2225 = vmatprep.subr.bf16.mxu0 0
        %2226 = vmatpush1.bf16.msra.mxu0 0
        %2227 = vmatprep.subr.bf16.mxu0 0
        %2228 = vmatpush1.bf16.msra.mxu0 0
        %2229 = vmatprep.subr.bf16.mxu0 0
        %2230 = vmatpush1.bf16.msra.mxu0 0
        %2231 = vmatprep.subr.bf16.mxu0 0
        %2232 = vmatpush1.bf16.msra.mxu0 0
        %2233 = vmatprep.subr.bf16.mxu0 0
        %2234 = vmatpush1.bf16.msra.mxu0 0
        %2235 = vmatprep.subr.bf16.mxu0 0
        %2236 = vmatpush1.bf16.msra.mxu0 %v2219
        %2237 = vmatprep.subr.bf16.mxu0 0
        %2238 = vmatpush2.bf16.msra.mxu0 0
        %2239 = vmatprep.subr.bf16.mxu0 0
        %2240 = vmatpush2.bf16.msra.mxu0 0
        %2241 = vmatprep.subr.bf16.mxu0 0
        %2242 = vmatpush2.bf16.msra.mxu0 0
        %2243 = vmatprep.subr.bf16.mxu0 0
        %2244 = vmatpush2.bf16.msra.mxu0 0
        %2245 = vmatprep.subr.bf16.mxu0 0
        %2246 = vmatpush2.bf16.msra.mxu0 0
        %2247 = vmatprep.subr.bf16.mxu0 0
        %2248 = vmatpush2.bf16.msra.mxu0 0
        %2249 = vmatprep.subr.bf16.mxu0 0
        %2250 = vmatpush2.bf16.msra.mxu0 0
        %2251 = vmatprep.subr.bf16.mxu0 0
        %2252 = vmatpush2.bf16.msra.mxu0 0
        %2253 = vmatprep.mubr.bf16.mxu0 0
        %2254 = vmatmul.mubr.bf16.gmra.mxu0 %v2216
        %v2255 = vpop.f32.mrf.mxu0
        %v2256 = vadd.f32 0.0, %v2255
        %v2257 = vpop.f32.mrf.mxu0
        %v2258 = vpop.f32.mrf.mxu0
        %v2259 = vpop.f32.mrf.mxu0
        %2260 = vdwg.mxu0
        %v2262 = vsel %vm1673, %v2117, 0
        %v2265 = vsel %vm2125, %v1668, 0
        %2267 = vmatprep.subr.bf16.mxu0 0
        %2268 = vmatpush1.bf16.msra.mxu0 0
        %2269 = vmatprep.subr.bf16.mxu0 0
        %2270 = vmatpush1.bf16.msra.mxu0 0
        %2271 = vmatprep.subr.bf16.mxu0 0
        %2272 = vmatpush1.bf16.msra.mxu0 0
        %2273 = vmatprep.subr.bf16.mxu0 0
        %2274 = vmatpush1.bf16.msra.mxu0 0
        %2275 = vmatprep.subr.bf16.mxu0 0
        %2276 = vmatpush1.bf16.msra.mxu0 0
        %2277 = vmatprep.subr.bf16.mxu0 0
        %2278 = vmatpush1.bf16.msra.mxu0 0
        %2279 = vmatprep.subr.bf16.mxu0 0
        %2280 = vmatpush1.bf16.msra.mxu0 0
        %2281 = vmatprep.subr.bf16.mxu0 0
        %2282 = vmatpush1.bf16.msra.mxu0 %v2265
        %2283 = vmatprep.subr.bf16.mxu0 0
        %2284 = vmatpush2.bf16.msra.mxu0 0
        %2285 = vmatprep.subr.bf16.mxu0 0
        %2286 = vmatpush2.bf16.msra.mxu0 0
        %2287 = vmatprep.subr.bf16.mxu0 0
        %2288 = vmatpush2.bf16.msra.mxu0 0
        %2289 = vmatprep.subr.bf16.mxu0 0
        %2290 = vmatpush2.bf16.msra.mxu0 0
        %2291 = vmatprep.subr.bf16.mxu0 0
        %2292 = vmatpush2.bf16.msra.mxu0 0
        %2293 = vmatprep.subr.bf16.mxu0 0
        %2294 = vmatpush2.bf16.msra.mxu0 0
        %2295 = vmatprep.subr.bf16.mxu0 0
        %2296 = vmatpush2.bf16.msra.mxu0 0
        %2297 = vmatprep.subr.bf16.mxu0 0
        %2298 = vmatpush2.bf16.msra.mxu0 0
        %2299 = vmatprep.mubr.bf16.mxu0 0
        %2300 = vmatmul.mubr.bf16.gmra.mxu0 %v2262
        %v2301 = vpop.f32.mrf.mxu0
        %v2302 = vadd.f32 0.0, %v2301
        %v2303 = vpop.f32.mrf.mxu0
        %v2304 = vpop.f32.mrf.mxu0
        %v2305 = vpop.f32.mrf.mxu0
        %2306 = vdwg.mxu0
        %v2308 = vsel %vm1673, %v2118, 0
        %v2311 = vsel %vm2125, %v1669, 0
        %2313 = vmatprep.subr.bf16.mxu0 0
        %2314 = vmatpush1.bf16.msra.mxu0 0
        %2315 = vmatprep.subr.bf16.mxu0 0
        %2316 = vmatpush1.bf16.msra.mxu0 0
        %2317 = vmatprep.subr.bf16.mxu0 0
        %2318 = vmatpush1.bf16.msra.mxu0 0
        %2319 = vmatprep.subr.bf16.mxu0 0
        %2320 = vmatpush1.bf16.msra.mxu0 0
        %2321 = vmatprep.subr.bf16.mxu0 0
        %2322 = vmatpush1.bf16.msra.mxu0 0
        %2323 = vmatprep.subr.bf16.mxu0 0
        %2324 = vmatpush1.bf16.msra.mxu0 0
        %2325 = vmatprep.subr.bf16.mxu0 0
        %2326 = vmatpush1.bf16.msra.mxu0 0
        %2327 = vmatprep.subr.bf16.mxu0 0
        %2328 = vmatpush1.bf16.msra.mxu0 %v2311
        %2329 = vmatprep.subr.bf16.mxu0 0
        %2330 = vmatpush2.bf16.msra.mxu0 0
        %2331 = vmatprep.subr.bf16.mxu0 0
        %2332 = vmatpush2.bf16.msra.mxu0 0
        %2333 = vmatprep.subr.bf16.mxu0 0
        %2334 = vmatpush2.bf16.msra.mxu0 0
        %2335 = vmatprep.subr.bf16.mxu0 0
        %2336 = vmatpush2.bf16.msra.mxu0 0
        %2337 = vmatprep.subr.bf16.mxu0 0
        %2338 = vmatpush2.bf16.msra.mxu0 0
        %2339 = vmatprep.subr.bf16.mxu0 0
        %2340 = vmatpush2.bf16.msra.mxu0 0
        %2341 = vmatprep.subr.bf16.mxu0 0
        %2342 = vmatpush2.bf16.msra.mxu0 0
        %2343 = vmatprep.subr.bf16.mxu0 0
        %2344 = vmatpush2.bf16.msra.mxu0 0
        %2345 = vmatprep.mubr.bf16.mxu0 0
        %2346 = vmatmul.mubr.bf16.gmra.mxu0 %v2308
        %v2347 = vpop.f32.mrf.mxu0
        %v2348 = vadd.f32 0.0, %v2347
        %v2349 = vpop.f32.mrf.mxu0
        %v2350 = vpop.f32.mrf.mxu0
        %v2351 = vpop.f32.mrf.mxu0
        %2352 = vdwg.mxu0
        %v2354 = vsel %vm1673, %v2119, 0
        %v2357 = vsel %vm2125, %v1670, 0
        %2359 = vmatprep.subr.bf16.mxu0 0
        %2360 = vmatpush1.bf16.msra.mxu0 0
        %2361 = vmatprep.subr.bf16.mxu0 0
        %2362 = vmatpush1.bf16.msra.mxu0 0
        %2363 = vmatprep.subr.bf16.mxu0 0
        %2364 = vmatpush1.bf16.msra.mxu0 0
        %2365 = vmatprep.subr.bf16.mxu0 0
        %2366 = vmatpush1.bf16.msra.mxu0 0
        %2367 = vmatprep.subr.bf16.mxu0 0
        %2368 = vmatpush1.bf16.msra.mxu0 0
        %2369 = vmatprep.subr.bf16.mxu0 0
        %2370 = vmatpush1.bf16.msra.mxu0 0
        %2371 = vmatprep.subr.bf16.mxu0 0
        %2372 = vmatpush1.bf16.msra.mxu0 0
        %2373 = vmatprep.subr.bf16.mxu0 0
        %2374 = vmatpush1.bf16.msra.mxu0 %v2357
        %2375 = vmatprep.subr.bf16.mxu0 0
        %2376 = vmatpush2.bf16.msra.mxu0 0
        %2377 = vmatprep.subr.bf16.mxu0 0
        %2378 = vmatpush2.bf16.msra.mxu0 0
        %2379 = vmatprep.subr.bf16.mxu0 0
        %2380 = vmatpush2.bf16.msra.mxu0 0
        %2381 = vmatprep.subr.bf16.mxu0 0
        %2382 = vmatpush2.bf16.msra.mxu0 0
        %2383 = vmatprep.subr.bf16.mxu0 0
        %2384 = vmatpush2.bf16.msra.mxu0 0
        %2385 = vmatprep.subr.bf16.mxu0 0
        %2386 = vmatpush2.bf16.msra.mxu0 0
        %2387 = vmatprep.subr.bf16.mxu0 0
        %2388 = vmatpush2.bf16.msra.mxu0 0
        %2389 = vmatprep.subr.bf16.mxu0 0
        %2390 = vmatpush2.bf16.msra.mxu0 0
        %2391 = vmatprep.mubr.bf16.mxu0 0
        %2392 = vmatmul.mubr.bf16.gmra.mxu0 %v2354
        %v2393 = vpop.f32.mrf.mxu0
        %v2394 = vadd.f32 0.0, %v2393
        %v2395 = vpop.f32.mrf.mxu0
        %v2396 = vpop.f32.mrf.mxu0
        %v2397 = vpop.f32.mrf.mxu0
        %2398 = vdwg.mxu0
        %v2400 = vsel %vm1673, %v2120, 0
        %v2403 = vsel %vm2125, %v1671, 0
        %2405 = vmatprep.subr.bf16.mxu0 0
        %2406 = vmatpush1.bf16.msra.mxu0 0
        %2407 = vmatprep.subr.bf16.mxu0 0
        %2408 = vmatpush1.bf16.msra.mxu0 0
        %2409 = vmatprep.subr.bf16.mxu0 0
        %2410 = vmatpush1.bf16.msra.mxu0 0
        %2411 = vmatprep.subr.bf16.mxu0 0
        %2412 = vmatpush1.bf16.msra.mxu0 0
        %2413 = vmatprep.subr.bf16.mxu0 0
        %2414 = vmatpush1.bf16.msra.mxu0 0
        %2415 = vmatprep.subr.bf16.mxu0 0
        %2416 = vmatpush1.bf16.msra.mxu0 0
        %2417 = vmatprep.subr.bf16.mxu0 0
        %2418 = vmatpush1.bf16.msra.mxu0 0
        %2419 = vmatprep.subr.bf16.mxu0 0
        %2420 = vmatpush1.bf16.msra.mxu0 %v2403
        %2421 = vmatprep.subr.bf16.mxu0 0
        %2422 = vmatpush2.bf16.msra.mxu0 0
        %2423 = vmatprep.subr.bf16.mxu0 0
        %2424 = vmatpush2.bf16.msra.mxu0 0
        %2425 = vmatprep.subr.bf16.mxu0 0
        %2426 = vmatpush2.bf16.msra.mxu0 0
        %2427 = vmatprep.subr.bf16.mxu0 0
        %2428 = vmatpush2.bf16.msra.mxu0 0
        %2429 = vmatprep.subr.bf16.mxu0 0
        %2430 = vmatpush2.bf16.msra.mxu0 0
        %2431 = vmatprep.subr.bf16.mxu0 0
        %2432 = vmatpush2.bf16.msra.mxu0 0
        %2433 = vmatprep.subr.bf16.mxu0 0
        %2434 = vmatpush2.bf16.msra.mxu0 0
        %2435 = vmatprep.subr.bf16.mxu0 0
        %2436 = vmatpush2.bf16.msra.mxu0 0
        %2437 = vmatprep.mubr.bf16.mxu0 0
        %2438 = vmatmul.mubr.bf16.gmra.mxu0 %v2400
        %v2439 = vpop.f32.mrf.mxu0
        %v2440 = vadd.f32 0.0, %v2439
        %v2441 = vpop.f32.mrf.mxu0
        %v2442 = vpop.f32.mrf.mxu0
        %v2443 = vpop.f32.mrf.mxu0
        %2444 = vdwg.mxu0
        %v2446 = vsel %vm1673, %v2121, 0
        %v2449 = vsel %vm2125, %v1672, 0
        %2451 = vmatprep.subr.bf16.mxu0 0
        %2452 = vmatpush1.bf16.msra.mxu0 0
        %2453 = vmatprep.subr.bf16.mxu0 0
        %2454 = vmatpush1.bf16.msra.mxu0 0
        %2455 = vmatprep.subr.bf16.mxu0 0
        %2456 = vmatpush1.bf16.msra.mxu0 0
        %2457 = vmatprep.subr.bf16.mxu0 0
        %2458 = vmatpush1.bf16.msra.mxu0 0
        %2459 = vmatprep.subr.bf16.mxu0 0
        %2460 = vmatpush1.bf16.msra.mxu0 0
        %2461 = vmatprep.subr.bf16.mxu0 0
        %2462 = vmatpush1.bf16.msra.mxu0 0
        %2463 = vmatprep.subr.bf16.mxu0 0
        %2464 = vmatpush1.bf16.msra.mxu0 0
        %2465 = vmatprep.subr.bf16.mxu0 0
        %2466 = vmatpush1.bf16.msra.mxu0 %v2449
        %2467 = vmatprep.subr.bf16.mxu0 0
        %2468 = vmatpush2.bf16.msra.mxu0 0
        %2469 = vmatprep.subr.bf16.mxu0 0
        %2470 = vmatpush2.bf16.msra.mxu0 0
        %2471 = vmatprep.subr.bf16.mxu0 0
        %2472 = vmatpush2.bf16.msra.mxu0 0
        %2473 = vmatprep.subr.bf16.mxu0 0
        %2474 = vmatpush2.bf16.msra.mxu0 0
        %2475 = vmatprep.subr.bf16.mxu0 0
        %2476 = vmatpush2.bf16.msra.mxu0 0
        %2477 = vmatprep.subr.bf16.mxu0 0
        %2478 = vmatpush2.bf16.msra.mxu0 0
        %2479 = vmatprep.subr.bf16.mxu0 0
        %2480 = vmatpush2.bf16.msra.mxu0 0
        %2481 = vmatprep.subr.bf16.mxu0 0
        %2482 = vmatpush2.bf16.msra.mxu0 0
        %2483 = vmatprep.mubr.bf16.mxu0 0
        %2484 = vmatmul.mubr.bf16.gmra.mxu0 %v2446
        %v2485 = vpop.f32.mrf.mxu0
        %v2486 = vadd.f32 0.0, %v2485
        %v2487 = vpop.f32.mrf.mxu0
        %v2488 = vpop.f32.mrf.mxu0
        %v2489 = vpop.f32.mrf.mxu0
        %2490 = vdwg.mxu0
        %v2491 = vrcp.pop %v2092
        %v2492 = vrcp.pop %v2095
        %v2493 = vrcp.pop %v2098
        %v2494 = vrcp.pop %v2101
        %v2495 = vrcp.pop %v2104
        %v2496 = vrcp.pop %v2107
        %v2497 = vrcp.pop %v2110
        %v2498 = vrcp.pop %v2113
        %v2499 = vmul.f32 %v2164, %v2491
        %v2500 = vmul.f32 %v2210, %v2492
        %v2501 = vmul.f32 %v2256, %v2493
        %v2502 = vmul.f32 %v2302, %v2494
        %v2503 = vmul.f32 %v2348, %v2495
        %v2504 = vmul.f32 %v2394, %v2496
        %v2505 = vmul.f32 %v2440, %v2497
        %v2506 = vmul.f32 %v2486, %v2498
        %v2507 = vcombine.low %v2499, %v2501
        %v2508 = vcombine.high %v2499, %v2501
        %v2510 = vunpack.c.l.s4 1983009808
        %v2511 = vunpack.c.0.s8 %v2510
        %v2512 = vlaneseq
        %v2513 = vshrl.u32 %v2512, 7
        %v2514 = vsub.s32 %v2511, %v2513
        %v2515 = vrot.slane %v2507, %v2514
        %v2517 = vunpack.c.l.s4 1983009808
        %v2518 = vunpack.c.0.s8 %v2517
        %v2519 = vlaneseq
        %v2520 = vshrl.u32 %v2519, 7
        %v2521 = vsub.s32 %v2518, %v2520
        %v2522 = vrot.slane %v2508, %v2521
        %v2523 = vcombine.low %v2500, %v2502
        %v2524 = vcombine.high %v2500, %v2502
        %v2526 = vunpack.c.l.s4 1983009808
        %v2527 = vunpack.c.0.s8 %v2526
        %v2528 = vlaneseq
        %v2529 = vshrl.u32 %v2528, 7
        %v2530 = vsub.s32 %v2527, %v2529
        %v2531 = vrot.slane %v2523, %v2530
        %v2533 = vunpack.c.l.s4 1983009808
        %v2534 = vunpack.c.0.s8 %v2533
        %v2535 = vlaneseq
        %v2536 = vshrl.u32 %v2535, 7
        %v2537 = vsub.s32 %v2534, %v2536
        %v2538 = vrot.slane %v2524, %v2537
        %v2539 = vcombine.low %v2515, %v2531
        %v2540 = vcombine.high %v2515, %v2531
        %v2542 = vunpack.c.l.s4 1934713408
        %v2543 = vunpack.c.0.s8 %v2542
        %v2544 = vlaneseq
        %v2545 = vshrl.u32 %v2544, 7
        %v2546 = vsub.s32 %v2543, %v2545
        %v2547 = vrot.slane %v2539, %v2546
        %v2549 = vunpack.c.l.s4 1934713408
        %v2550 = vunpack.c.0.s8 %v2549
        %v2551 = vlaneseq
        %v2552 = vshrl.u32 %v2551, 7
        %v2553 = vsub.s32 %v2550, %v2552
        %v2554 = vrot.slane %v2540, %v2553
        %v2555 = vcombine.low %v2522, %v2538
        %v2556 = vcombine.high %v2522, %v2538
        %v2558 = vunpack.c.l.s4 1934713408
        %v2559 = vunpack.c.0.s8 %v2558
        %v2560 = vlaneseq
        %v2561 = vshrl.u32 %v2560, 7
        %v2562 = vsub.s32 %v2559, %v2561
        %v2563 = vrot.slane %v2555, %v2562
        %v2565 = vunpack.c.l.s4 1934713408
        %v2566 = vunpack.c.0.s8 %v2565
        %v2567 = vlaneseq
        %v2568 = vshrl.u32 %v2567, 7
        %v2569 = vsub.s32 %v2566, %v2568
        %v2570 = vrot.slane %v2556, %v2569
        %v2571 = vcombine.high %v2547, 0.0
        %v2572 = vcombine.high %v2554, 0.0
        %v2573 = vcombine.high %v2563, 0.0
        %v2574 = vcombine.high %v2570, 0.0
        %v2575 = vcombine.low %v2503, %v2505
        %v2576 = vcombine.high %v2503, %v2505
        %v2578 = vunpack.c.l.s4 1983009808
        %v2579 = vunpack.c.0.s8 %v2578
        %v2580 = vlaneseq
        %v2581 = vshrl.u32 %v2580, 7
        %v2582 = vsub.s32 %v2579, %v2581
        %v2583 = vrot.slane %v2575, %v2582
        %v2585 = vunpack.c.l.s4 1983009808
        %v2586 = vunpack.c.0.s8 %v2585
        %v2587 = vlaneseq
        %v2588 = vshrl.u32 %v2587, 7
        %v2589 = vsub.s32 %v2586, %v2588
        %v2590 = vrot.slane %v2576, %v2589
        %v2591 = vcombine.low %v2504, %v2506
        %v2592 = vcombine.high %v2504, %v2506
        %v2594 = vunpack.c.l.s4 1983009808
        %v2595 = vunpack.c.0.s8 %v2594
        %v2596 = vlaneseq
        %v2597 = vshrl.u32 %v2596, 7
        %v2598 = vsub.s32 %v2595, %v2597
        %v2599 = vrot.slane %v2591, %v2598
        %v2601 = vunpack.c.l.s4 1983009808
        %v2602 = vunpack.c.0.s8 %v2601
        %v2603 = vlaneseq
        %v2604 = vshrl.u32 %v2603, 7
        %v2605 = vsub.s32 %v2602, %v2604
        %v2606 = vrot.slane %v2592, %v2605
        %v2607 = vcombine.low %v2583, %v2599
        %v2608 = vcombine.high %v2583, %v2599
        %v2610 = vunpack.c.l.s4 1934713408
        %v2611 = vunpack.c.0.s8 %v2610
        %v2612 = vlaneseq
        %v2613 = vshrl.u32 %v2612, 7
        %v2614 = vsub.s32 %v2611, %v2613
        %v2615 = vrot.slane %v2607, %v2614
        %v2617 = vunpack.c.l.s4 1934713408
        %v2618 = vunpack.c.0.s8 %v2617
        %v2619 = vlaneseq
        %v2620 = vshrl.u32 %v2619, 7
        %v2621 = vsub.s32 %v2618, %v2620
        %v2622 = vrot.slane %v2608, %v2621
        %v2623 = vcombine.low %v2590, %v2606
        %v2624 = vcombine.high %v2590, %v2606
        %v2626 = vunpack.c.l.s4 1934713408
        %v2627 = vunpack.c.0.s8 %v2626
        %v2628 = vlaneseq
        %v2629 = vshrl.u32 %v2628, 7
        %v2630 = vsub.s32 %v2627, %v2629
        %v2631 = vrot.slane %v2623, %v2630
        %v2633 = vunpack.c.l.s4 1934713408
        %v2634 = vunpack.c.0.s8 %v2633
        %v2635 = vlaneseq
        %v2636 = vshrl.u32 %v2635, 7
        %v2637 = vsub.s32 %v2634, %v2636
        %v2638 = vrot.slane %v2624, %v2637
        %v2639 = vcombine.high %v2615, 0.0
        %v2640 = vcombine.high %v2622, 0.0
        %v2641 = vcombine.high %v2631, 0.0
        %v2642 = vcombine.high %v2638, 0.0
        %v2643 = vcombine.low %v2547, %v2554
        %v2645 = vunpack.c.l.s4 1983009808
        %v2646 = vunpack.c.0.s8 %v2645
        %v2647 = vlaneseq
        %v2648 = vshrl.u32 %v2647, 7
        %v2649 = vsub.s32 %v2646, %v2648
        %v2650 = vrot.slane %v2643, %v2649
        %v2651 = vcombine.low %v2571, %v2572
        %v2653 = vunpack.c.l.s4 1983009808
        %v2654 = vunpack.c.0.s8 %v2653
        %v2655 = vlaneseq
        %v2656 = vshrl.u32 %v2655, 7
        %v2657 = vsub.s32 %v2654, %v2656
        %v2658 = vrot.slane %v2651, %v2657
        %v2659 = vcombine.low %v2563, %v2570
        %v2661 = vunpack.c.l.s4 1983009808
        %v2662 = vunpack.c.0.s8 %v2661
        %v2663 = vlaneseq
        %v2664 = vshrl.u32 %v2663, 7
        %v2665 = vsub.s32 %v2662, %v2664
        %v2666 = vrot.slane %v2659, %v2665
        %v2667 = vcombine.low %v2573, %v2574
        %v2669 = vunpack.c.l.s4 1983009808
        %v2670 = vunpack.c.0.s8 %v2669
        %v2671 = vlaneseq
        %v2672 = vshrl.u32 %v2671, 7
        %v2673 = vsub.s32 %v2670, %v2672
        %v2674 = vrot.slane %v2667, %v2673
        %v2675 = vcombine.low %v2650, %v2658
        %v2676 = vcombine.high %v2650, %v2658
        %v2678 = vunpack.c.l.s4 1934713408
        %v2679 = vunpack.c.0.s8 %v2678
        %v2680 = vlaneseq
        %v2681 = vshrl.u32 %v2680, 7
        %v2682 = vsub.s32 %v2679, %v2681
        %v2683 = vrot.slane %v2675, %v2682
        %v2685 = vunpack.c.l.s4 1934713408
        %v2686 = vunpack.c.0.s8 %v2685
        %v2687 = vlaneseq
        %v2688 = vshrl.u32 %v2687, 7
        %v2689 = vsub.s32 %v2686, %v2688
        %v2690 = vrot.slane %v2676, %v2689
        %v2691 = vcombine.low %v2666, %v2674
        %v2692 = vcombine.high %v2666, %v2674
        %v2694 = vunpack.c.l.s4 1934713408
        %v2695 = vunpack.c.0.s8 %v2694
        %v2696 = vlaneseq
        %v2697 = vshrl.u32 %v2696, 7
        %v2698 = vsub.s32 %v2695, %v2697
        %v2699 = vrot.slane %v2691, %v2698
        %v2701 = vunpack.c.l.s4 1934713408
        %v2702 = vunpack.c.0.s8 %v2701
        %v2703 = vlaneseq
        %v2704 = vshrl.u32 %v2703, 7
        %v2705 = vsub.s32 %v2702, %v2704
        %v2706 = vrot.slane %v2692, %v2705
        %v2707 = vcombine.low %v2683, %v2699
        %v2708 = vcombine.high %v2683, %v2699
        %v2709 = vcombine.low %v2690, %v2706
        %v2710 = vcombine.high %v2690, %v2706
        %v2711 = vcombine.low %v2615, %v2622
        %v2713 = vunpack.c.l.s4 1983009808
        %v2714 = vunpack.c.0.s8 %v2713
        %v2715 = vlaneseq
        %v2716 = vshrl.u32 %v2715, 7
        %v2717 = vsub.s32 %v2714, %v2716
        %v2718 = vrot.slane %v2711, %v2717
        %v2719 = vcombine.low %v2639, %v2640
        %v2721 = vunpack.c.l.s4 1983009808
        %v2722 = vunpack.c.0.s8 %v2721
        %v2723 = vlaneseq
        %v2724 = vshrl.u32 %v2723, 7
        %v2725 = vsub.s32 %v2722, %v2724
        %v2726 = vrot.slane %v2719, %v2725
        %v2727 = vcombine.low %v2631, %v2638
        %v2729 = vunpack.c.l.s4 1983009808
        %v2730 = vunpack.c.0.s8 %v2729
        %v2731 = vlaneseq
        %v2732 = vshrl.u32 %v2731, 7
        %v2733 = vsub.s32 %v2730, %v2732
        %v2734 = vrot.slane %v2727, %v2733
        %v2735 = vcombine.low %v2641, %v2642
        %v2737 = vunpack.c.l.s4 1983009808
        %v2738 = vunpack.c.0.s8 %v2737
        %v2739 = vlaneseq
        %v2740 = vshrl.u32 %v2739, 7
        %v2741 = vsub.s32 %v2738, %v2740
        %v2742 = vrot.slane %v2735, %v2741
        %v2743 = vcombine.low %v2718, %v2726
        %v2744 = vcombine.high %v2718, %v2726
        %v2746 = vunpack.c.l.s4 1934713408
        %v2747 = vunpack.c.0.s8 %v2746
        %v2748 = vlaneseq
        %v2749 = vshrl.u32 %v2748, 7
        %v2750 = vsub.s32 %v2747, %v2749
        %v2751 = vrot.slane %v2743, %v2750
        %v2753 = vunpack.c.l.s4 1934713408
        %v2754 = vunpack.c.0.s8 %v2753
        %v2755 = vlaneseq
        %v2756 = vshrl.u32 %v2755, 7
        %v2757 = vsub.s32 %v2754, %v2756
        %v2758 = vrot.slane %v2744, %v2757
        %v2759 = vcombine.low %v2734, %v2742
        %v2760 = vcombine.high %v2734, %v2742
        %v2762 = vunpack.c.l.s4 1934713408
        %v2763 = vunpack.c.0.s8 %v2762
        %v2764 = vlaneseq
        %v2765 = vshrl.u32 %v2764, 7
        %v2766 = vsub.s32 %v2763, %v2765
        %v2767 = vrot.slane %v2759, %v2766
        %v2769 = vunpack.c.l.s4 1934713408
        %v2770 = vunpack.c.0.s8 %v2769
        %v2771 = vlaneseq
        %v2772 = vshrl.u32 %v2771, 7
        %v2773 = vsub.s32 %v2770, %v2772
        %v2774 = vrot.slane %v2760, %v2773
        %v2775 = vcombine.low %v2751, %v2767
        %v2776 = vcombine.high %v2751, %v2767
        %v2777 = vcombine.low %v2758, %v2774
        %v2778 = vcombine.high %v2758, %v2774
        %2781 = vrot.lane.b32.xlu0 %v2708, 8
        %v2782 = vpop.permute.xlu0 %2781
        %2783 = vrot.lane.b32.xlu0 %v2776, 8
        %v2784 = vpop.permute.xlu0 %2783
        %2789 = vrot.lane.b32.xlu0 %v2709, 16
        %v2790 = vpop.permute.xlu0 %2789
        %2791 = vrot.lane.b32.xlu0 %v2777, 16
        %v2792 = vpop.permute.xlu0 %2791
        %2797 = vrot.lane.b32.xlu0 %v2710, 24
        %v2798 = vpop.permute.xlu0 %2797
        %2799 = vrot.lane.b32.xlu0 %v2778, 24
        %v2800 = vpop.permute.xlu0 %2799
        %v2803 = vsel %vm1673, %v2707, %v2782
        %v2804 = vsel %vm1673, %v2775, %v2784
        %vm2805 = vcmask 130048
        %v2806 = vsel %vm2805, %v2803, %v2790
        %v2807 = vsel %vm2805, %v2804, %v2792
        %vm2808 = vcmask 195584
        %v2809 = vsel %vm2808, %v2806, %v2798
        %v2810 = vsel %vm2808, %v2807, %v2800
        %v2811 = vpack.c.bf16 %v2810, %v2809
        %v2812 = vld [vmem:[%s612] sm:$0xf]
        %v2813 = vld [vmem:[%s612 + $0x4] sm:$0xf]
        %v2814 = vld [vmem:[%s612 + $0x8] sm:$0xf]
        %v2815 = vld [vmem:[%s612 + $0xc] sm:$0xf]
        %v2816 = vld [vmem:[%s615] sm:$0x1]
        %v2818 = vlaneseq
        %v2819 = vshrl.u32 %v2818, 7
        %v2820 = vsub.s32 0, %v2819
        %v2821 = vrot.slane %v2816, %v2820
        %v2827 = vunpack.c.l.b16 %v2812
        %v2828 = vunpack.c.l.b16 %v2813
        %v2829 = vunpack.c.l.b16 %v2814
        %v2830 = vunpack.c.l.b16 %v2815
        %v2831 = vpack.c.b16 %v2828, %v2827
        %v2832 = vpack.c.b16 %v2830, %v2829
        %v2836 = vsel %vm653, %v2811, 0
        %2838 = vmatprep.subr.bf16.mxu0 0
        %2839 = vmatpush1.bf16.msra.mxu0 0
        %2840 = vmatprep.subr.bf16.mxu0 0
        %2841 = vmatpush1.bf16.msra.mxu0 0
        %2842 = vmatprep.subr.bf16.mxu0 0
        %2843 = vmatpush1.bf16.msra.mxu0 0
        %2844 = vmatprep.subr.bf16.mxu0 0
        %2845 = vmatpush1.bf16.msra.mxu0 0
        %2846 = vmatprep.subr.bf16.mxu0 0
        %2847 = vmatpush1.bf16.msra.mxu0 0
        %2848 = vmatprep.subr.bf16.mxu0 0
        %2849 = vmatpush1.bf16.msra.mxu0 0
        %2850 = vmatprep.subr.bf16.mxu0 0
        %2851 = vmatpush1.bf16.msra.mxu0 %v2832
        %2852 = vmatprep.subr.bf16.mxu0 0
        %2853 = vmatpush1.bf16.msra.mxu0 %v2831
        %2854 = vmatprep.subr.bf16.mxu0 0
        %2855 = vmatpush2.bf16.msra.mxu0 0
        %2856 = vmatprep.subr.bf16.mxu0 0
        %2857 = vmatpush2.bf16.msra.mxu0 0
        %2858 = vmatprep.subr.bf16.mxu0 0
        %2859 = vmatpush2.bf16.msra.mxu0 0
        %2860 = vmatprep.subr.bf16.mxu0 0
        %2861 = vmatpush2.bf16.msra.mxu0 0
        %2862 = vmatprep.subr.bf16.mxu0 0
        %2863 = vmatpush2.bf16.msra.mxu0 0
        %2864 = vmatprep.subr.bf16.mxu0 0
        %2865 = vmatpush2.bf16.msra.mxu0 0
        %2866 = vmatprep.subr.bf16.mxu0 0
        %2867 = vmatpush2.bf16.msra.mxu0 0
        %2868 = vmatprep.subr.bf16.mxu0 0
        %2869 = vmatpush2.bf16.msra.mxu0 0
        %2870 = vmatprep.mubr.bf16.mxu0 0
        %2871 = vmatmul.mubr.bf16.gmra.mxu0 %v2836
        %v2872 = vpop.f32.mrf.mxu0
        %v2873 = vadd.f32 %v2821, %v2872
        %v2874 = vpop.f32.mrf.mxu0
        %v2875 = vpop.f32.mrf.mxu0
        %v2876 = vadd.f32 %v2821, %v2875
        %v2877 = vpop.f32.mrf.mxu0
        %2878 = vdwg.mxu0
        %v2879 = vadd.f32 %v649, %v2873
        %v2880 = vadd.f32 %v650, %v2876
        %v2881 = vld [vmem:[%s618] sm:$0x1]
        %v2882 = vld [vmem:[%s621] sm:$0x1]
        %v2883 = vsel %vm653, %v2879, 0.0
        %2884 = vadd.xlane.f32.xlu0 %v2883
        %v2885 = vpop.xlane.xlu0 %2884
        %v2886 = vsel %vm653, %v2880, 0.0
        %2887 = vadd.xlane.f32.xlu0 %v2886
        %v2888 = vpop.xlane.xlu0 %2887
        %v2889 = vmul.f32 %v2885, %v660
        %v2890 = vmul.f32 %v2888, %v660
        %v2891 = vsub.f32 %v2879, %v2889
        %v2892 = vsub.f32 %v2880, %v2890
        %v2893 = vmul.f32 %v2891, %v2891
        %v2894 = vmul.f32 %v2892, %v2892
        %v2895 = vsel %vm653, %v2893, 0.0
        %2896 = vadd.xlane.f32.xlu0 %v2895
        %v2897 = vpop.xlane.xlu0 %2896
        %v2898 = vsel %vm653, %v2894, 0.0
        %2899 = vadd.xlane.f32.xlu0 %v2898
        %v2900 = vpop.xlane.xlu0 %2899
        %v2901 = vmul.f32 %v2897, %v660
        %v2902 = vmul.f32 %v2900, %v660
        %v2903 = vadd.f32 %v2901, 1e-05
        %v2904 = vadd.f32 %v2902, 1e-05
        %v2905 = vrsqrt.pop %v2903
        %v2906 = vrsqrt.pop %v2904
        %v2907 = vmul.f32 %v2891, %v2905
        %v2908 = vmul.f32 %v2892, %v2906
        %v2910 = vlaneseq
        %v2911 = vshrl.u32 %v2910, 7
        %v2912 = vsub.s32 0, %v2911
        %v2913 = vrot.slane %v2881, %v2912
        %v2915 = vmul.f32 %v2907, %v2913
        %v2916 = vmul.f32 %v2908, %v2913
        %v2918 = vlaneseq
        %v2919 = vshrl.u32 %v2918, 7
        %v2920 = vsub.s32 0, %v2919
        %v2921 = vrot.slane %v2882, %v2920
        %v2923 = vadd.f32 %v2915, %v2921
        %v2924 = vadd.f32 %v2916, %v2921
        %v2925 = vpack.c.bf16 %v2924, %v2923
        %v2926 = vld [vmem:[%s626] sm:$0xf]
        %v2927 = vld [vmem:[%s626 + $0x4] sm:$0xf]
        %v2928 = vld [vmem:[%s626 + $0x8] sm:$0xf]
        %v2929 = vld [vmem:[%s626 + $0xc] sm:$0xf]
        %v2930 = vld [vmem:[%s629] sm:$0x1]
        %v2932 = vlaneseq
        %v2933 = vshrl.u32 %v2932, 7
        %v2934 = vsub.s32 0, %v2933
        %v2935 = vrot.slane %v2930, %v2934
        %v2941 = vunpack.c.l.b16 %v2926
        %v2942 = vunpack.c.l.b16 %v2927
        %v2943 = vunpack.c.l.b16 %v2928
        %v2944 = vunpack.c.l.b16 %v2929
        %v2945 = vpack.c.b16 %v2942, %v2941
        %v2946 = vpack.c.b16 %v2944, %v2943
        %v2950 = vsel %vm653, %v2925, 0
        %2952 = vmatprep.subr.bf16.mxu0 0
        %2953 = vmatpush1.bf16.msra.mxu0 0
        %2954 = vmatprep.subr.bf16.mxu0 0
        %2955 = vmatpush1.bf16.msra.mxu0 0
        %2956 = vmatprep.subr.bf16.mxu0 0
        %2957 = vmatpush1.bf16.msra.mxu0 0
        %2958 = vmatprep.subr.bf16.mxu0 0
        %2959 = vmatpush1.bf16.msra.mxu0 0
        %2960 = vmatprep.subr.bf16.mxu0 0
        %2961 = vmatpush1.bf16.msra.mxu0 0
        %2962 = vmatprep.subr.bf16.mxu0 0
        %2963 = vmatpush1.bf16.msra.mxu0 0
        %2964 = vmatprep.subr.bf16.mxu0 0
        %2965 = vmatpush1.bf16.msra.mxu0 %v2946
        %2966 = vmatprep.subr.bf16.mxu0 0
        %2967 = vmatpush1.bf16.msra.mxu0 %v2945
        %2968 = vmatprep.subr.bf16.mxu0 0
        %2969 = vmatpush2.bf16.msra.mxu0 0
        %2970 = vmatprep.subr.bf16.mxu0 0
        %2971 = vmatpush2.bf16.msra.mxu0 0
        %2972 = vmatprep.subr.bf16.mxu0 0
        %2973 = vmatpush2.bf16.msra.mxu0 0
        %2974 = vmatprep.subr.bf16.mxu0 0
        %2975 = vmatpush2.bf16.msra.mxu0 0
        %2976 = vmatprep.subr.bf16.mxu0 0
        %2977 = vmatpush2.bf16.msra.mxu0 0
        %2978 = vmatprep.subr.bf16.mxu0 0
        %2979 = vmatpush2.bf16.msra.mxu0 0
        %2980 = vmatprep.subr.bf16.mxu0 0
        %2981 = vmatpush2.bf16.msra.mxu0 0
        %2982 = vmatprep.subr.bf16.mxu0 0
        %2983 = vmatpush2.bf16.msra.mxu0 0
        %2984 = vmatprep.mubr.bf16.mxu0 0
        %2985 = vmatmul.mubr.bf16.gmra.mxu0 %v2950
        %v2986 = vpop.f32.mrf.mxu0
        %v2987 = vadd.f32 %v2935, %v2986
        %v2988 = vpop.f32.mrf.mxu0
        %v2989 = vpop.f32.mrf.mxu0
        %v2990 = vadd.f32 %v2935, %v2989
        %v2991 = vpop.f32.mrf.mxu0
        %2992 = vdwg.mxu0
        %v2993 = vmul.f32 %v2987, 1.702
        %v2994 = vmul.f32 %v2990, 1.702
        %v2995 = vxor.u32 %v2993, 2147483648
        %v2996 = vxor.u32 %v2994, 2147483648
        %v2997 = vmul.f32 %v2995, 1.442695
        %v2998 = vpow.pop %v2997
        %v2999 = vmul.f32 %v2996, 1.442695
        %v3000 = vpow.pop %v2999
        %v3001 = vadd.f32 %v2998, 1.0
        %v3002 = vadd.f32 %v3000, 1.0
        %v3003 = vrcp.pop %v3001
        %v3004 = vmul.f32 1.0, %v3003
        %v3005 = vrcp.pop %v3002
        %v3006 = vmul.f32 1.0, %v3005
        %v3007 = vmul.f32 %v2987, %v3004
        %v3008 = vmul.f32 %v2990, %v3006
        %v3009 = vpack.c.bf16 %v3008, %v3007
        %v3010 = vld [vmem:[%s634] sm:$0xf]
        %v3011 = vld [vmem:[%s634 + $0x4] sm:$0xf]
        %v3012 = vld [vmem:[%s634 + $0x8] sm:$0xf]
        %v3013 = vld [vmem:[%s634 + $0xc] sm:$0xf]
        %v3014 = vld [vmem:[%s634 + $0x10] sm:$0xf]
        %v3015 = vld [vmem:[%s634 + $0x14] sm:$0xf]
        %v3016 = vld [vmem:[%s634 + $0x18] sm:$0xf]
        %v3017 = vld [vmem:[%s634 + $0x1c] sm:$0xf]
        %v3018 = vld [vmem:[%s634 + $0x20] sm:$0xf]
        %v3019 = vld [vmem:[%s634 + $0x24] sm:$0xf]
        %v3020 = vld [vmem:[%s634 + $0x28] sm:$0xf]
        %v3021 = vld [vmem:[%s634 + $0x2c] sm:$0xf]
        %v3022 = vld [vmem:[%s634 + $0x30] sm:$0xf]
        %v3023 = vld [vmem:[%s634 + $0x34] sm:$0xf]
        %v3024 = vld [vmem:[%s634 + $0x38] sm:$0xf]
        %v3025 = vld [vmem:[%s634 + $0x3c] sm:$0xf]
        %v3026 = vld [vmem:[%s637] sm:$0x1]
        %v3028 = vlaneseq
        %v3029 = vshrl.u32 %v3028, 7
        %v3030 = vsub.s32 0, %v3029
        %v3031 = vrot.slane %v3026, %v3030
        %v3049 = vunpack.c.l.b16 %v3010
        %v3050 = vunpack.c.l.b16 %v3011
        %v3051 = vunpack.c.l.b16 %v3012
        %v3052 = vunpack.c.l.b16 %v3013
        %v3053 = vunpack.c.l.b16 %v3014
        %v3054 = vunpack.c.l.b16 %v3015
        %v3055 = vunpack.c.l.b16 %v3016
        %v3056 = vunpack.c.l.b16 %v3017
        %v3057 = vunpack.c.l.b16 %v3018
        %v3058 = vunpack.c.l.b16 %v3019
        %v3059 = vunpack.c.l.b16 %v3020
        %v3060 = vunpack.c.l.b16 %v3021
        %v3061 = vunpack.c.l.b16 %v3022
        %v3062 = vunpack.c.l.b16 %v3023
        %v3063 = vunpack.c.l.b16 %v3024
        %v3064 = vunpack.c.l.b16 %v3025
        %v3065 = vpack.c.b16 %v3050, %v3049
        %v3066 = vpack.c.b16 %v3052, %v3051
        %v3067 = vpack.c.b16 %v3054, %v3053
        %v3068 = vpack.c.b16 %v3056, %v3055
        %v3069 = vpack.c.b16 %v3058, %v3057
        %v3070 = vpack.c.b16 %v3060, %v3059
        %v3071 = vpack.c.b16 %v3062, %v3061
        %v3072 = vpack.c.b16 %v3064, %v3063
        %3081 = vmatprep.subr.bf16.mxu0 0
        %3082 = vmatpush1.bf16.msra.mxu0 %v3072
        %3083 = vmatprep.subr.bf16.mxu0 0
        %3084 = vmatpush1.bf16.msra.mxu0 %v3071
        %3085 = vmatprep.subr.bf16.mxu0 0
        %3086 = vmatpush1.bf16.msra.mxu0 %v3070
        %3087 = vmatprep.subr.bf16.mxu0 0
        %3088 = vmatpush1.bf16.msra.mxu0 %v3069
        %3089 = vmatprep.subr.bf16.mxu0 0
        %3090 = vmatpush1.bf16.msra.mxu0 %v3068
        %3091 = vmatprep.subr.bf16.mxu0 0
        %3092 = vmatpush1.bf16.msra.mxu0 %v3067
        %3093 = vmatprep.subr.bf16.mxu0 0
        %3094 = vmatpush1.bf16.msra.mxu0 %v3066
        %3095 = vmatprep.subr.bf16.mxu0 0
        %3096 = vmatpush1.bf16.msra.mxu0 %v3065
        %3097 = vmatprep.subr.bf16.mxu0 0
        %3098 = vmatpush2.bf16.msra.mxu0 0
        %3099 = vmatprep.subr.bf16.mxu0 0
        %3100 = vmatpush2.bf16.msra.mxu0 0
        %3101 = vmatprep.subr.bf16.mxu0 0
        %3102 = vmatpush2.bf16.msra.mxu0 0
        %3103 = vmatprep.subr.bf16.mxu0 0
        %3104 = vmatpush2.bf16.msra.mxu0 0
        %3105 = vmatprep.subr.bf16.mxu0 0
        %3106 = vmatpush2.bf16.msra.mxu0 0
        %3107 = vmatprep.subr.bf16.mxu0 0
        %3108 = vmatpush2.bf16.msra.mxu0 0
        %3109 = vmatprep.subr.bf16.mxu0 0
        %3110 = vmatpush2.bf16.msra.mxu0 0
        %3111 = vmatprep.subr.bf16.mxu0 0
        %3112 = vmatpush2.bf16.msra.mxu0 0
        %3113 = vmatprep.mubr.bf16.mxu0 0
        %3114 = vmatmul.mubr.bf16.gmra.mxu0 %v3009
        %v3115 = vpop.f32.mrf.mxu0
        %v3116 = vadd.f32 %v3031, %v3115
        %v3117 = vpop.f32.mrf.mxu0
        %v3118 = vpop.f32.mrf.mxu0
        %v3119 = vadd.f32 %v3031, %v3118
        %v3120 = vpop.f32.mrf.mxu0
        %3121 = vdwg.mxu0
        %v3122 = vadd.f32 %v2879, %v3116
        %v3123 = vadd.f32 %v2880, %v3119
        %3124 = vst.msk [vmem:[#allocation2] sm:$0xff] %vm653, %v3122
        %3125 = vst.msk [vmem:[#allocation2 + $0x8] sm:$0xff] %vm653, %v3123
        // Predicated region
        $region77: #{tpu_custom_call.1} parent=71 // pred_check
          %p3126 = pneg %p393
        $region78: #{tpu_custom_call.1} parent=71 // pred_check_branch
          %3128 = sbr.rel (%p3126) target = $region80
        $region79: #{tpu_custom_call.1} parent=71 // pred_region
          %s3129 = smul.u32 2, %s29
          %s3131 = ssub.s32 256, 256
          %3132 = vsyncadd [#allocation3], %s3131
          %s3133 = smul.addr %s3129, 128
          %s3134 = scalar_lea.hbm %s13, %s3133
          %s3135 = sshll.u32 [#allocation2], 4
          %s3136 = int_to_ptr.vmem [resolvable:$true] %s3135
          %3141 = dma.vmem_to_hbm [thread:$0]  %s3136, 256, %s3134, [#allocation3], 128, 128, 8
        $region80: #{tpu_custom_call.1} parent=71 // pred_fallthru
          _
        // Predicated region
        $region81: #{tpu_custom_call.1} parent=71 // pred_check
          %p3142 = pneg %p393
        $region82: #{tpu_custom_call.1} parent=71 // pred_check_branch
          %3144 = sbr.rel (%p3142) target = $region84
        $region83: #{tpu_custom_call.1} parent=71 // pred_region
          %3145 = dma.done [#allocation3], 256
        $region84: #{tpu_custom_call.1} parent=71 // pred_fallthru
          _
      $region72: #{tpu_custom_call.1} parent=5 // pred_fallthru
        _
      %p3146 = scmp.le.s32.totalorder 2, %s20
      // Predicated region
      $region85: #{tpu_custom_call.1} parent=5 // pred_check
        %p3147 = pneg %p3146
      $region86: #{tpu_custom_call.1} parent=5 // pred_check_branch
        %3149 = sbr.rel (%p3147) target = $region88
      $region87: #{tpu_custom_call.1} parent=5 // pred_region
        %s3150 = ssub.s32 %s20, 2
      $region88: #{tpu_custom_call.1} parent=5 // pred_fallthru
        _
    $region6: #{tpu_custom_call.1} parent=1 // loop_footer
      %s24 = sadd.s32 1, %s20
    $region7: #{tpu_custom_call.1} parent=1 // loop_footer_branch
      %19 = sbr.rel target = $region3
    $region8: #{tpu_custom_call.1} parent=1 // loop_exit
      _
    %3151 = vsyncpa [#allocation3], 1
    %s3152 = scalar_lea.sflag [#allocation3], 1
    %3153 = vsyncpa %s3152, 1

</llo_original>
